<compile_context>
chip_gen: v5e
topology: v5e:2x2
jax: 0.10.0
libtpu: 0.0.40
codegen_flags: <defaults>
</compile_context>

<pallas_src>
import math

import jax
import jax.numpy as jnp
from jax.experimental import pallas as pl
from jax.experimental.pallas import tpu as pltpu

d_model = 64
d_k = d_v = 32
n_heads = 1
d_ff = d_model * 4          # 256
QKV_PAD = 128               # 3*d_k = 96 padded up to a full 128-lane tile

_INV_SQRT_DK = 1.0 / math.sqrt(d_k)
_INV_SQRT_2 = 1.0 / math.sqrt(2.0)


def _encoder_layer_kernel(x_ref, bias_ref,
                          wqkv_ref, bqkv_ref, wo_ref, bo_ref,
                          w1_ref, b1_ref, w2_ref, b2_ref,
                          out_ref):
    # x_ref: [R, d_model] with R = TB*S rows; bias_ref: [R, R] additive mask bias.
    x = x_ref[...].astype(jnp.float32)                    # [R, 64]
    x_bf = x.astype(jnp.bfloat16)

    # --- fused Q/K/V projection (single lane-dense matmul; 1/sqrt(d_k) folded in W_Q) ---
    qkv = jnp.dot(x_bf, wqkv_ref[...],
                  preferred_element_type=jnp.float32) + bqkv_ref[...]   # [R, 128]
    q = qkv[:, 0:d_k].astype(jnp.bfloat16)                 # [R, 32] (pre-scaled)
    k = qkv[:, d_k:2 * d_k].astype(jnp.bfloat16)           # [R, 32]
    v = qkv[:, 2 * d_k:3 * d_k].astype(jnp.bfloat16)       # [R, 32]

    # --- block-diagonal scaled dot-product attention (two full-size MXU matmuls) ---
    scores = jax.lax.dot_general(q, k, (((1,), (1,)), ((), ())),
                                 preferred_element_type=jnp.float32)    # [R, R]
    scores = scores + bias_ref[...]                        # 0 allowed, -1e9 masked/cross-batch

    m = jnp.max(scores, axis=-1, keepdims=True)
    e = jnp.exp(scores - m)
    l = jnp.sum(e, axis=-1, keepdims=True)
    attn = e * pl.reciprocal(l, approx=True)               # [R, R]

    context = jnp.dot(attn.astype(jnp.bfloat16), v,
                      preferred_element_type=jnp.float32)  # [R, 32]

    mha = jnp.dot(context.astype(jnp.bfloat16), wo_ref[...],
                  preferred_element_type=jnp.float32) + bo_ref[...]     # [R, 64]

    # --- residual + LayerNorm(d_model) (gamma=1, beta=0, eps=1e-5) ---
    res = mha + x
    mu = jnp.mean(res, axis=-1, keepdims=True)
    var = jnp.mean((res - mu) * (res - mu), axis=-1, keepdims=True)
    ln = (res - mu) * jax.lax.rsqrt(var + jnp.float32(1e-5))            # [R, 64]

    # --- position-wise FFN with exact erf GELU (matches the PyTorch gelu()) ---
    h = jnp.dot(ln.astype(jnp.bfloat16), w1_ref[...],
                preferred_element_type=jnp.float32) + b1_ref[...]       # [R, 256]
    h = h * 0.5 * (1.0 + jax.lax.erf(h * jnp.float32(_INV_SQRT_2)))
    y = jnp.dot(h.astype(jnp.bfloat16), w2_ref[...],
                preferred_element_type=jnp.float32) + b2_ref[...]       # [R, 64]

    out_ref[...] = y.astype(out_ref.dtype)


def _num_grid_steps(B):
    """1 step on single-TC chips (v5e/v6e); an even 2-way split on v7x (2 TCs)."""
    try:
        kind = jax.devices()[0].device_kind.lower()
    except Exception:
        kind = ""
    if ("v7" in kind or "tpu7" in kind or "7x" in kind) and B % 2 == 0:
        return 2
    return 1


def _build_attn_bias(mask, TB):
    """mask: [B, S, S], nonzero => masked.  Returns [G, TB*S, TB*S] f32 additive bias
    that is block-diagonal (cross-batch entries masked with -1e9)."""
    B, S, _ = mask.shape
    G = B // TB
    R = TB * S
    m = (mask != 0).reshape(G, TB, S, S)
    r = jnp.arange(R)
    row_t = r // S            # batch index within the tile
    idx_s = r % S             # sequence index within the batch
    same = row_t[:, None] == row_t[None, :]                                    # [R, R]
    within = m[:, row_t[:, None], idx_s[:, None], idx_s[None, :]]              # [G, R, R]
    masked = jnp.logical_or(~same[None, :, :], within)
    return jnp.where(masked, jnp.float32(-1e9), jnp.float32(0.0))


def encoder_layer(x, mask, params):
    """x: [B, S, d_model] f32, mask: [B, S, S] (nonzero = masked), params: packed tuple."""
    B, S, D = x.shape
    assert D == d_model
    steps = _num_grid_steps(B)
    TB = B // steps
    R = TB * S

    x2 = x.reshape(B * S, D)                      # host-side reshape (free at HBM level)
    bias = _build_attn_bias(mask, TB)             # [steps, R, R] f32

    def full_spec(shape):
        nd = len(shape)
        return pl.BlockSpec(shape, lambda b, _nd=nd: (0,) * _nd)

    in_specs = [
        pl.BlockSpec((R, D), lambda b: (b, 0)),                  # x (2D rows)
        pl.BlockSpec((pl.Squeezed(), R, R), lambda b: (b, 0, 0)),  # additive mask bias
        full_spec((d_model, QKV_PAD)), full_spec((1, QKV_PAD)),  # fused W_QKV, b_QKV
        full_spec((d_v, d_model)), full_spec((1, d_model)),      # fc  (attention out proj)
        full_spec((d_model, d_ff)), full_spec((1, d_ff)),        # fc1
        full_spec((d_ff, d_model)), full_spec((1, d_model)),     # fc2
    ]

    out2 = pl.pallas_call(
        _encoder_layer_kernel,
        out_shape=jax.ShapeDtypeStruct((B * S, D), jnp.float32),
        grid=(steps,),
        in_specs=in_specs,
        out_specs=pl.BlockSpec((R, D), lambda b: (b, 0)),
        compiler_params=pltpu.CompilerParams(
            dimension_semantics=("parallel",),
            vmem_limit_bytes=32 * 1024 * 1024),
    )(x2, bias, *params)
    return out2.reshape(B, S, D)


def init_params(key):
    """Deterministic synthetic weights matching the nn.Linear shapes in __init__ (f32)."""
    ks = jax.random.split(key, 12)

    def lin(kw, kb, fan_in, fan_out):
        bound = 1.0 / math.sqrt(fan_in)
        w = jax.random.uniform(kw, (fan_in, fan_out), jnp.float32, -bound, bound)
        b = jax.random.uniform(kb, (1, fan_out), jnp.float32, -bound, bound)
        return w, b

    wq, bq = lin(ks[0], ks[1], d_model, d_k * n_heads)
    wk, bk = lin(ks[2], ks[3], d_model, d_k * n_heads)
    wv, bv = lin(ks[4], ks[5], d_model, d_v * n_heads)
    wo, bo = lin(ks[6], ks[7], n_heads * d_v, d_model)
    w1, b1 = lin(ks[8], ks[9], d_model, d_ff)
    w2, b2 = lin(ks[10], ks[11], d_ff, d_model)
    return (wq, bq, wk, bk, wv, bv, wo, bo, w1, b1, w2, b2)


def pack_params(raw):
    """Fold 1/sqrt(d_k) into W_Q/b_Q, fuse Q/K/V weights (pad to 128 lanes),
    cast matmul weights to bf16, keep biases f32."""
    wq, bq, wk, bk, wv, bv, wo, bo, w1, b1, w2, b2 = raw

    scale = jnp.float32(_INV_SQRT_DK)
    wq = wq * scale
    bq = bq * scale

    wqkv = jnp.concatenate([wq, wk, wv], axis=1)                       # [64, 96]
    bqkv = jnp.concatenate([bq, bk, bv], axis=1)                       # [1, 96]
    pad = QKV_PAD - wqkv.shape[1]
    wqkv = jnp.pad(wqkv, ((0, 0), (0, pad)))                           # [64, 128]
    bqkv = jnp.pad(bqkv, ((0, 0), (0, pad)))                           # [1, 128]

    bf = jnp.bfloat16
    return (wqkv.astype(bf), bqkv.astype(jnp.float32),
            wo.astype(bf), bo.astype(jnp.float32),
            w1.astype(bf), b1.astype(jnp.float32),
            w2.astype(bf), b2.astype(jnp.float32))


if __name__ == "__main__":
    key = jax.random.PRNGKey(0)
    k_x, k_p = jax.random.split(key)

    B, S = 24, 8   # batch_size=24 in the original module spec
    x = jax.random.normal(k_x, (B, S, d_model), dtype=jnp.float32)

    # causal-style mask: mask[i, j] = 1 (masked) for j > i, like a subsequent mask
    row = jnp.arange(S)
    mask2d = (row[None, :] > row[:, None]).astype(jnp.int8)
    mask = jnp.broadcast_to(mask2d, (B, S, S))

    params = pack_params(init_params(k_p))

    # TODO(synk): the 'parse'/'check' stage branches (returning attention weights or the
    # raw context tensor) are host-control-flow early exits and are not part of this
    # fused 'train'-path kernel.
    out = encoder_layer(x, mask, params)
    out = jax.block_until_ready(out)
    assert out.shape == (B, S, d_model)
    assert bool(jnp.all(jnp.isfinite(out)))
    print("KERNEL_OK")
</pallas_src>

<mosaic_0001>
module attributes {stable_mosaic.version = 11 : i64} {
  func.func @_encoder_layer_kernel(%arg0: i32, %arg1: memref<192x64xf32, #tpu.memory_space<vmem>>, %arg2: memref<1x192x192xf32, #tpu.memory_space<vmem>>, %arg3: memref<64x128xbf16, #tpu.memory_space<vmem>>, %arg4: memref<1x128xf32, #tpu.memory_space<vmem>>, %arg5: memref<32x64xbf16, #tpu.memory_space<vmem>>, %arg6: memref<1x64xf32, #tpu.memory_space<vmem>>, %arg7: memref<64x256xbf16, #tpu.memory_space<vmem>>, %arg8: memref<1x256xf32, #tpu.memory_space<vmem>>, %arg9: memref<256x64xbf16, #tpu.memory_space<vmem>>, %arg10: memref<1x64xf32, #tpu.memory_space<vmem>>, %arg11: memref<192x64xf32, #tpu.memory_space<vmem>>) attributes {dimension_semantics = [#tpu.dimension_semantics<parallel>], iteration_bounds = array<i64: 1>, scalar_prefetch = 0 : i64, scratch_operands = 0 : i64, tpu.core_type = #tpu.core_type<tc>, window_params = [{transform_indices = @transform_0, window_bounds = array<i64: 192, 64>}, {transform_indices = @transform_1, window_bounds = array<i64: 1, 192, 192>}, {pipeline_mode = #tpu.pipeline_mode<synchronous>, transform_indices = @transform_2, window_bounds = array<i64: 64, 128>}, {pipeline_mode = #tpu.pipeline_mode<synchronous>, transform_indices = @transform_3, window_bounds = array<i64: 1, 128>}, {pipeline_mode = #tpu.pipeline_mode<synchronous>, transform_indices = @transform_4, window_bounds = array<i64: 32, 64>}, {pipeline_mode = #tpu.pipeline_mode<synchronous>, transform_indices = @transform_5, window_bounds = array<i64: 1, 64>}, {pipeline_mode = #tpu.pipeline_mode<synchronous>, transform_indices = @transform_6, window_bounds = array<i64: 64, 256>}, {pipeline_mode = #tpu.pipeline_mode<synchronous>, transform_indices = @transform_7, window_bounds = array<i64: 1, 256>}, {pipeline_mode = #tpu.pipeline_mode<synchronous>, transform_indices = @transform_8, window_bounds = array<i64: 256, 64>}, {pipeline_mode = #tpu.pipeline_mode<synchronous>, transform_indices = @transform_9, window_bounds = array<i64: 1, 64>}, {transform_indices = @transform_10, window_bounds = array<i64: 192, 64>}]} {
    %c0 = arith.constant 0 : index
    %c0_0 = arith.constant 0 : index
    %0 = vector.load %arg1[%c0, %c0_0] : memref<192x64xf32, #tpu.memory_space<vmem>>, vector<192x64xf32>
    %1 = arith.truncf %0 : vector<192x64xf32> to vector<192x64xbf16>
    %c0_1 = arith.constant 0 : index
    %c0_2 = arith.constant 0 : index
    %2 = vector.load %arg3[%c0_1, %c0_2] : memref<64x128xbf16, #tpu.memory_space<vmem>>, vector<64x128xbf16>
    %cst = arith.constant dense<0.000000e+00> : vector<192x128xf32>
    %3 = tpu.matmul %1, %2, %cst {dimension_numbers = #tpu.dot_dimension_numbers<[1], [0], [0], [1], [0, 0, 1, 1], [], []>} : vector<192x64xbf16>, vector<64x128xbf16>, vector<192x128xf32> -> vector<192x128xf32>
    %c0_3 = arith.constant 0 : index
    %c0_4 = arith.constant 0 : index
    %4 = vector.load %arg4[%c0_3, %c0_4] : memref<1x128xf32, #tpu.memory_space<vmem>>, vector<1x128xf32>
    %5 = vector.broadcast %4 : vector<1x128xf32> to vector<192x128xf32>
    %6 = arith.addf %3, %5 : vector<192x128xf32>
    %7 = vector.extract_strided_slice %6 {offsets = [0, 0], sizes = [192, 32], strides = [1, 1]} : vector<192x128xf32> to vector<192x32xf32>
    %8 = arith.truncf %7 : vector<192x32xf32> to vector<192x32xbf16>
    %9 = vector.extract_strided_slice %6 {offsets = [0, 32], sizes = [192, 32], strides = [1, 1]} : vector<192x128xf32> to vector<192x32xf32>
    %10 = arith.truncf %9 : vector<192x32xf32> to vector<192x32xbf16>
    %11 = vector.extract_strided_slice %6 {offsets = [0, 64], sizes = [192, 32], strides = [1, 1]} : vector<192x128xf32> to vector<192x32xf32>
    %12 = arith.truncf %11 : vector<192x32xf32> to vector<192x32xbf16>
    %cst_5 = arith.constant dense<0.000000e+00> : vector<192x192xf32>
    %13 = tpu.matmul %8, %10, %cst_5 {dimension_numbers = #tpu.dot_dimension_numbers<[1], [1], [0], [0], [0, 0, 1, 0], [], []>} : vector<192x32xbf16>, vector<192x32xbf16>, vector<192x192xf32> -> vector<192x192xf32>
    %c0_6 = arith.constant 0 : index
    %c0_7 = arith.constant 0 : index
    %c0_8 = arith.constant 0 : index
    %14 = vector.load %arg2[%c0_6, %c0_7, %c0_8] : memref<1x192x192xf32, #tpu.memory_space<vmem>>, vector<1x192x192xf32>
    %15 = vector.shape_cast %14 : vector<1x192x192xf32> to vector<192x192xf32>
    %16 = arith.addf %13, %15 : vector<192x192xf32>
    %cst_9 = arith.constant dense<0xFF800000> : vector<192xf32>
    %17 = vector.multi_reduction <maximumf>, %16, %cst_9 [1] : vector<192x192xf32> to vector<192xf32>
    %18 = vector.shape_cast %17 : vector<192xf32> to vector<192x1xf32>
    %19 = vector.broadcast %18 : vector<192x1xf32> to vector<192x192xf32>
    %20 = arith.subf %16, %19 : vector<192x192xf32>
    %21 = math.exp %20 : vector<192x192xf32>
    %cst_10 = arith.constant dense<0.000000e+00> : vector<192xf32>
    %22 = vector.multi_reduction <add>, %21, %cst_10 [1] : vector<192x192xf32> to vector<192xf32>
    %23 = vector.shape_cast %22 : vector<192xf32> to vector<192x1xf32>
    %24 = tpu.reciprocal %23 {approx = true} : vector<192x1xf32> -> vector<192x1xf32>
    %25 = vector.broadcast %24 : vector<192x1xf32> to vector<192x192xf32>
    %26 = arith.mulf %21, %25 : vector<192x192xf32>
    %27 = arith.truncf %26 : vector<192x192xf32> to vector<192x192xbf16>
    %cst_11 = arith.constant dense<0.000000e+00> : vector<192x32xf32>
    %28 = tpu.matmul %27, %12, %cst_11 {dimension_numbers = #tpu.dot_dimension_numbers<[1], [0], [0], [1], [0, 0, 1, 1], [], []>} : vector<192x192xbf16>, vector<192x32xbf16>, vector<192x32xf32> -> vector<192x32xf32>
    %29 = arith.truncf %28 : vector<192x32xf32> to vector<192x32xbf16>
    %c0_12 = arith.constant 0 : index
    %c0_13 = arith.constant 0 : index
    %30 = vector.load %arg5[%c0_12, %c0_13] : memref<32x64xbf16, #tpu.memory_space<vmem>>, vector<32x64xbf16>
    %cst_14 = arith.constant dense<0.000000e+00> : vector<192x64xf32>
    %31 = tpu.matmul %29, %30, %cst_14 {dimension_numbers = #tpu.dot_dimension_numbers<[1], [0], [0], [1], [0, 0, 1, 1], [], []>} : vector<192x32xbf16>, vector<32x64xbf16>, vector<192x64xf32> -> vector<192x64xf32>
    %c0_15 = arith.constant 0 : index
    %c0_16 = arith.constant 0 : index
    %32 = vector.load %arg6[%c0_15, %c0_16] : memref<1x64xf32, #tpu.memory_space<vmem>>, vector<1x64xf32>
    %33 = vector.broadcast %32 : vector<1x64xf32> to vector<192x64xf32>
    %34 = arith.addf %31, %33 : vector<192x64xf32>
    %35 = arith.addf %34, %0 : vector<192x64xf32>
    %cst_17 = arith.constant dense<0.000000e+00> : vector<192xf32>
    %36 = vector.multi_reduction <add>, %35, %cst_17 [1] : vector<192x64xf32> to vector<192xf32>
    %37 = vector.shape_cast %36 : vector<192xf32> to vector<192x1xf32>
    %cst_18 = arith.constant 6.400000e+01 : f32
    %38 = vector.broadcast %cst_18 : f32 to vector<192x1xf32>
    %39 = arith.divf %37, %38 : vector<192x1xf32>
    %40 = vector.broadcast %39 : vector<192x1xf32> to vector<192x64xf32>
    %41 = arith.subf %35, %40 : vector<192x64xf32>
    %42 = vector.broadcast %39 : vector<192x1xf32> to vector<192x64xf32>
    %43 = arith.subf %35, %42 : vector<192x64xf32>
    %44 = arith.mulf %41, %43 : vector<192x64xf32>
    %cst_19 = arith.constant dense<0.000000e+00> : vector<192xf32>
    %45 = vector.multi_reduction <add>, %44, %cst_19 [1] : vector<192x64xf32> to vector<192xf32>
    %46 = vector.shape_cast %45 : vector<192xf32> to vector<192x1xf32>
    %cst_20 = arith.constant 6.400000e+01 : f32
    %47 = vector.broadcast %cst_20 : f32 to vector<192x1xf32>
    %48 = arith.divf %46, %47 : vector<192x1xf32>
    %49 = vector.broadcast %39 : vector<192x1xf32> to vector<192x64xf32>
    %50 = arith.subf %35, %49 : vector<192x64xf32>
    %cst_21 = arith.constant 9.99999974E-6 : f32
    %51 = vector.broadcast %cst_21 : f32 to vector<192x1xf32>
    %52 = arith.addf %48, %51 : vector<192x1xf32>
    %53 = math.rsqrt %52 : vector<192x1xf32>
    %54 = vector.broadcast %53 : vector<192x1xf32> to vector<192x64xf32>
    %55 = arith.mulf %50, %54 : vector<192x64xf32>
    %56 = arith.truncf %55 : vector<192x64xf32> to vector<192x64xbf16>
    %c0_22 = arith.constant 0 : index
    %c0_23 = arith.constant 0 : index
    %57 = vector.load %arg7[%c0_22, %c0_23] : memref<64x256xbf16, #tpu.memory_space<vmem>>, vector<64x256xbf16>
    %cst_24 = arith.constant dense<0.000000e+00> : vector<192x256xf32>
    %58 = tpu.matmul %56, %57, %cst_24 {dimension_numbers = #tpu.dot_dimension_numbers<[1], [0], [0], [1], [0, 0, 1, 1], [], []>} : vector<192x64xbf16>, vector<64x256xbf16>, vector<192x256xf32> -> vector<192x256xf32>
    %c0_25 = arith.constant 0 : index
    %c0_26 = arith.constant 0 : index
    %59 = vector.load %arg8[%c0_25, %c0_26] : memref<1x256xf32, #tpu.memory_space<vmem>>, vector<1x256xf32>
    %60 = vector.broadcast %59 : vector<1x256xf32> to vector<192x256xf32>
    %61 = arith.addf %58, %60 : vector<192x256xf32>
    %cst_27 = arith.constant 5.000000e-01 : f32
    %62 = vector.broadcast %cst_27 : f32 to vector<192x256xf32>
    %63 = arith.mulf %61, %62 : vector<192x256xf32>
    %cst_28 = arith.constant 0.707106769 : f32
    %64 = vector.broadcast %cst_28 : f32 to vector<192x256xf32>
    %65 = arith.mulf %61, %64 : vector<192x256xf32>
    %66 = math.erf %65 : vector<192x256xf32>
    %cst_29 = arith.constant 1.000000e+00 : f32
    %67 = vector.broadcast %cst_29 : f32 to vector<192x256xf32>
    %68 = arith.addf %67, %66 : vector<192x256xf32>
    %69 = arith.mulf %63, %68 : vector<192x256xf32>
    %70 = arith.truncf %69 : vector<192x256xf32> to vector<192x256xbf16>
    %c0_30 = arith.constant 0 : index
    %c0_31 = arith.constant 0 : index
    %71 = vector.load %arg9[%c0_30, %c0_31] : memref<256x64xbf16, #tpu.memory_space<vmem>>, vector<256x64xbf16>
    %cst_32 = arith.constant dense<0.000000e+00> : vector<192x64xf32>
    %72 = tpu.matmul %70, %71, %cst_32 {dimension_numbers = #tpu.dot_dimension_numbers<[1], [0], [0], [1], [0, 0, 1, 1], [], []>} : vector<192x256xbf16>, vector<256x64xbf16>, vector<192x64xf32> -> vector<192x64xf32>
    %c0_33 = arith.constant 0 : index
    %c0_34 = arith.constant 0 : index
    %73 = vector.load %arg10[%c0_33, %c0_34] : memref<1x64xf32, #tpu.memory_space<vmem>>, vector<1x64xf32>
    %74 = vector.broadcast %73 : vector<1x64xf32> to vector<192x64xf32>
    %75 = arith.addf %72, %74 : vector<192x64xf32>
    %c0_35 = arith.constant 0 : index
    %c0_36 = arith.constant 0 : index
    %76 = vector.load %arg11[%c0_35, %c0_36] : memref<192x64xf32, #tpu.memory_space<vmem>>, vector<192x64xf32>
    tpu.vector_store %arg11[%c0_35, %c0_36], %75 {strides = array<i32>} : memref<192x64xf32, #tpu.memory_space<vmem>>, vector<192x64xf32>,
    return
  }
  func.func @transform_0(%arg0: i32) -> (i32, i32) {
    %c0_i32 = arith.constant 0 : i32
    %c0_i32_0 = arith.constant 0 : i32
    return %arg0, %c0_i32 : i32, i32
  }
  func.func @transform_1(%arg0: i32) -> (i32, i32, i32) {
    %c0_i32 = arith.constant 0 : i32
    %c0_i32_0 = arith.constant 0 : i32
    %c0_i32_1 = arith.constant 0 : i32
    return %arg0, %c0_i32, %c0_i32_0 : i32, i32, i32
  }
  func.func @transform_2(%arg0: i32) -> (i32, i32) {
    %c0_i32 = arith.constant 0 : i32
    %c0_i32_0 = arith.constant 0 : i32
    %c0_i32_1 = arith.constant 0 : i32
    return %c0_i32, %c0_i32_0 : i32, i32
  }
  func.func @transform_3(%arg0: i32) -> (i32, i32) {
    %c0_i32 = arith.constant 0 : i32
    %c0_i32_0 = arith.constant 0 : i32
    %c0_i32_1 = arith.constant 0 : i32
    return %c0_i32, %c0_i32_0 : i32, i32
  }
  func.func @transform_4(%arg0: i32) -> (i32, i32) {
    %c0_i32 = arith.constant 0 : i32
    %c0_i32_0 = arith.constant 0 : i32
    %c0_i32_1 = arith.constant 0 : i32
    return %c0_i32, %c0_i32_0 : i32, i32
  }
  func.func @transform_5(%arg0: i32) -> (i32, i32) {
    %c0_i32 = arith.constant 0 : i32
    %c0_i32_0 = arith.constant 0 : i32
    %c0_i32_1 = arith.constant 0 : i32
    return %c0_i32, %c0_i32_0 : i32, i32
  }
  func.func @transform_6(%arg0: i32) -> (i32, i32) {
    %c0_i32 = arith.constant 0 : i32
    %c0_i32_0 = arith.constant 0 : i32
    %c0_i32_1 = arith.constant 0 : i32
    return %c0_i32, %c0_i32_0 : i32, i32
  }
  func.func @transform_7(%arg0: i32) -> (i32, i32) {
    %c0_i32 = arith.constant 0 : i32
    %c0_i32_0 = arith.constant 0 : i32
    %c0_i32_1 = arith.constant 0 : i32
    return %c0_i32, %c0_i32_0 : i32, i32
  }
  func.func @transform_8(%arg0: i32) -> (i32, i32) {
    %c0_i32 = arith.constant 0 : i32
    %c0_i32_0 = arith.constant 0 : i32
    %c0_i32_1 = arith.constant 0 : i32
    return %c0_i32, %c0_i32_0 : i32, i32
  }
  func.func @transform_9(%arg0: i32) -> (i32, i32) {
    %c0_i32 = arith.constant 0 : i32
    %c0_i32_0 = arith.constant 0 : i32
    %c0_i32_1 = arith.constant 0 : i32
    return %c0_i32, %c0_i32_0 : i32, i32
  }
  func.func @transform_10(%arg0: i32) -> (i32, i32) {
    %c0_i32 = arith.constant 0 : i32
    %c0_i32_0 = arith.constant 0 : i32
    return %arg0, %c0_i32 : i32, i32
  }
}

</mosaic_0001>

<llo_original>
// kernel: tpu_custom_call.1
$region0: #{tpu_custom_call.1}
  #allocation0 [shape = 'u32[]', space=smem, size = 0x4, offset = 0x4, fixed_abs, tag = 'smem constant byte address 0x4 - core index']
  #allocation1 [shape = 'u32[72,128]{1,0:T(1,128)}', space=vmem, size = 0x9000, scoped, tag = 'internal scratch']
  %s0 = inlined_call_operand.vmem [shape: f32[192,64], index: 0, kind: input, shape index: {}]
  %s1 = inlined_call_operand.vmem [shape: f32[1,192,192], index: 1, kind: input, shape index: {}]
  %s2 = inlined_call_operand.hbm [shape: bf16[64,128], index: 2, kind: input, shape index: {}]
  %s3 = inlined_call_operand.hbm [shape: f32[1,128], index: 3, kind: input, shape index: {}]
  %s4 = inlined_call_operand.hbm [shape: bf16[32,64], index: 4, kind: input, shape index: {}]
  %s5 = inlined_call_operand.hbm [shape: f32[1,64], index: 5, kind: input, shape index: {}]
  %s6 = inlined_call_operand.hbm [shape: bf16[64,256], index: 6, kind: input, shape index: {}]
  %s7 = inlined_call_operand.vmem [shape: f32[1,256], index: 7, kind: input, shape index: {}]
  %s8 = inlined_call_operand.vmem [shape: bf16[256,64], index: 8, kind: input, shape index: {}]
  %s9 = inlined_call_operand.vmem [shape: f32[1,64], index: 9, kind: input, shape index: {}]
  %s10 = inlined_call_operand.vmem [shape: f32[192,64], index: 10, kind: output, shape index: {}]
  %s11 = sld [smem:[#allocation0]]
  $region70: #{tpu_custom_call.1} parent=0
    _
  %s13 = ssub.s32 1, %s11
  %s14 = scalar_select 0, %s13, %s11
  $region1: #{tpu_custom_call.1} parent=0
    #allocation2 [shape = 'u8[16384]{0}', space=vmem, size = 0x4000, scoped, tag = 'input window, operand 2, single buffered']
    #allocation3 [shape = 's32[1]{0}', space=sflag, size = 0x4, scoped, tag = 'scoped memory for tpu_custom_call.1']
    #allocation4 [shape = 'u8[512]{0}', space=vmem, size = 0x400, scoped, tag = 'input window, operand 3, single buffered']
    #allocation5 [shape = 's32[1]{0}', space=sflag, size = 0x4, scoped, tag = 'scoped memory for tpu_custom_call.1']
    #allocation6 [shape = 'u8[8192]{0}', space=vmem, size = 0x2000, scoped, tag = 'input window, operand 4, single buffered']
    #allocation7 [shape = 'u8[512]{0}', space=vmem, size = 0x400, scoped, tag = 'input window, operand 5, single buffered']
    #allocation8 [shape = 's32[1]{0}', space=sflag, size = 0x4, scoped, tag = 'scoped memory for tpu_custom_call.1']
    #allocation9 [shape = 'u8[32768]{0}', space=vmem, size = 0x8000, scoped, tag = 'input window, operand 6, single buffered']
    %15 = vsyncpa [#allocation3], 0
    %16 = vsyncpa [#allocation5], 0
    %17 = vsyncpa [#allocation8], 0
    // Predicated region
    $region2: #{tpu_custom_call.1} parent=1 // pred_check
      _
    $region3: #{tpu_custom_call.1} parent=1 // pred_check_branch
      %19 = sbr.rel (0) target = $region5
    $region4: #{tpu_custom_call.1} parent=1 // pred_region
      _
    $region5: #{tpu_custom_call.1} parent=1 // pred_fallthru
      _
    // Predicated region
    $region6: #{tpu_custom_call.1} parent=1 // pred_check
      _
    $region7: #{tpu_custom_call.1} parent=1 // pred_check_branch
      %21 = sbr.rel (0) target = $region9
    $region8: #{tpu_custom_call.1} parent=1 // pred_region
      _
    $region9: #{tpu_custom_call.1} parent=1 // pred_fallthru
      _
    // Predicated region
    $region10: #{tpu_custom_call.1} parent=1 // pred_check
      _
    $region11: #{tpu_custom_call.1} parent=1 // pred_check_branch
      %23 = sbr.rel (0) target = $region13
    $region12: #{tpu_custom_call.1} parent=1 // pred_region
      %25 = vsyncadd [#allocation3], 0
      %s26 = sshll.u32 %s2, 4
      %s27 = int_to_ptr.hbm [resolvable:$true] %s26
      %s28 = sshll.u32 [#allocation2], 4
      %s29 = int_to_ptr.vmem [resolvable:$true] %s28
      %34 = dma.hbm_to_vmem [thread:$0]  %s27, 512, %s29, [#allocation3], 64, 64, 4
    $region13: #{tpu_custom_call.1} parent=1 // pred_fallthru
      _
    // Predicated region
    $region14: #{tpu_custom_call.1} parent=1 // pred_check
      _
    $region15: #{tpu_custom_call.1} parent=1 // pred_check_branch
      %36 = sbr.rel (0) target = $region17
    $region16: #{tpu_custom_call.1} parent=1 // pred_region
      %38 = vsyncadd [#allocation5], 0
      %s40 = sshll.u32 %s3, 4
      %s41 = int_to_ptr.hbm [resolvable:$true] %s40
      %s42 = sshll.u32 [#allocation4], 4
      %s43 = int_to_ptr.vmem [resolvable:$true] %s42
      %45 = dma.hbm_to_vmem [thread:$0]  %s41, 16, %s43, [#allocation5]
    $region17: #{tpu_custom_call.1} parent=1 // pred_fallthru
      _
    // Predicated region
    $region18: #{tpu_custom_call.1} parent=1 // pred_check
      _
    $region19: #{tpu_custom_call.1} parent=1 // pred_check_branch
      %47 = sbr.rel (0) target = $region21
    $region20: #{tpu_custom_call.1} parent=1 // pred_region
      %49 = vsyncadd [#allocation5], 0
      %s50 = sshll.u32 %s4, 4
      %s51 = int_to_ptr.hbm [resolvable:$true] %s50
      %s52 = sshll.u32 [#allocation6], 4
      %s53 = int_to_ptr.vmem [resolvable:$true] %s52
      %58 = dma.hbm_to_vmem [thread:$0]  %s51, 256, %s53, [#allocation5], 64, 64, 4
    $region21: #{tpu_custom_call.1} parent=1 // pred_fallthru
      _
    // Predicated region
    $region22: #{tpu_custom_call.1} parent=1 // pred_check
      _
    $region23: #{tpu_custom_call.1} parent=1 // pred_check_branch
      %60 = sbr.rel (0) target = $region25
    $region24: #{tpu_custom_call.1} parent=1 // pred_region
      %62 = vsyncadd [#allocation8], 0
      %s64 = sshll.u32 %s5, 4
      %s65 = int_to_ptr.hbm [resolvable:$true] %s64
      %s66 = sshll.u32 [#allocation7], 4
      %s67 = int_to_ptr.vmem [resolvable:$true] %s66
      %69 = dma.hbm_to_vmem [thread:$0]  %s65, 16, %s67, [#allocation8]
    $region25: #{tpu_custom_call.1} parent=1 // pred_fallthru
      _
    // Predicated region
    $region26: #{tpu_custom_call.1} parent=1 // pred_check
      _
    $region27: #{tpu_custom_call.1} parent=1 // pred_check_branch
      %71 = sbr.rel (0) target = $region29
    $region28: #{tpu_custom_call.1} parent=1 // pred_region
      %73 = vsyncadd [#allocation8], 0
      %s74 = sshll.u32 %s6, 4
      %s75 = int_to_ptr.hbm [resolvable:$true] %s74
      %s76 = sshll.u32 [#allocation9], 4
      %s77 = int_to_ptr.vmem [resolvable:$true] %s76
      %82 = dma.hbm_to_vmem [thread:$0]  %s75, 1024, %s77, [#allocation8], 128, 128, 8
    $region29: #{tpu_custom_call.1} parent=1 // pred_fallthru
      _
    // Predicated region
    $region30: #{tpu_custom_call.1} parent=1 // pred_check
      _
    $region31: #{tpu_custom_call.1} parent=1 // pred_check_branch
      %84 = sbr.rel (0) target = $region33
    $region32: #{tpu_custom_call.1} parent=1 // pred_region
      _
    $region33: #{tpu_custom_call.1} parent=1 // pred_fallthru
      _
    // Predicated region
    $region34: #{tpu_custom_call.1} parent=1 // pred_check
      _
    $region35: #{tpu_custom_call.1} parent=1 // pred_check_branch
      %86 = sbr.rel (0) target = $region37
    $region36: #{tpu_custom_call.1} parent=1 // pred_region
      _
    $region37: #{tpu_custom_call.1} parent=1 // pred_fallthru
      _
    // Predicated region
    $region38: #{tpu_custom_call.1} parent=1 // pred_check
      _
    $region39: #{tpu_custom_call.1} parent=1 // pred_check_branch
      %88 = sbr.rel (0) target = $region41
    $region40: #{tpu_custom_call.1} parent=1 // pred_region
      _
    $region41: #{tpu_custom_call.1} parent=1 // pred_fallthru
      _
    // Predicated region
    $region42: #{tpu_custom_call.1} parent=1 // pred_check
      _
    $region43: #{tpu_custom_call.1} parent=1 // pred_check_branch
      %90 = sbr.rel (0) target = $region45
    $region44: #{tpu_custom_call.1} parent=1 // pred_region
      %92 = dma.done [#allocation3], 512
    $region45: #{tpu_custom_call.1} parent=1 // pred_fallthru
      _
    // Predicated region
    $region46: #{tpu_custom_call.1} parent=1 // pred_check
      _
    $region47: #{tpu_custom_call.1} parent=1 // pred_check_branch
      %94 = sbr.rel (0) target = $region49
    $region48: #{tpu_custom_call.1} parent=1 // pred_region
      %96 = dma.done [#allocation5], 16
    $region49: #{tpu_custom_call.1} parent=1 // pred_fallthru
      _
    // Predicated region
    $region50: #{tpu_custom_call.1} parent=1 // pred_check
      _
    $region51: #{tpu_custom_call.1} parent=1 // pred_check_branch
      %98 = sbr.rel (0) target = $region53
    $region52: #{tpu_custom_call.1} parent=1 // pred_region
      %100 = dma.done [#allocation5], 256
    $region53: #{tpu_custom_call.1} parent=1 // pred_fallthru
      _
    // Predicated region
    $region54: #{tpu_custom_call.1} parent=1 // pred_check
      _
    $region55: #{tpu_custom_call.1} parent=1 // pred_check_branch
      %102 = sbr.rel (0) target = $region57
    $region56: #{tpu_custom_call.1} parent=1 // pred_region
      %104 = dma.done [#allocation8], 16
    $region57: #{tpu_custom_call.1} parent=1 // pred_fallthru
      _
    // Predicated region
    $region58: #{tpu_custom_call.1} parent=1 // pred_check
      _
    $region59: #{tpu_custom_call.1} parent=1 // pred_check_branch
      %106 = sbr.rel (0) target = $region61
    $region60: #{tpu_custom_call.1} parent=1 // pred_region
      %108 = dma.done [#allocation8], 1024
    $region61: #{tpu_custom_call.1} parent=1 // pred_fallthru
      _
    %v110 = vld [vmem:[%s0] sm:$0xff]
    %v111 = vld [vmem:[%s0 + $0x8] sm:$0xff]
    %v112 = vld [vmem:[%s0 + $0x10] sm:$0xff]
    %v113 = vld [vmem:[%s0 + $0x18] sm:$0xff]
    %v114 = vld [vmem:[%s0 + $0x20] sm:$0xff]
    %v115 = vld [vmem:[%s0 + $0x28] sm:$0xff]
    %v116 = vld [vmem:[%s0 + $0x30] sm:$0xff]
    %v117 = vld [vmem:[%s0 + $0x38] sm:$0xff]
    %v118 = vld [vmem:[%s0 + $0x40] sm:$0xff]
    %v119 = vld [vmem:[%s0 + $0x48] sm:$0xff]
    %v120 = vld [vmem:[%s0 + $0x50] sm:$0xff]
    %v121 = vld [vmem:[%s0 + $0x58] sm:$0xff]
    %v122 = vld [vmem:[%s0 + $0x60] sm:$0xff]
    %v123 = vld [vmem:[%s0 + $0x68] sm:$0xff]
    %v124 = vld [vmem:[%s0 + $0x70] sm:$0xff]
    %v125 = vld [vmem:[%s0 + $0x78] sm:$0xff]
    %v126 = vld [vmem:[%s0 + $0x80] sm:$0xff]
    %v127 = vld [vmem:[%s0 + $0x88] sm:$0xff]
    %v128 = vld [vmem:[%s0 + $0x90] sm:$0xff]
    %v129 = vld [vmem:[%s0 + $0x98] sm:$0xff]
    %v130 = vld [vmem:[%s0 + $0xa0] sm:$0xff]
    %v131 = vld [vmem:[%s0 + $0xa8] sm:$0xff]
    %v132 = vld [vmem:[%s0 + $0xb0] sm:$0xff]
    %v133 = vld [vmem:[%s0 + $0xb8] sm:$0xff]
    %v134 = vpack.c.bf16 %v111, %v110
    %v135 = vpack.c.bf16 %v113, %v112
    %v136 = vpack.c.bf16 %v115, %v114
    %v137 = vpack.c.bf16 %v117, %v116
    %v138 = vpack.c.bf16 %v119, %v118
    %v139 = vpack.c.bf16 %v121, %v120
    %v140 = vpack.c.bf16 %v123, %v122
    %v141 = vpack.c.bf16 %v125, %v124
    %v142 = vpack.c.bf16 %v127, %v126
    %v143 = vpack.c.bf16 %v129, %v128
    %v144 = vpack.c.bf16 %v131, %v130
    %v145 = vpack.c.bf16 %v133, %v132
    %v146 = vld [vmem:[#allocation2] sm:$0xf]
    %v147 = vld [vmem:[#allocation2 + $0x4] sm:$0xf]
    %v148 = vld [vmem:[#allocation2 + $0x8] sm:$0xf]
    %v149 = vld [vmem:[#allocation2 + $0xc] sm:$0xf]
    %v150 = vld [vmem:[#allocation2 + $0x10] sm:$0xf]
    %v151 = vld [vmem:[#allocation2 + $0x14] sm:$0xf]
    %v152 = vld [vmem:[#allocation2 + $0x18] sm:$0xf]
    %v153 = vld [vmem:[#allocation2 + $0x1c] sm:$0xf]
    %v154 = vld [vmem:[#allocation4] sm:$0x1]
    %v156 = vperm.slane %v154, 0
    %v166 = vunpack.c.l.b16 %v146
    %v167 = vunpack.c.l.b16 %v147
    %v168 = vunpack.c.l.b16 %v148
    %v169 = vunpack.c.l.b16 %v149
    %v170 = vunpack.c.l.b16 %v150
    %v171 = vunpack.c.l.b16 %v151
    %v172 = vunpack.c.l.b16 %v152
    %v173 = vunpack.c.l.b16 %v153
    %v174 = vpack.c.b16 %v167, %v166
    %v175 = vpack.c.b16 %v169, %v168
    %v176 = vpack.c.b16 %v171, %v170
    %v177 = vpack.c.b16 %v173, %v172
    %vm182 = vcmask 523264
    %v184 = vsel %vm182, %v134, 0
    %v187 = vsel %vm182, %v135, 0
    %v190 = vsel %vm182, %v136, 0
    %v193 = vsel %vm182, %v137, 0
    %v196 = vsel %vm182, %v138, 0
    %v199 = vsel %vm182, %v139, 0
    %v202 = vsel %vm182, %v140, 0
    %v205 = vsel %vm182, %v141, 0
    %v208 = vsel %vm182, %v142, 0
    %v211 = vsel %vm182, %v143, 0
    %v214 = vsel %vm182, %v144, 0
    %v217 = vsel %vm182, %v145, 0
    %219 = vmatpush.bf16.msra.mxu0 0
    %220 = vmatpush.bf16.msra.mxu0 0
    %221 = vmatpush.bf16.msra.mxu0 0
    %222 = vmatpush.bf16.msra.mxu0 0
    %223 = vmatpush.bf16.msra.mxu0 %v177
    %224 = vmatpush.bf16.msra.mxu0 %v176
    %225 = vmatpush.bf16.msra.mxu0 %v175
    %226 = vmatpush.bf16.msra.mxu0 %v174
    %227 = vmatmul.bf16.gmra.mxu0 %v184
    %v228 = vpop.f32.mrf.mxu0
    %v229 = vadd.f32 %v156, %v228
    %v230 = vpop.f32.mrf.mxu0
    %v231 = vadd.f32 %v156, %v230
    %232 = vmatmul.bf16.gmra.mxu0 %v187
    %v233 = vpop.f32.mrf.mxu0
    %v234 = vadd.f32 %v156, %v233
    %v235 = vpop.f32.mrf.mxu0
    %v236 = vadd.f32 %v156, %v235
    %237 = vmatmul.bf16.gmra.mxu0 %v190
    %v238 = vpop.f32.mrf.mxu0
    %v239 = vadd.f32 %v156, %v238
    %v240 = vpop.f32.mrf.mxu0
    %v241 = vadd.f32 %v156, %v240
    %242 = vmatmul.bf16.gmra.mxu0 %v193
    %v243 = vpop.f32.mrf.mxu0
    %v244 = vadd.f32 %v156, %v243
    %v245 = vpop.f32.mrf.mxu0
    %v246 = vadd.f32 %v156, %v245
    %247 = vmatmul.bf16.gmra.mxu0 %v196
    %v248 = vpop.f32.mrf.mxu0
    %v249 = vadd.f32 %v156, %v248
    %v250 = vpop.f32.mrf.mxu0
    %v251 = vadd.f32 %v156, %v250
    %252 = vmatmul.bf16.gmra.mxu0 %v199
    %v253 = vpop.f32.mrf.mxu0
    %v254 = vadd.f32 %v156, %v253
    %v255 = vpop.f32.mrf.mxu0
    %v256 = vadd.f32 %v156, %v255
    %257 = vmatmul.bf16.gmra.mxu0 %v202
    %v258 = vpop.f32.mrf.mxu0
    %v259 = vadd.f32 %v156, %v258
    %v260 = vpop.f32.mrf.mxu0
    %v261 = vadd.f32 %v156, %v260
    %262 = vmatmul.bf16.gmra.mxu0 %v205
    %v263 = vpop.f32.mrf.mxu0
    %v264 = vadd.f32 %v156, %v263
    %v265 = vpop.f32.mrf.mxu0
    %v266 = vadd.f32 %v156, %v265
    %267 = vmatmul.bf16.gmra.mxu0 %v208
    %v268 = vpop.f32.mrf.mxu0
    %v269 = vadd.f32 %v156, %v268
    %v270 = vpop.f32.mrf.mxu0
    %v271 = vadd.f32 %v156, %v270
    %272 = vmatmul.bf16.gmra.mxu0 %v211
    %v273 = vpop.f32.mrf.mxu0
    %v274 = vadd.f32 %v156, %v273
    %v275 = vpop.f32.mrf.mxu0
    %v276 = vadd.f32 %v156, %v275
    %277 = vmatmul.bf16.gmra.mxu0 %v214
    %v278 = vpop.f32.mrf.mxu0
    %v279 = vadd.f32 %v156, %v278
    %v280 = vpop.f32.mrf.mxu0
    %v281 = vadd.f32 %v156, %v280
    %282 = vmatmul.bf16.gmra.mxu0 %v217
    %v283 = vpop.f32.mrf.mxu0
    %v284 = vadd.f32 %v156, %v283
    %v285 = vpop.f32.mrf.mxu0
    %v286 = vadd.f32 %v156, %v285
    %287 = vdwg.mxu0
    %v288 = vpack.c.bf16 %v231, %v229
    %v289 = vpack.c.bf16 %v236, %v234
    %v290 = vpack.c.bf16 %v241, %v239
    %v291 = vpack.c.bf16 %v246, %v244
    %v292 = vpack.c.bf16 %v251, %v249
    %v293 = vpack.c.bf16 %v256, %v254
    %v294 = vpack.c.bf16 %v261, %v259
    %v295 = vpack.c.bf16 %v266, %v264
    %v296 = vpack.c.bf16 %v271, %v269
    %v297 = vpack.c.bf16 %v276, %v274
    %v298 = vpack.c.bf16 %v281, %v279
    %v299 = vpack.c.bf16 %v286, %v284
    %v300 = vld [vmem:[%s1] sm:$0xff]
    %v301 = vld [vmem:[%s1 + $0x8] sm:$0xff]
    %v302 = vld [vmem:[%s1 + $0x10] sm:$0xff]
    %v303 = vld [vmem:[%s1 + $0x18] sm:$0xff]
    %v304 = vld [vmem:[%s1 + $0x20] sm:$0xff]
    %v305 = vld [vmem:[%s1 + $0x28] sm:$0xff]
    %v306 = vld [vmem:[%s1 + $0x30] sm:$0xff]
    %v307 = vld [vmem:[%s1 + $0x38] sm:$0xff]
    %v308 = vld [vmem:[%s1 + $0x40] sm:$0xff]
    %v309 = vld [vmem:[%s1 + $0x48] sm:$0xff]
    %v310 = vld [vmem:[%s1 + $0x50] sm:$0xff]
    %v311 = vld [vmem:[%s1 + $0x58] sm:$0xff]
    %v312 = vld [vmem:[%s1 + $0x60] sm:$0xff]
    %v313 = vld [vmem:[%s1 + $0x68] sm:$0xff]
    %v314 = vld [vmem:[%s1 + $0x70] sm:$0xff]
    %v315 = vld [vmem:[%s1 + $0x78] sm:$0xff]
    %v316 = vld [vmem:[%s1 + $0x80] sm:$0xff]
    %v317 = vld [vmem:[%s1 + $0x88] sm:$0xff]
    %v318 = vld [vmem:[%s1 + $0x90] sm:$0xff]
    %v319 = vld [vmem:[%s1 + $0x98] sm:$0xff]
    %v320 = vld [vmem:[%s1 + $0xa0] sm:$0xff]
    %v321 = vld [vmem:[%s1 + $0xa8] sm:$0xff]
    %v322 = vld [vmem:[%s1 + $0xb0] sm:$0xff]
    %v323 = vld [vmem:[%s1 + $0xb8] sm:$0xff]
    %v324 = vld [vmem:[%s1 + $0xc0] sm:$0xff]
    %v325 = vld [vmem:[%s1 + $0xc8] sm:$0xff]
    %v326 = vld [vmem:[%s1 + $0xd0] sm:$0xff]
    %v327 = vld [vmem:[%s1 + $0xd8] sm:$0xff]
    %v328 = vld [vmem:[%s1 + $0xe0] sm:$0xff]
    %v329 = vld [vmem:[%s1 + $0xe8] sm:$0xff]
    %v330 = vld [vmem:[%s1 + $0xf0] sm:$0xff]
    %v331 = vld [vmem:[%s1 + $0xf8] sm:$0xff]
    %v332 = vld [vmem:[%s1 + $0x100] sm:$0xff]
    %v333 = vld [vmem:[%s1 + $0x108] sm:$0xff]
    %v334 = vld [vmem:[%s1 + $0x110] sm:$0xff]
    %v335 = vld [vmem:[%s1 + $0x118] sm:$0xff]
    %v336 = vld [vmem:[%s1 + $0x120] sm:$0xff]
    %v337 = vld [vmem:[%s1 + $0x128] sm:$0xff]
    %v338 = vld [vmem:[%s1 + $0x130] sm:$0xff]
    %v339 = vld [vmem:[%s1 + $0x138] sm:$0xff]
    %v340 = vld [vmem:[%s1 + $0x140] sm:$0xff]
    %v341 = vld [vmem:[%s1 + $0x148] sm:$0xff]
    %v342 = vld [vmem:[%s1 + $0x150] sm:$0xff]
    %v343 = vld [vmem:[%s1 + $0x158] sm:$0xff]
    %v344 = vld [vmem:[%s1 + $0x160] sm:$0xff]
    %v345 = vld [vmem:[%s1 + $0x168] sm:$0xff]
    %v346 = vld [vmem:[%s1 + $0x170] sm:$0xff]
    %v347 = vld [vmem:[%s1 + $0x178] sm:$0xff]
    %360 = vrot.lane.b32.xlu0 %v288, 96
    %v361 = vpop.permute.xlu0 %360
    %362 = vrot.lane.b32.xlu0 %v289, 96
    %v363 = vpop.permute.xlu0 %362
    %364 = vrot.lane.b32.xlu0 %v290, 96
    %v365 = vpop.permute.xlu0 %364
    %366 = vrot.lane.b32.xlu0 %v291, 96
    %v367 = vpop.permute.xlu0 %366
    %368 = vrot.lane.b32.xlu0 %v292, 96
    %v369 = vpop.permute.xlu0 %368
    %370 = vrot.lane.b32.xlu0 %v293, 96
    %v371 = vpop.permute.xlu0 %370
    %372 = vrot.lane.b32.xlu0 %v294, 96
    %v373 = vpop.permute.xlu0 %372
    %374 = vrot.lane.b32.xlu0 %v295, 96
    %v375 = vpop.permute.xlu0 %374
    %376 = vrot.lane.b32.xlu0 %v296, 96
    %v377 = vpop.permute.xlu0 %376
    %378 = vrot.lane.b32.xlu0 %v297, 96
    %v379 = vpop.permute.xlu0 %378
    %380 = vrot.lane.b32.xlu0 %v298, 96
    %v381 = vpop.permute.xlu0 %380
    %382 = vrot.lane.b32.xlu0 %v299, 96
    %v383 = vpop.permute.xlu0 %382
    %vm384 = vcmask 261120
    %v386 = vsel %vm384, %v288, 0
    %v389 = vsel %vm384, %v289, 0
    %v392 = vsel %vm384, %v290, 0
    %v395 = vsel %vm384, %v291, 0
    %v398 = vsel %vm384, %v292, 0
    %v401 = vsel %vm384, %v293, 0
    %v404 = vsel %vm384, %v294, 0
    %v407 = vsel %vm384, %v295, 0
    %v410 = vsel %vm384, %v296, 0
    %v413 = vsel %vm384, %v297, 0
    %v416 = vsel %vm384, %v298, 0
    %v419 = vsel %vm384, %v299, 0
    %v422 = vsel %vm384, %v361, 0
    %v425 = vsel %vm384, %v363, 0
    %v428 = vsel %vm384, %v365, 0
    %v431 = vsel %vm384, %v367, 0
    %v434 = vsel %vm384, %v369, 0
    %v437 = vsel %vm384, %v371, 0
    %v440 = vsel %vm384, %v373, 0
    %v443 = vsel %vm384, %v375, 0
    %v446 = vsel %vm384, %v377, 0
    %v449 = vsel %vm384, %v379, 0
    %v452 = vsel %vm384, %v381, 0
    %v455 = vsel %vm384, %v383, 0
    %457 = vmatpush.bf16.xpose.msra.mxu0 %v443
    %458 = vmatpush.bf16.xpose.msra.mxu0 %v440
    %459 = vmatpush.bf16.xpose.msra.mxu0 %v437
    %460 = vmatpush.bf16.xpose.msra.mxu0 %v434
    %461 = vmatpush.bf16.xpose.msra.mxu0 %v431
    %462 = vmatpush.bf16.xpose.msra.mxu0 %v428
    %463 = vmatpush.bf16.xpose.msra.mxu0 %v425
    %464 = vmatpush.bf16.xpose.msra.mxu0 %v422
    %465 = vmatmul.bf16.gmra.mxu0 %v386
    %v466 = vpop.f32.mrf.mxu0
    %v467 = vadd.f32 %v300, %v466
    %v468 = vpop.f32.mrf.mxu0
    %v469 = vadd.f32 %v302, %v468
    %470 = vmatmul.bf16.gmra.mxu0 %v389
    %v471 = vpop.f32.mrf.mxu0
    %v472 = vadd.f32 %v304, %v471
    %v473 = vpop.f32.mrf.mxu0
    %v474 = vadd.f32 %v306, %v473
    %475 = vmatmul.bf16.gmra.mxu0 %v392
    %v476 = vpop.f32.mrf.mxu0
    %v477 = vadd.f32 %v308, %v476
    %v478 = vpop.f32.mrf.mxu0
    %v479 = vadd.f32 %v310, %v478
    %480 = vmatmul.bf16.gmra.mxu0 %v395
    %v481 = vpop.f32.mrf.mxu0
    %v482 = vadd.f32 %v312, %v481
    %v483 = vpop.f32.mrf.mxu0
    %v484 = vadd.f32 %v314, %v483
    %485 = vmatmul.bf16.gmra.mxu0 %v398
    %v486 = vpop.f32.mrf.mxu0
    %v487 = vadd.f32 %v316, %v486
    %v488 = vpop.f32.mrf.mxu0
    %v489 = vadd.f32 %v318, %v488
    %490 = vmatmul.bf16.gmra.mxu0 %v401
    %v491 = vpop.f32.mrf.mxu0
    %v492 = vadd.f32 %v320, %v491
    %v493 = vpop.f32.mrf.mxu0
    %v494 = vadd.f32 %v322, %v493
    %495 = vmatmul.bf16.gmra.mxu0 %v404
    %v496 = vpop.f32.mrf.mxu0
    %v497 = vadd.f32 %v324, %v496
    %v498 = vpop.f32.mrf.mxu0
    %v499 = vadd.f32 %v326, %v498
    %500 = vmatmul.bf16.gmra.mxu0 %v407
    %v501 = vpop.f32.mrf.mxu0
    %v502 = vadd.f32 %v328, %v501
    %v503 = vpop.f32.mrf.mxu0
    %v504 = vadd.f32 %v330, %v503
    %505 = vmatmul.bf16.gmra.mxu0 %v410
    %v506 = vpop.f32.mrf.mxu0
    %v507 = vadd.f32 %v332, %v506
    %v508 = vpop.f32.mrf.mxu0
    %v509 = vadd.f32 %v334, %v508
    %510 = vmatmul.bf16.gmra.mxu0 %v413
    %v511 = vpop.f32.mrf.mxu0
    %v512 = vadd.f32 %v336, %v511
    %v513 = vpop.f32.mrf.mxu0
    %v514 = vadd.f32 %v338, %v513
    %515 = vmatmul.bf16.gmra.mxu0 %v416
    %v516 = vpop.f32.mrf.mxu0
    %v517 = vadd.f32 %v340, %v516
    %v518 = vpop.f32.mrf.mxu0
    %v519 = vadd.f32 %v342, %v518
    %520 = vmatmul.bf16.gmra.mxu0 %v419
    %v521 = vpop.f32.mrf.mxu0
    %v522 = vadd.f32 %v344, %v521
    %v523 = vpop.f32.mrf.mxu0
    %v524 = vadd.f32 %v346, %v523
    %525 = vdwg.mxu0
    %526 = vmatpush.bf16.xpose.msra.mxu0 0
    %527 = vmatpush.bf16.xpose.msra.mxu0 0
    %528 = vmatpush.bf16.xpose.msra.mxu0 0
    %529 = vmatpush.bf16.xpose.msra.mxu0 0
    %530 = vmatpush.bf16.xpose.msra.mxu0 %v455
    %531 = vmatpush.bf16.xpose.msra.mxu0 %v452
    %532 = vmatpush.bf16.xpose.msra.mxu0 %v449
    %533 = vmatpush.bf16.xpose.msra.mxu0 %v446
    %534 = vmatmul.bf16.gmra.mxu0 %v386
    %v535 = vpop.f32.mrf.mxu0
    %v536 = vadd.f32 %v301, %v535
    %v537 = vpop.f32.mrf.mxu0
    %v538 = vadd.f32 %v303, %v537
    %539 = vmatmul.bf16.gmra.mxu0 %v389
    %v540 = vpop.f32.mrf.mxu0
    %v541 = vadd.f32 %v305, %v540
    %v542 = vpop.f32.mrf.mxu0
    %v543 = vadd.f32 %v307, %v542
    %544 = vmatmul.bf16.gmra.mxu0 %v392
    %v545 = vpop.f32.mrf.mxu0
    %v546 = vadd.f32 %v309, %v545
    %v547 = vpop.f32.mrf.mxu0
    %v548 = vadd.f32 %v311, %v547
    %549 = vmatmul.bf16.gmra.mxu0 %v395
    %v550 = vpop.f32.mrf.mxu0
    %v551 = vadd.f32 %v313, %v550
    %v552 = vpop.f32.mrf.mxu0
    %v553 = vadd.f32 %v315, %v552
    %554 = vmatmul.bf16.gmra.mxu0 %v398
    %v555 = vpop.f32.mrf.mxu0
    %v556 = vadd.f32 %v317, %v555
    %v557 = vpop.f32.mrf.mxu0
    %v558 = vadd.f32 %v319, %v557
    %559 = vmatmul.bf16.gmra.mxu0 %v401
    %v560 = vpop.f32.mrf.mxu0
    %v561 = vadd.f32 %v321, %v560
    %v562 = vpop.f32.mrf.mxu0
    %v563 = vadd.f32 %v323, %v562
    %564 = vmatmul.bf16.gmra.mxu0 %v404
    %v565 = vpop.f32.mrf.mxu0
    %v566 = vadd.f32 %v325, %v565
    %v567 = vpop.f32.mrf.mxu0
    %v568 = vadd.f32 %v327, %v567
    %569 = vmatmul.bf16.gmra.mxu0 %v407
    %v570 = vpop.f32.mrf.mxu0
    %v571 = vadd.f32 %v329, %v570
    %v572 = vpop.f32.mrf.mxu0
    %v573 = vadd.f32 %v331, %v572
    %574 = vmatmul.bf16.gmra.mxu0 %v410
    %v575 = vpop.f32.mrf.mxu0
    %v576 = vadd.f32 %v333, %v575
    %v577 = vpop.f32.mrf.mxu0
    %v578 = vadd.f32 %v335, %v577
    %579 = vmatmul.bf16.gmra.mxu0 %v413
    %v580 = vpop.f32.mrf.mxu0
    %v581 = vadd.f32 %v337, %v580
    %v582 = vpop.f32.mrf.mxu0
    %v583 = vadd.f32 %v339, %v582
    %584 = vmatmul.bf16.gmra.mxu0 %v416
    %v585 = vpop.f32.mrf.mxu0
    %v586 = vadd.f32 %v341, %v585
    %v587 = vpop.f32.mrf.mxu0
    %v588 = vadd.f32 %v343, %v587
    %589 = vmatmul.bf16.gmra.mxu0 %v419
    %v590 = vpop.f32.mrf.mxu0
    %v591 = vadd.f32 %v345, %v590
    %v592 = vpop.f32.mrf.mxu0
    %v593 = vadd.f32 %v347, %v592
    %594 = vdwg.mxu0
    %v595 = vsel %vm182, %v536, -inf
    %v596 = vmax.f32 %v467, %v595
    %597 = vmax.xlane.f32.xlu0 %v596
    %v598 = vpop.xlane.xlu0 %597
    %v599 = vsel %vm182, %v538, -inf
    %v600 = vmax.f32 %v469, %v599
    %601 = vmax.xlane.f32.xlu0 %v600
    %v602 = vpop.xlane.xlu0 %601
    %v603 = vsel %vm182, %v541, -inf
    %v604 = vmax.f32 %v472, %v603
    %605 = vmax.xlane.f32.xlu0 %v604
    %v606 = vpop.xlane.xlu0 %605
    %v607 = vsel %vm182, %v543, -inf
    %v608 = vmax.f32 %v474, %v607
    %609 = vmax.xlane.f32.xlu0 %v608
    %v610 = vpop.xlane.xlu0 %609
    %v611 = vsel %vm182, %v546, -inf
    %v612 = vmax.f32 %v477, %v611
    %613 = vmax.xlane.f32.xlu0 %v612
    %v614 = vpop.xlane.xlu0 %613
    %v615 = vsel %vm182, %v548, -inf
    %v616 = vmax.f32 %v479, %v615
    %617 = vmax.xlane.f32.xlu0 %v616
    %v618 = vpop.xlane.xlu0 %617
    %v619 = vsel %vm182, %v551, -inf
    %v620 = vmax.f32 %v482, %v619
    %621 = vmax.xlane.f32.xlu0 %v620
    %v622 = vpop.xlane.xlu0 %621
    %v623 = vsel %vm182, %v553, -inf
    %v624 = vmax.f32 %v484, %v623
    %625 = vmax.xlane.f32.xlu0 %v624
    %v626 = vpop.xlane.xlu0 %625
    %v627 = vsel %vm182, %v556, -inf
    %v628 = vmax.f32 %v487, %v627
    %629 = vmax.xlane.f32.xlu0 %v628
    %v630 = vpop.xlane.xlu0 %629
    %v631 = vsel %vm182, %v558, -inf
    %v632 = vmax.f32 %v489, %v631
    %633 = vmax.xlane.f32.xlu0 %v632
    %v634 = vpop.xlane.xlu0 %633
    %v635 = vsel %vm182, %v561, -inf
    %v636 = vmax.f32 %v492, %v635
    %637 = vmax.xlane.f32.xlu0 %v636
    %v638 = vpop.xlane.xlu0 %637
    %v639 = vsel %vm182, %v563, -inf
    %v640 = vmax.f32 %v494, %v639
    %641 = vmax.xlane.f32.xlu0 %v640
    %v642 = vpop.xlane.xlu0 %641
    %v643 = vsel %vm182, %v566, -inf
    %v644 = vmax.f32 %v497, %v643
    %645 = vmax.xlane.f32.xlu0 %v644
    %v646 = vpop.xlane.xlu0 %645
    %v647 = vsel %vm182, %v568, -inf
    %v648 = vmax.f32 %v499, %v647
    %649 = vmax.xlane.f32.xlu0 %v648
    %v650 = vpop.xlane.xlu0 %649
    %v651 = vsel %vm182, %v571, -inf
    %v652 = vmax.f32 %v502, %v651
    %653 = vmax.xlane.f32.xlu0 %v652
    %v654 = vpop.xlane.xlu0 %653
    %v655 = vsel %vm182, %v573, -inf
    %v656 = vmax.f32 %v504, %v655
    %657 = vmax.xlane.f32.xlu0 %v656
    %v658 = vpop.xlane.xlu0 %657
    %v659 = vsel %vm182, %v576, -inf
    %v660 = vmax.f32 %v507, %v659
    %661 = vmax.xlane.f32.xlu0 %v660
    %v662 = vpop.xlane.xlu0 %661
    %v663 = vsel %vm182, %v578, -inf
    %v664 = vmax.f32 %v509, %v663
    %665 = vmax.xlane.f32.xlu0 %v664
    %v666 = vpop.xlane.xlu0 %665
    %v667 = vsel %vm182, %v581, -inf
    %v668 = vmax.f32 %v512, %v667
    %669 = vmax.xlane.f32.xlu0 %v668
    %v670 = vpop.xlane.xlu0 %669
    %v671 = vsel %vm182, %v583, -inf
    %v672 = vmax.f32 %v514, %v671
    %673 = vmax.xlane.f32.xlu0 %v672
    %v674 = vpop.xlane.xlu0 %673
    %v675 = vsel %vm182, %v586, -inf
    %v676 = vmax.f32 %v517, %v675
    %677 = vmax.xlane.f32.xlu0 %v676
    %v678 = vpop.xlane.xlu0 %677
    %v679 = vsel %vm182, %v588, -inf
    %v680 = vmax.f32 %v519, %v679
    %681 = vmax.xlane.f32.xlu0 %v680
    %v682 = vpop.xlane.xlu0 %681
    %v683 = vsel %vm182, %v591, -inf
    %v684 = vmax.f32 %v522, %v683
    %685 = vmax.xlane.f32.xlu0 %v684
    %v686 = vpop.xlane.xlu0 %685
    %v687 = vsel %vm182, %v593, -inf
    %v688 = vmax.f32 %v524, %v687
    %689 = vmax.xlane.f32.xlu0 %v688
    %v690 = vpop.xlane.xlu0 %689
    %v691 = vsub.f32 %v467, %v598
    %v692 = vsub.f32 %v536, %v598
    %v693 = vsub.f32 %v469, %v602
    %v694 = vsub.f32 %v538, %v602
    %v695 = vsub.f32 %v472, %v606
    %v696 = vsub.f32 %v541, %v606
    %v697 = vsub.f32 %v474, %v610
    %v698 = vsub.f32 %v543, %v610
    %v699 = vsub.f32 %v477, %v614
    %v700 = vsub.f32 %v546, %v614
    %v701 = vsub.f32 %v479, %v618
    %v702 = vsub.f32 %v548, %v618
    %v703 = vsub.f32 %v482, %v622
    %v704 = vsub.f32 %v551, %v622
    %v705 = vsub.f32 %v484, %v626
    %v706 = vsub.f32 %v553, %v626
    %v707 = vsub.f32 %v487, %v630
    %v708 = vsub.f32 %v556, %v630
    %v709 = vsub.f32 %v489, %v634
    %v710 = vsub.f32 %v558, %v634
    %v711 = vsub.f32 %v492, %v638
    %v712 = vsub.f32 %v561, %v638
    %v713 = vsub.f32 %v494, %v642
    %v714 = vsub.f32 %v563, %v642
    %v715 = vsub.f32 %v497, %v646
    %v716 = vsub.f32 %v566, %v646
    %v717 = vsub.f32 %v499, %v650
    %v718 = vsub.f32 %v568, %v650
    %v719 = vsub.f32 %v502, %v654
    %v720 = vsub.f32 %v571, %v654
    %v721 = vsub.f32 %v504, %v658
    %v722 = vsub.f32 %v573, %v658
    %v723 = vsub.f32 %v507, %v662
    %v724 = vsub.f32 %v576, %v662
    %v725 = vsub.f32 %v509, %v666
    %v726 = vsub.f32 %v578, %v666
    %v727 = vsub.f32 %v512, %v670
    %v728 = vsub.f32 %v581, %v670
    %v729 = vsub.f32 %v514, %v674
    %v730 = vsub.f32 %v583, %v674
    %v731 = vsub.f32 %v517, %v678
    %v732 = vsub.f32 %v586, %v678
    %v733 = vsub.f32 %v519, %v682
    %v734 = vsub.f32 %v588, %v682
    %v735 = vsub.f32 %v522, %v686
    %v736 = vsub.f32 %v591, %v686
    %v737 = vsub.f32 %v524, %v690
    %v738 = vsub.f32 %v593, %v690
    %v739 = vmul.f32 %v691, 1.442695
    %v740 = vpow.pop %v739
    %v741 = vmul.f32 %v692, 1.442695
    %v742 = vpow.pop %v741
    %v743 = vmul.f32 %v693, 1.442695
    %v744 = vpow.pop %v743
    %v745 = vmul.f32 %v694, 1.442695
    %v746 = vpow.pop %v745
    %v747 = vmul.f32 %v695, 1.442695
    %v748 = vpow.pop %v747
    %v749 = vmul.f32 %v696, 1.442695
    %v750 = vpow.pop %v749
    %v751 = vmul.f32 %v697, 1.442695
    %v752 = vpow.pop %v751
    %v753 = vmul.f32 %v698, 1.442695
    %v754 = vpow.pop %v753
    %v755 = vmul.f32 %v699, 1.442695
    %v756 = vpow.pop %v755
    %v757 = vmul.f32 %v700, 1.442695
    %v758 = vpow.pop %v757
    %v759 = vmul.f32 %v701, 1.442695
    %v760 = vpow.pop %v759
    %v761 = vmul.f32 %v702, 1.442695
    %v762 = vpow.pop %v761
    %v763 = vmul.f32 %v703, 1.442695
    %v764 = vpow.pop %v763
    %v765 = vmul.f32 %v704, 1.442695
    %v766 = vpow.pop %v765
    %v767 = vmul.f32 %v705, 1.442695
    %v768 = vpow.pop %v767
    %v769 = vmul.f32 %v706, 1.442695
    %v770 = vpow.pop %v769
    %v771 = vmul.f32 %v707, 1.442695
    %v772 = vpow.pop %v771
    %v773 = vmul.f32 %v708, 1.442695
    %v774 = vpow.pop %v773
    %v775 = vmul.f32 %v709, 1.442695
    %v776 = vpow.pop %v775
    %v777 = vmul.f32 %v710, 1.442695
    %v778 = vpow.pop %v777
    %v779 = vmul.f32 %v711, 1.442695
    %v780 = vpow.pop %v779
    %v781 = vmul.f32 %v712, 1.442695
    %v782 = vpow.pop %v781
    %v783 = vmul.f32 %v713, 1.442695
    %v784 = vpow.pop %v783
    %v785 = vmul.f32 %v714, 1.442695
    %v786 = vpow.pop %v785
    %v787 = vmul.f32 %v715, 1.442695
    %v788 = vpow.pop %v787
    %v789 = vmul.f32 %v716, 1.442695
    %v790 = vpow.pop %v789
    %v791 = vmul.f32 %v717, 1.442695
    %v792 = vpow.pop %v791
    %v793 = vmul.f32 %v718, 1.442695
    %v794 = vpow.pop %v793
    %v795 = vmul.f32 %v719, 1.442695
    %v796 = vpow.pop %v795
    %v797 = vmul.f32 %v720, 1.442695
    %v798 = vpow.pop %v797
    %v799 = vmul.f32 %v721, 1.442695
    %v800 = vpow.pop %v799
    %v801 = vmul.f32 %v722, 1.442695
    %v802 = vpow.pop %v801
    %v803 = vmul.f32 %v723, 1.442695
    %v804 = vpow.pop %v803
    %v805 = vmul.f32 %v724, 1.442695
    %v806 = vpow.pop %v805
    %v807 = vmul.f32 %v725, 1.442695
    %v808 = vpow.pop %v807
    %v809 = vmul.f32 %v726, 1.442695
    %v810 = vpow.pop %v809
    %v811 = vmul.f32 %v727, 1.442695
    %v812 = vpow.pop %v811
    %v813 = vmul.f32 %v728, 1.442695
    %v814 = vpow.pop %v813
    %v815 = vmul.f32 %v729, 1.442695
    %v816 = vpow.pop %v815
    %v817 = vmul.f32 %v730, 1.442695
    %v818 = vpow.pop %v817
    %v819 = vmul.f32 %v731, 1.442695
    %v820 = vpow.pop %v819
    %v821 = vmul.f32 %v732, 1.442695
    %v822 = vpow.pop %v821
    %v823 = vmul.f32 %v733, 1.442695
    %v824 = vpow.pop %v823
    %v825 = vmul.f32 %v734, 1.442695
    %v826 = vpow.pop %v825
    %v827 = vmul.f32 %v735, 1.442695
    %v828 = vpow.pop %v827
    %v829 = vmul.f32 %v736, 1.442695
    %v830 = vpow.pop %v829
    %v831 = vmul.f32 %v737, 1.442695
    %v832 = vpow.pop %v831
    %v833 = vmul.f32 %v738, 1.442695
    %v834 = vpow.pop %v833
    %v835 = vsel %vm182, %v742, 0.0
    %v836 = vadd.f32 %v740, %v835
    %837 = vadd.xlane.f32.xlu0 %v836
    %v838 = vpop.xlane.xlu0 %837
    %v839 = vsel %vm182, %v746, 0.0
    %v840 = vadd.f32 %v744, %v839
    %841 = vadd.xlane.f32.xlu0 %v840
    %v842 = vpop.xlane.xlu0 %841
    %v843 = vsel %vm182, %v750, 0.0
    %v844 = vadd.f32 %v748, %v843
    %845 = vadd.xlane.f32.xlu0 %v844
    %v846 = vpop.xlane.xlu0 %845
    %v847 = vsel %vm182, %v754, 0.0
    %v848 = vadd.f32 %v752, %v847
    %849 = vadd.xlane.f32.xlu0 %v848
    %v850 = vpop.xlane.xlu0 %849
    %v851 = vsel %vm182, %v758, 0.0
    %v852 = vadd.f32 %v756, %v851
    %853 = vadd.xlane.f32.xlu0 %v852
    %v854 = vpop.xlane.xlu0 %853
    %v855 = vsel %vm182, %v762, 0.0
    %v856 = vadd.f32 %v760, %v855
    %857 = vadd.xlane.f32.xlu0 %v856
    %v858 = vpop.xlane.xlu0 %857
    %v859 = vsel %vm182, %v766, 0.0
    %v860 = vadd.f32 %v764, %v859
    %861 = vadd.xlane.f32.xlu0 %v860
    %v862 = vpop.xlane.xlu0 %861
    %v863 = vsel %vm182, %v770, 0.0
    %v864 = vadd.f32 %v768, %v863
    %865 = vadd.xlane.f32.xlu0 %v864
    %v866 = vpop.xlane.xlu0 %865
    %v867 = vsel %vm182, %v774, 0.0
    %v868 = vadd.f32 %v772, %v867
    %869 = vadd.xlane.f32.xlu0 %v868
    %v870 = vpop.xlane.xlu0 %869
    %v871 = vsel %vm182, %v778, 0.0
    %v872 = vadd.f32 %v776, %v871
    %873 = vadd.xlane.f32.xlu0 %v872
    %v874 = vpop.xlane.xlu0 %873
    %v875 = vsel %vm182, %v782, 0.0
    %v876 = vadd.f32 %v780, %v875
    %877 = vadd.xlane.f32.xlu0 %v876
    %v878 = vpop.xlane.xlu0 %877
    %v879 = vsel %vm182, %v786, 0.0
    %v880 = vadd.f32 %v784, %v879
    %881 = vadd.xlane.f32.xlu0 %v880
    %v882 = vpop.xlane.xlu0 %881
    %v883 = vsel %vm182, %v790, 0.0
    %v884 = vadd.f32 %v788, %v883
    %885 = vadd.xlane.f32.xlu0 %v884
    %v886 = vpop.xlane.xlu0 %885
    %v887 = vsel %vm182, %v794, 0.0
    %v888 = vadd.f32 %v792, %v887
    %889 = vadd.xlane.f32.xlu0 %v888
    %v890 = vpop.xlane.xlu0 %889
    %v891 = vsel %vm182, %v798, 0.0
    %v892 = vadd.f32 %v796, %v891
    %893 = vadd.xlane.f32.xlu0 %v892
    %v894 = vpop.xlane.xlu0 %893
    %v895 = vsel %vm182, %v802, 0.0
    %v896 = vadd.f32 %v800, %v895
    %897 = vadd.xlane.f32.xlu0 %v896
    %v898 = vpop.xlane.xlu0 %897
    %v899 = vsel %vm182, %v806, 0.0
    %v900 = vadd.f32 %v804, %v899
    %901 = vadd.xlane.f32.xlu0 %v900
    %v902 = vpop.xlane.xlu0 %901
    %v903 = vsel %vm182, %v810, 0.0
    %v904 = vadd.f32 %v808, %v903
    %905 = vadd.xlane.f32.xlu0 %v904
    %v906 = vpop.xlane.xlu0 %905
    %v907 = vsel %vm182, %v814, 0.0
    %v908 = vadd.f32 %v812, %v907
    %909 = vadd.xlane.f32.xlu0 %v908
    %v910 = vpop.xlane.xlu0 %909
    %v911 = vsel %vm182, %v818, 0.0
    %v912 = vadd.f32 %v816, %v911
    %913 = vadd.xlane.f32.xlu0 %v912
    %v914 = vpop.xlane.xlu0 %913
    %v915 = vsel %vm182, %v822, 0.0
    %v916 = vadd.f32 %v820, %v915
    %917 = vadd.xlane.f32.xlu0 %v916
    %v918 = vpop.xlane.xlu0 %917
    %v919 = vsel %vm182, %v826, 0.0
    %v920 = vadd.f32 %v824, %v919
    %921 = vadd.xlane.f32.xlu0 %v920
    %v922 = vpop.xlane.xlu0 %921
    %v923 = vsel %vm182, %v830, 0.0
    %v924 = vadd.f32 %v828, %v923
    %925 = vadd.xlane.f32.xlu0 %v924
    %v926 = vpop.xlane.xlu0 %925
    %v927 = vsel %vm182, %v834, 0.0
    %v928 = vadd.f32 %v832, %v927
    %929 = vadd.xlane.f32.xlu0 %v928
    %v930 = vpop.xlane.xlu0 %929
    %v931 = vrcp.pop %v838
    %v932 = vrcp.pop %v842
    %v933 = vrcp.pop %v846
    %v934 = vrcp.pop %v850
    %v935 = vrcp.pop %v854
    %v936 = vrcp.pop %v858
    %v937 = vrcp.pop %v862
    %v938 = vrcp.pop %v866
    %v939 = vrcp.pop %v870
    %v940 = vrcp.pop %v874
    %v941 = vrcp.pop %v878
    %v942 = vrcp.pop %v882
    %v943 = vrcp.pop %v886
    %v944 = vrcp.pop %v890
    %v945 = vrcp.pop %v894
    %v946 = vrcp.pop %v898
    %v947 = vrcp.pop %v902
    %v948 = vrcp.pop %v906
    %v949 = vrcp.pop %v910
    %v950 = vrcp.pop %v914
    %v951 = vrcp.pop %v918
    %v952 = vrcp.pop %v922
    %v953 = vrcp.pop %v926
    %v954 = vrcp.pop %v930
    %v955 = vmul.f32 %v740, %v931
    %v956 = vmul.f32 %v742, %v931
    %v957 = vmul.f32 %v744, %v932
    %v958 = vmul.f32 %v746, %v932
    %v959 = vmul.f32 %v748, %v933
    %v960 = vmul.f32 %v750, %v933
    %v961 = vmul.f32 %v752, %v934
    %v962 = vmul.f32 %v754, %v934
    %v963 = vmul.f32 %v756, %v935
    %v964 = vmul.f32 %v758, %v935
    %v965 = vmul.f32 %v760, %v936
    %v966 = vmul.f32 %v762, %v936
    %v967 = vmul.f32 %v764, %v937
    %v968 = vmul.f32 %v766, %v937
    %v969 = vmul.f32 %v768, %v938
    %v970 = vmul.f32 %v770, %v938
    %v971 = vmul.f32 %v772, %v939
    %v972 = vmul.f32 %v774, %v939
    %v973 = vmul.f32 %v776, %v940
    %v974 = vmul.f32 %v778, %v940
    %v975 = vmul.f32 %v780, %v941
    %v976 = vmul.f32 %v782, %v941
    %v977 = vmul.f32 %v784, %v942
    %v978 = vmul.f32 %v786, %v942
    %v979 = vmul.f32 %v788, %v943
    %v980 = vmul.f32 %v790, %v943
    %v981 = vmul.f32 %v792, %v944
    %v982 = vmul.f32 %v794, %v944
    %v983 = vmul.f32 %v796, %v945
    %v984 = vmul.f32 %v798, %v945
    %v985 = vmul.f32 %v800, %v946
    %v986 = vmul.f32 %v802, %v946
    %v987 = vmul.f32 %v804, %v947
    %v988 = vmul.f32 %v806, %v947
    %v989 = vmul.f32 %v808, %v948
    %v990 = vmul.f32 %v810, %v948
    %v991 = vmul.f32 %v812, %v949
    %v992 = vmul.f32 %v814, %v949
    %v993 = vmul.f32 %v816, %v950
    %v994 = vmul.f32 %v818, %v950
    %v995 = vmul.f32 %v820, %v951
    %v996 = vmul.f32 %v822, %v951
    %v997 = vmul.f32 %v824, %v952
    %v998 = vmul.f32 %v826, %v952
    %v999 = vmul.f32 %v828, %v953
    %v1000 = vmul.f32 %v830, %v953
    %v1001 = vmul.f32 %v832, %v954
    %v1002 = vmul.f32 %v834, %v954
    %v1003 = vpack.c.bf16 %v957, %v955
    %v1004 = vpack.c.bf16 %v958, %v956
    %v1005 = vpack.c.bf16 %v961, %v959
    %v1006 = vpack.c.bf16 %v962, %v960
    %v1007 = vpack.c.bf16 %v965, %v963
    %v1008 = vpack.c.bf16 %v966, %v964
    %v1009 = vpack.c.bf16 %v969, %v967
    %v1010 = vpack.c.bf16 %v970, %v968
    %v1011 = vpack.c.bf16 %v973, %v971
    %v1012 = vpack.c.bf16 %v974, %v972
    %v1013 = vpack.c.bf16 %v977, %v975
    %v1014 = vpack.c.bf16 %v978, %v976
    %v1015 = vpack.c.bf16 %v981, %v979
    %v1016 = vpack.c.bf16 %v982, %v980
    %v1017 = vpack.c.bf16 %v985, %v983
    %v1018 = vpack.c.bf16 %v986, %v984
    %v1019 = vpack.c.bf16 %v989, %v987
    %v1020 = vpack.c.bf16 %v990, %v988
    %v1021 = vpack.c.bf16 %v993, %v991
    %v1022 = vpack.c.bf16 %v994, %v992
    %v1023 = vpack.c.bf16 %v997, %v995
    %v1024 = vpack.c.bf16 %v998, %v996
    %v1025 = vpack.c.bf16 %v1001, %v999
    %v1026 = vpack.c.bf16 %v1002, %v1000
    %1027 = vrot.lane.b32.xlu0 %v288, 64
    %v1028 = vpop.permute.xlu0 %1027
    %1029 = vrot.lane.b32.xlu0 %v289, 64
    %v1030 = vpop.permute.xlu0 %1029
    %1031 = vrot.lane.b32.xlu0 %v290, 64
    %v1032 = vpop.permute.xlu0 %1031
    %1033 = vrot.lane.b32.xlu0 %v291, 64
    %v1034 = vpop.permute.xlu0 %1033
    %1035 = vrot.lane.b32.xlu0 %v292, 64
    %v1036 = vpop.permute.xlu0 %1035
    %1037 = vrot.lane.b32.xlu0 %v293, 64
    %v1038 = vpop.permute.xlu0 %1037
    %1039 = vrot.lane.b32.xlu0 %v294, 64
    %v1040 = vpop.permute.xlu0 %1039
    %1041 = vrot.lane.b32.xlu0 %v295, 64
    %v1042 = vpop.permute.xlu0 %1041
    %1043 = vrot.lane.b32.xlu0 %v296, 64
    %v1044 = vpop.permute.xlu0 %1043
    %1045 = vrot.lane.b32.xlu0 %v297, 64
    %v1046 = vpop.permute.xlu0 %1045
    %1047 = vrot.lane.b32.xlu0 %v298, 64
    %v1048 = vpop.permute.xlu0 %1047
    %1049 = vrot.lane.b32.xlu0 %v299, 64
    %v1050 = vpop.permute.xlu0 %1049
    %v1064 = vsel %vm182, %v1004, 0
    %v1067 = vsel %vm182, %v1006, 0
    %v1070 = vsel %vm182, %v1008, 0
    %v1073 = vsel %vm182, %v1010, 0
    %v1076 = vsel %vm182, %v1012, 0
    %v1079 = vsel %vm182, %v1014, 0
    %v1082 = vsel %vm182, %v1016, 0
    %v1085 = vsel %vm182, %v1018, 0
    %v1088 = vsel %vm182, %v1020, 0
    %v1091 = vsel %vm182, %v1022, 0
    %v1094 = vsel %vm182, %v1024, 0
    %v1097 = vsel %vm182, %v1026, 0
    %1099 = vmatpush.bf16.msra.mxu0 %v1042
    %1100 = vmatpush.bf16.msra.mxu0 %v1040
    %1101 = vmatpush.bf16.msra.mxu0 %v1038
    %1102 = vmatpush.bf16.msra.mxu0 %v1036
    %1103 = vmatpush.bf16.msra.mxu0 %v1034
    %1104 = vmatpush.bf16.msra.mxu0 %v1032
    %1105 = vmatpush.bf16.msra.mxu0 %v1030
    %1106 = vmatpush.bf16.msra.mxu0 %v1028
    %1107 = vmatmul.bf16.gmra.mxu0 %v1003
    %v1108 = vpop.f32.mrf.mxu0
    %v1109 = vadd.f32 0.0, %v1108
    %v1110 = vpop.f32.mrf.mxu0
    %v1111 = vadd.f32 0.0, %v1110
    %1112 = vmatmul.bf16.gmra.mxu0 %v1005
    %v1113 = vpop.f32.mrf.mxu0
    %v1114 = vadd.f32 0.0, %v1113
    %v1115 = vpop.f32.mrf.mxu0
    %v1116 = vadd.f32 0.0, %v1115
    %1117 = vmatmul.bf16.gmra.mxu0 %v1007
    %v1118 = vpop.f32.mrf.mxu0
    %v1119 = vadd.f32 0.0, %v1118
    %v1120 = vpop.f32.mrf.mxu0
    %v1121 = vadd.f32 0.0, %v1120
    %1122 = vmatmul.bf16.gmra.mxu0 %v1009
    %v1123 = vpop.f32.mrf.mxu0
    %v1124 = vadd.f32 0.0, %v1123
    %v1125 = vpop.f32.mrf.mxu0
    %v1126 = vadd.f32 0.0, %v1125
    %1127 = vmatmul.bf16.gmra.mxu0 %v1011
    %v1128 = vpop.f32.mrf.mxu0
    %v1129 = vadd.f32 0.0, %v1128
    %v1130 = vpop.f32.mrf.mxu0
    %v1131 = vadd.f32 0.0, %v1130
    %1132 = vmatmul.bf16.gmra.mxu0 %v1013
    %v1133 = vpop.f32.mrf.mxu0
    %v1134 = vadd.f32 0.0, %v1133
    %v1135 = vpop.f32.mrf.mxu0
    %v1136 = vadd.f32 0.0, %v1135
    %1137 = vmatmul.bf16.gmra.mxu0 %v1015
    %v1138 = vpop.f32.mrf.mxu0
    %v1139 = vadd.f32 0.0, %v1138
    %v1140 = vpop.f32.mrf.mxu0
    %v1141 = vadd.f32 0.0, %v1140
    %1142 = vmatmul.bf16.gmra.mxu0 %v1017
    %v1143 = vpop.f32.mrf.mxu0
    %v1144 = vadd.f32 0.0, %v1143
    %v1145 = vpop.f32.mrf.mxu0
    %v1146 = vadd.f32 0.0, %v1145
    %1147 = vmatmul.bf16.gmra.mxu0 %v1019
    %v1148 = vpop.f32.mrf.mxu0
    %v1149 = vadd.f32 0.0, %v1148
    %v1150 = vpop.f32.mrf.mxu0
    %v1151 = vadd.f32 0.0, %v1150
    %1152 = vmatmul.bf16.gmra.mxu0 %v1021
    %v1153 = vpop.f32.mrf.mxu0
    %v1154 = vadd.f32 0.0, %v1153
    %v1155 = vpop.f32.mrf.mxu0
    %v1156 = vadd.f32 0.0, %v1155
    %1157 = vmatmul.bf16.gmra.mxu0 %v1023
    %v1158 = vpop.f32.mrf.mxu0
    %v1159 = vadd.f32 0.0, %v1158
    %v1160 = vpop.f32.mrf.mxu0
    %v1161 = vadd.f32 0.0, %v1160
    %1162 = vmatmul.bf16.gmra.mxu0 %v1025
    %v1163 = vpop.f32.mrf.mxu0
    %v1164 = vadd.f32 0.0, %v1163
    %v1165 = vpop.f32.mrf.mxu0
    %v1166 = vadd.f32 0.0, %v1165
    %1167 = vdwg.mxu0
    %1168 = vmatpush.bf16.msra.mxu0 0
    %1169 = vmatpush.bf16.msra.mxu0 0
    %1170 = vmatpush.bf16.msra.mxu0 0
    %1171 = vmatpush.bf16.msra.mxu0 0
    %1172 = vmatpush.bf16.msra.mxu0 %v1050
    %1173 = vmatpush.bf16.msra.mxu0 %v1048
    %1174 = vmatpush.bf16.msra.mxu0 %v1046
    %1175 = vmatpush.bf16.msra.mxu0 %v1044
    %1176 = vmatmul.bf16.gmra.mxu0 %v1064
    %v1177 = vpop.f32.mrf.mxu0
    %v1178 = vadd.f32 %v1109, %v1177
    %v1179 = vpop.f32.mrf.mxu0
    %v1180 = vadd.f32 %v1111, %v1179
    %1181 = vmatmul.bf16.gmra.mxu0 %v1067
    %v1182 = vpop.f32.mrf.mxu0
    %v1183 = vadd.f32 %v1114, %v1182
    %v1184 = vpop.f32.mrf.mxu0
    %v1185 = vadd.f32 %v1116, %v1184
    %1186 = vmatmul.bf16.gmra.mxu0 %v1070
    %v1187 = vpop.f32.mrf.mxu0
    %v1188 = vadd.f32 %v1119, %v1187
    %v1189 = vpop.f32.mrf.mxu0
    %v1190 = vadd.f32 %v1121, %v1189
    %1191 = vmatmul.bf16.gmra.mxu0 %v1073
    %v1192 = vpop.f32.mrf.mxu0
    %v1193 = vadd.f32 %v1124, %v1192
    %v1194 = vpop.f32.mrf.mxu0
    %v1195 = vadd.f32 %v1126, %v1194
    %1196 = vmatmul.bf16.gmra.mxu0 %v1076
    %v1197 = vpop.f32.mrf.mxu0
    %v1198 = vadd.f32 %v1129, %v1197
    %v1199 = vpop.f32.mrf.mxu0
    %v1200 = vadd.f32 %v1131, %v1199
    %1201 = vmatmul.bf16.gmra.mxu0 %v1079
    %v1202 = vpop.f32.mrf.mxu0
    %v1203 = vadd.f32 %v1134, %v1202
    %v1204 = vpop.f32.mrf.mxu0
    %v1205 = vadd.f32 %v1136, %v1204
    %1206 = vmatmul.bf16.gmra.mxu0 %v1082
    %v1207 = vpop.f32.mrf.mxu0
    %v1208 = vadd.f32 %v1139, %v1207
    %v1209 = vpop.f32.mrf.mxu0
    %v1210 = vadd.f32 %v1141, %v1209
    %1211 = vmatmul.bf16.gmra.mxu0 %v1085
    %v1212 = vpop.f32.mrf.mxu0
    %v1213 = vadd.f32 %v1144, %v1212
    %v1214 = vpop.f32.mrf.mxu0
    %v1215 = vadd.f32 %v1146, %v1214
    %1216 = vmatmul.bf16.gmra.mxu0 %v1088
    %v1217 = vpop.f32.mrf.mxu0
    %v1218 = vadd.f32 %v1149, %v1217
    %v1219 = vpop.f32.mrf.mxu0
    %v1220 = vadd.f32 %v1151, %v1219
    %1221 = vmatmul.bf16.gmra.mxu0 %v1091
    %v1222 = vpop.f32.mrf.mxu0
    %v1223 = vadd.f32 %v1154, %v1222
    %v1224 = vpop.f32.mrf.mxu0
    %v1225 = vadd.f32 %v1156, %v1224
    %1226 = vmatmul.bf16.gmra.mxu0 %v1094
    %v1227 = vpop.f32.mrf.mxu0
    %v1228 = vadd.f32 %v1159, %v1227
    %v1229 = vpop.f32.mrf.mxu0
    %v1230 = vadd.f32 %v1161, %v1229
    %1231 = vmatmul.bf16.gmra.mxu0 %v1097
    %v1232 = vpop.f32.mrf.mxu0
    %v1233 = vadd.f32 %v1164, %v1232
    %v1234 = vpop.f32.mrf.mxu0
    %v1235 = vadd.f32 %v1166, %v1234
    %1236 = vdwg.mxu0
    %v1237 = vpack.c.bf16 %v1180, %v1178
    %v1238 = vpack.c.bf16 %v1185, %v1183
    %v1239 = vpack.c.bf16 %v1190, %v1188
    %v1240 = vpack.c.bf16 %v1195, %v1193
    %v1241 = vpack.c.bf16 %v1200, %v1198
    %v1242 = vpack.c.bf16 %v1205, %v1203
    %v1243 = vpack.c.bf16 %v1210, %v1208
    %v1244 = vpack.c.bf16 %v1215, %v1213
    %v1245 = vpack.c.bf16 %v1220, %v1218
    %v1246 = vpack.c.bf16 %v1225, %v1223
    %v1247 = vpack.c.bf16 %v1230, %v1228
    %v1248 = vpack.c.bf16 %v1235, %v1233
    %v1249 = vld [vmem:[#allocation6] sm:$0xf]
    %v1250 = vld [vmem:[#allocation6 + $0x4] sm:$0xf]
    %v1251 = vld [vmem:[#allocation6 + $0x8] sm:$0xf]
    %v1252 = vld [vmem:[#allocation6 + $0xc] sm:$0xf]
    %v1253 = vld [vmem:[#allocation7] sm:$0x1]
    %v1255 = vperm.slane %v1253, 0
    %v1261 = vunpack.c.l.b16 %v1249
    %v1262 = vunpack.c.l.b16 %v1250
    %v1263 = vunpack.c.l.b16 %v1251
    %v1264 = vunpack.c.l.b16 %v1252
    %v1265 = vpack.c.b16 %v1262, %v1261
    %v1266 = vpack.c.b16 %v1264, %v1263
    %v1270 = vsel %vm384, %v1237, 0
    %v1273 = vsel %vm384, %v1238, 0
    %v1276 = vsel %vm384, %v1239, 0
    %v1279 = vsel %vm384, %v1240, 0
    %v1282 = vsel %vm384, %v1241, 0
    %v1285 = vsel %vm384, %v1242, 0
    %v1288 = vsel %vm384, %v1243, 0
    %v1291 = vsel %vm384, %v1244, 0
    %v1294 = vsel %vm384, %v1245, 0
    %v1297 = vsel %vm384, %v1246, 0
    %v1300 = vsel %vm384, %v1247, 0
    %v1303 = vsel %vm384, %v1248, 0
    %1305 = vmatpush.bf16.msra.mxu0 0
    %1306 = vmatpush.bf16.msra.mxu0 0
    %1307 = vmatpush.bf16.msra.mxu0 0
    %1308 = vmatpush.bf16.msra.mxu0 0
    %1309 = vmatpush.bf16.msra.mxu0 0
    %1310 = vmatpush.bf16.msra.mxu0 0
    %1311 = vmatpush.bf16.msra.mxu0 %v1266
    %1312 = vmatpush.bf16.msra.mxu0 %v1265
    %1313 = vmatmul.bf16.gmra.mxu0 %v1270
    %v1314 = vpop.f32.mrf.mxu0
    %v1315 = vadd.f32 %v1255, %v1314
    %v1316 = vpop.f32.mrf.mxu0
    %v1317 = vadd.f32 %v1255, %v1316
    %1318 = vmatmul.bf16.gmra.mxu0 %v1273
    %v1319 = vpop.f32.mrf.mxu0
    %v1320 = vadd.f32 %v1255, %v1319
    %v1321 = vpop.f32.mrf.mxu0
    %v1322 = vadd.f32 %v1255, %v1321
    %1323 = vmatmul.bf16.gmra.mxu0 %v1276
    %v1324 = vpop.f32.mrf.mxu0
    %v1325 = vadd.f32 %v1255, %v1324
    %v1326 = vpop.f32.mrf.mxu0
    %v1327 = vadd.f32 %v1255, %v1326
    %1328 = vmatmul.bf16.gmra.mxu0 %v1279
    %v1329 = vpop.f32.mrf.mxu0
    %v1330 = vadd.f32 %v1255, %v1329
    %v1331 = vpop.f32.mrf.mxu0
    %v1332 = vadd.f32 %v1255, %v1331
    %1333 = vmatmul.bf16.gmra.mxu0 %v1282
    %v1334 = vpop.f32.mrf.mxu0
    %v1335 = vadd.f32 %v1255, %v1334
    %v1336 = vpop.f32.mrf.mxu0
    %v1337 = vadd.f32 %v1255, %v1336
    %1338 = vmatmul.bf16.gmra.mxu0 %v1285
    %v1339 = vpop.f32.mrf.mxu0
    %v1340 = vadd.f32 %v1255, %v1339
    %v1341 = vpop.f32.mrf.mxu0
    %v1342 = vadd.f32 %v1255, %v1341
    %1343 = vmatmul.bf16.gmra.mxu0 %v1288
    %v1344 = vpop.f32.mrf.mxu0
    %v1345 = vadd.f32 %v1255, %v1344
    %v1346 = vpop.f32.mrf.mxu0
    %v1347 = vadd.f32 %v1255, %v1346
    %1348 = vmatmul.bf16.gmra.mxu0 %v1291
    %v1349 = vpop.f32.mrf.mxu0
    %v1350 = vadd.f32 %v1255, %v1349
    %v1351 = vpop.f32.mrf.mxu0
    %v1352 = vadd.f32 %v1255, %v1351
    %1353 = vmatmul.bf16.gmra.mxu0 %v1294
    %v1354 = vpop.f32.mrf.mxu0
    %v1355 = vadd.f32 %v1255, %v1354
    %v1356 = vpop.f32.mrf.mxu0
    %v1357 = vadd.f32 %v1255, %v1356
    %1358 = vmatmul.bf16.gmra.mxu0 %v1297
    %v1359 = vpop.f32.mrf.mxu0
    %v1360 = vadd.f32 %v1255, %v1359
    %v1361 = vpop.f32.mrf.mxu0
    %v1362 = vadd.f32 %v1255, %v1361
    %1363 = vmatmul.bf16.gmra.mxu0 %v1300
    %v1364 = vpop.f32.mrf.mxu0
    %v1365 = vadd.f32 %v1255, %v1364
    %v1366 = vpop.f32.mrf.mxu0
    %v1367 = vadd.f32 %v1255, %v1366
    %1368 = vmatmul.bf16.gmra.mxu0 %v1303
    %v1369 = vpop.f32.mrf.mxu0
    %v1370 = vadd.f32 %v1255, %v1369
    %v1371 = vpop.f32.mrf.mxu0
    %v1372 = vadd.f32 %v1255, %v1371
    %1373 = vdwg.mxu0
    %v1374 = vadd.f32 %v1315, %v110
    %v1375 = vadd.f32 %v1317, %v111
    %v1376 = vadd.f32 %v1320, %v112
    %v1377 = vadd.f32 %v1322, %v113
    %v1378 = vadd.f32 %v1325, %v114
    %v1379 = vadd.f32 %v1327, %v115
    %v1380 = vadd.f32 %v1330, %v116
    %v1381 = vadd.f32 %v1332, %v117
    %v1382 = vadd.f32 %v1335, %v118
    %v1383 = vadd.f32 %v1337, %v119
    %v1384 = vadd.f32 %v1340, %v120
    %v1385 = vadd.f32 %v1342, %v121
    %v1386 = vadd.f32 %v1345, %v122
    %v1387 = vadd.f32 %v1347, %v123
    %v1388 = vadd.f32 %v1350, %v124
    %v1389 = vadd.f32 %v1352, %v125
    %v1390 = vadd.f32 %v1355, %v126
    %v1391 = vadd.f32 %v1357, %v127
    %v1392 = vadd.f32 %v1360, %v128
    %v1393 = vadd.f32 %v1362, %v129
    %v1394 = vadd.f32 %v1365, %v130
    %v1395 = vadd.f32 %v1367, %v131
    %v1396 = vadd.f32 %v1370, %v132
    %v1397 = vadd.f32 %v1372, %v133
    %v1398 = vsel %vm182, %v1374, 0.0
    %1399 = vadd.xlane.f32.xlu0 %v1398
    %v1400 = vpop.xlane.xlu0 %1399
    %v1401 = vsel %vm182, %v1375, 0.0
    %1402 = vadd.xlane.f32.xlu0 %v1401
    %v1403 = vpop.xlane.xlu0 %1402
    %v1404 = vsel %vm182, %v1376, 0.0
    %1405 = vadd.xlane.f32.xlu0 %v1404
    %v1406 = vpop.xlane.xlu0 %1405
    %v1407 = vsel %vm182, %v1377, 0.0
    %1408 = vadd.xlane.f32.xlu0 %v1407
    %v1409 = vpop.xlane.xlu0 %1408
    %v1410 = vsel %vm182, %v1378, 0.0
    %1411 = vadd.xlane.f32.xlu0 %v1410
    %v1412 = vpop.xlane.xlu0 %1411
    %v1413 = vsel %vm182, %v1379, 0.0
    %1414 = vadd.xlane.f32.xlu0 %v1413
    %v1415 = vpop.xlane.xlu0 %1414
    %v1416 = vsel %vm182, %v1380, 0.0
    %1417 = vadd.xlane.f32.xlu0 %v1416
    %v1418 = vpop.xlane.xlu0 %1417
    %v1419 = vsel %vm182, %v1381, 0.0
    %1420 = vadd.xlane.f32.xlu0 %v1419
    %v1421 = vpop.xlane.xlu0 %1420
    %v1422 = vsel %vm182, %v1382, 0.0
    %1423 = vadd.xlane.f32.xlu0 %v1422
    %v1424 = vpop.xlane.xlu0 %1423
    %v1425 = vsel %vm182, %v1383, 0.0
    %1426 = vadd.xlane.f32.xlu0 %v1425
    %v1427 = vpop.xlane.xlu0 %1426
    %v1428 = vsel %vm182, %v1384, 0.0
    %1429 = vadd.xlane.f32.xlu0 %v1428
    %v1430 = vpop.xlane.xlu0 %1429
    %v1431 = vsel %vm182, %v1385, 0.0
    %1432 = vadd.xlane.f32.xlu0 %v1431
    %v1433 = vpop.xlane.xlu0 %1432
    %v1434 = vsel %vm182, %v1386, 0.0
    %1435 = vadd.xlane.f32.xlu0 %v1434
    %v1436 = vpop.xlane.xlu0 %1435
    %v1437 = vsel %vm182, %v1387, 0.0
    %1438 = vadd.xlane.f32.xlu0 %v1437
    %v1439 = vpop.xlane.xlu0 %1438
    %v1440 = vsel %vm182, %v1388, 0.0
    %1441 = vadd.xlane.f32.xlu0 %v1440
    %v1442 = vpop.xlane.xlu0 %1441
    %v1443 = vsel %vm182, %v1389, 0.0
    %1444 = vadd.xlane.f32.xlu0 %v1443
    %v1445 = vpop.xlane.xlu0 %1444
    %v1446 = vsel %vm182, %v1390, 0.0
    %1447 = vadd.xlane.f32.xlu0 %v1446
    %v1448 = vpop.xlane.xlu0 %1447
    %v1449 = vsel %vm182, %v1391, 0.0
    %1450 = vadd.xlane.f32.xlu0 %v1449
    %v1451 = vpop.xlane.xlu0 %1450
    %v1452 = vsel %vm182, %v1392, 0.0
    %1453 = vadd.xlane.f32.xlu0 %v1452
    %v1454 = vpop.xlane.xlu0 %1453
    %v1455 = vsel %vm182, %v1393, 0.0
    %1456 = vadd.xlane.f32.xlu0 %v1455
    %v1457 = vpop.xlane.xlu0 %1456
    %v1458 = vsel %vm182, %v1394, 0.0
    %1459 = vadd.xlane.f32.xlu0 %v1458
    %v1460 = vpop.xlane.xlu0 %1459
    %v1461 = vsel %vm182, %v1395, 0.0
    %1462 = vadd.xlane.f32.xlu0 %v1461
    %v1463 = vpop.xlane.xlu0 %1462
    %v1464 = vsel %vm182, %v1396, 0.0
    %1465 = vadd.xlane.f32.xlu0 %v1464
    %v1466 = vpop.xlane.xlu0 %1465
    %v1467 = vsel %vm182, %v1397, 0.0
    %1468 = vadd.xlane.f32.xlu0 %v1467
    %v1469 = vpop.xlane.xlu0 %1468
    %v1470 = vrcp.pop 64.0
    %v1471 = vmul.f32 64.0, %v1470
    %v1472 = vsub.f32 1.0, %v1471
    %v1473 = vmul.f32 %v1470, %v1472
    %v1474 = vadd.f32 %v1470, %v1473
    %vm1475 = vweird.f32 %v1470
    %v1476 = vsel %vm1475, %v1470, %v1474
    %v1477 = vmul.f32 %v1400, %v1476
    %v1478 = vmul.f32 %v1403, %v1476
    %v1479 = vmul.f32 %v1406, %v1476
    %v1480 = vmul.f32 %v1409, %v1476
    %v1481 = vmul.f32 %v1412, %v1476
    %v1482 = vmul.f32 %v1415, %v1476
    %v1483 = vmul.f32 %v1418, %v1476
    %v1484 = vmul.f32 %v1421, %v1476
    %v1485 = vmul.f32 %v1424, %v1476
    %v1486 = vmul.f32 %v1427, %v1476
    %v1487 = vmul.f32 %v1430, %v1476
    %v1488 = vmul.f32 %v1433, %v1476
    %v1489 = vmul.f32 %v1436, %v1476
    %v1490 = vmul.f32 %v1439, %v1476
    %v1491 = vmul.f32 %v1442, %v1476
    %v1492 = vmul.f32 %v1445, %v1476
    %v1493 = vmul.f32 %v1448, %v1476
    %v1494 = vmul.f32 %v1451, %v1476
    %v1495 = vmul.f32 %v1454, %v1476
    %v1496 = vmul.f32 %v1457, %v1476
    %v1497 = vmul.f32 %v1460, %v1476
    %v1498 = vmul.f32 %v1463, %v1476
    %v1499 = vmul.f32 %v1466, %v1476
    %v1500 = vmul.f32 %v1469, %v1476
    %v1501 = vsub.f32 %v1374, %v1477
    %v1502 = vsub.f32 %v1375, %v1478
    %v1503 = vsub.f32 %v1376, %v1479
    %v1504 = vsub.f32 %v1377, %v1480
    %v1505 = vsub.f32 %v1378, %v1481
    %v1506 = vsub.f32 %v1379, %v1482
    %v1507 = vsub.f32 %v1380, %v1483
    %v1508 = vsub.f32 %v1381, %v1484
    %v1509 = vsub.f32 %v1382, %v1485
    %v1510 = vsub.f32 %v1383, %v1486
    %v1511 = vsub.f32 %v1384, %v1487
    %v1512 = vsub.f32 %v1385, %v1488
    %v1513 = vsub.f32 %v1386, %v1489
    %v1514 = vsub.f32 %v1387, %v1490
    %v1515 = vsub.f32 %v1388, %v1491
    %v1516 = vsub.f32 %v1389, %v1492
    %v1517 = vsub.f32 %v1390, %v1493
    %v1518 = vsub.f32 %v1391, %v1494
    %v1519 = vsub.f32 %v1392, %v1495
    %v1520 = vsub.f32 %v1393, %v1496
    %v1521 = vsub.f32 %v1394, %v1497
    %v1522 = vsub.f32 %v1395, %v1498
    %v1523 = vsub.f32 %v1396, %v1499
    %v1524 = vsub.f32 %v1397, %v1500
    %v1525 = vmul.f32 %v1501, %v1501
    %v1526 = vmul.f32 %v1502, %v1502
    %v1527 = vmul.f32 %v1503, %v1503
    %v1528 = vmul.f32 %v1504, %v1504
    %v1529 = vmul.f32 %v1505, %v1505
    %v1530 = vmul.f32 %v1506, %v1506
    %v1531 = vmul.f32 %v1507, %v1507
    %v1532 = vmul.f32 %v1508, %v1508
    %v1533 = vmul.f32 %v1509, %v1509
    %v1534 = vmul.f32 %v1510, %v1510
    %v1535 = vmul.f32 %v1511, %v1511
    %v1536 = vmul.f32 %v1512, %v1512
    %v1537 = vmul.f32 %v1513, %v1513
    %v1538 = vmul.f32 %v1514, %v1514
    %v1539 = vmul.f32 %v1515, %v1515
    %v1540 = vmul.f32 %v1516, %v1516
    %v1541 = vmul.f32 %v1517, %v1517
    %v1542 = vmul.f32 %v1518, %v1518
    %v1543 = vmul.f32 %v1519, %v1519
    %v1544 = vmul.f32 %v1520, %v1520
    %v1545 = vmul.f32 %v1521, %v1521
    %v1546 = vmul.f32 %v1522, %v1522
    %v1547 = vmul.f32 %v1523, %v1523
    %v1548 = vmul.f32 %v1524, %v1524
    %v1549 = vsel %vm182, %v1525, 0.0
    %1550 = vadd.xlane.f32.xlu0 %v1549
    %v1551 = vpop.xlane.xlu0 %1550
    %v1552 = vsel %vm182, %v1526, 0.0
    %1553 = vadd.xlane.f32.xlu0 %v1552
    %v1554 = vpop.xlane.xlu0 %1553
    %v1555 = vsel %vm182, %v1527, 0.0
    %1556 = vadd.xlane.f32.xlu0 %v1555
    %v1557 = vpop.xlane.xlu0 %1556
    %v1558 = vsel %vm182, %v1528, 0.0
    %1559 = vadd.xlane.f32.xlu0 %v1558
    %v1560 = vpop.xlane.xlu0 %1559
    %v1561 = vsel %vm182, %v1529, 0.0
    %1562 = vadd.xlane.f32.xlu0 %v1561
    %v1563 = vpop.xlane.xlu0 %1562
    %v1564 = vsel %vm182, %v1530, 0.0
    %1565 = vadd.xlane.f32.xlu0 %v1564
    %v1566 = vpop.xlane.xlu0 %1565
    %v1567 = vsel %vm182, %v1531, 0.0
    %1568 = vadd.xlane.f32.xlu0 %v1567
    %v1569 = vpop.xlane.xlu0 %1568
    %v1570 = vsel %vm182, %v1532, 0.0
    %1571 = vadd.xlane.f32.xlu0 %v1570
    %v1572 = vpop.xlane.xlu0 %1571
    %v1573 = vsel %vm182, %v1533, 0.0
    %1574 = vadd.xlane.f32.xlu0 %v1573
    %v1575 = vpop.xlane.xlu0 %1574
    %v1576 = vsel %vm182, %v1534, 0.0
    %1577 = vadd.xlane.f32.xlu0 %v1576
    %v1578 = vpop.xlane.xlu0 %1577
    %v1579 = vsel %vm182, %v1535, 0.0
    %1580 = vadd.xlane.f32.xlu0 %v1579
    %v1581 = vpop.xlane.xlu0 %1580
    %v1582 = vsel %vm182, %v1536, 0.0
    %1583 = vadd.xlane.f32.xlu0 %v1582
    %v1584 = vpop.xlane.xlu0 %1583
    %v1585 = vsel %vm182, %v1537, 0.0
    %1586 = vadd.xlane.f32.xlu0 %v1585
    %v1587 = vpop.xlane.xlu0 %1586
    %v1588 = vsel %vm182, %v1538, 0.0
    %1589 = vadd.xlane.f32.xlu0 %v1588
    %v1590 = vpop.xlane.xlu0 %1589
    %v1591 = vsel %vm182, %v1539, 0.0
    %1592 = vadd.xlane.f32.xlu0 %v1591
    %v1593 = vpop.xlane.xlu0 %1592
    %v1594 = vsel %vm182, %v1540, 0.0
    %1595 = vadd.xlane.f32.xlu0 %v1594
    %v1596 = vpop.xlane.xlu0 %1595
    %v1597 = vsel %vm182, %v1541, 0.0
    %1598 = vadd.xlane.f32.xlu0 %v1597
    %v1599 = vpop.xlane.xlu0 %1598
    %v1600 = vsel %vm182, %v1542, 0.0
    %1601 = vadd.xlane.f32.xlu0 %v1600
    %v1602 = vpop.xlane.xlu0 %1601
    %v1603 = vsel %vm182, %v1543, 0.0
    %1604 = vadd.xlane.f32.xlu0 %v1603
    %v1605 = vpop.xlane.xlu0 %1604
    %v1606 = vsel %vm182, %v1544, 0.0
    %1607 = vadd.xlane.f32.xlu0 %v1606
    %v1608 = vpop.xlane.xlu0 %1607
    %v1609 = vsel %vm182, %v1545, 0.0
    %1610 = vadd.xlane.f32.xlu0 %v1609
    %v1611 = vpop.xlane.xlu0 %1610
    %v1612 = vsel %vm182, %v1546, 0.0
    %1613 = vadd.xlane.f32.xlu0 %v1612
    %v1614 = vpop.xlane.xlu0 %1613
    %v1615 = vsel %vm182, %v1547, 0.0
    %1616 = vadd.xlane.f32.xlu0 %v1615
    %v1617 = vpop.xlane.xlu0 %1616
    %v1618 = vsel %vm182, %v1548, 0.0
    %1619 = vadd.xlane.f32.xlu0 %v1618
    %v1620 = vpop.xlane.xlu0 %1619
    %v1621 = vmul.f32 %v1551, %v1476
    %v1622 = vmul.f32 %v1554, %v1476
    %v1623 = vmul.f32 %v1557, %v1476
    %v1624 = vmul.f32 %v1560, %v1476
    %v1625 = vmul.f32 %v1563, %v1476
    %v1626 = vmul.f32 %v1566, %v1476
    %v1627 = vmul.f32 %v1569, %v1476
    %v1628 = vmul.f32 %v1572, %v1476
    %v1629 = vmul.f32 %v1575, %v1476
    %v1630 = vmul.f32 %v1578, %v1476
    %v1631 = vmul.f32 %v1581, %v1476
    %v1632 = vmul.f32 %v1584, %v1476
    %v1633 = vmul.f32 %v1587, %v1476
    %v1634 = vmul.f32 %v1590, %v1476
    %v1635 = vmul.f32 %v1593, %v1476
    %v1636 = vmul.f32 %v1596, %v1476
    %v1637 = vmul.f32 %v1599, %v1476
    %v1638 = vmul.f32 %v1602, %v1476
    %v1639 = vmul.f32 %v1605, %v1476
    %v1640 = vmul.f32 %v1608, %v1476
    %v1641 = vmul.f32 %v1611, %v1476
    %v1642 = vmul.f32 %v1614, %v1476
    %v1643 = vmul.f32 %v1617, %v1476
    %v1644 = vmul.f32 %v1620, %v1476
    %v1645 = vadd.f32 %v1621, 1e-05
    %v1646 = vadd.f32 %v1622, 1e-05
    %v1647 = vadd.f32 %v1623, 1e-05
    %v1648 = vadd.f32 %v1624, 1e-05
    %v1649 = vadd.f32 %v1625, 1e-05
    %v1650 = vadd.f32 %v1626, 1e-05
    %v1651 = vadd.f32 %v1627, 1e-05
    %v1652 = vadd.f32 %v1628, 1e-05
    %v1653 = vadd.f32 %v1629, 1e-05
    %v1654 = vadd.f32 %v1630, 1e-05
    %v1655 = vadd.f32 %v1631, 1e-05
    %v1656 = vadd.f32 %v1632, 1e-05
    %v1657 = vadd.f32 %v1633, 1e-05
    %v1658 = vadd.f32 %v1634, 1e-05
    %v1659 = vadd.f32 %v1635, 1e-05
    %v1660 = vadd.f32 %v1636, 1e-05
    %v1661 = vadd.f32 %v1637, 1e-05
    %v1662 = vadd.f32 %v1638, 1e-05
    %v1663 = vadd.f32 %v1639, 1e-05
    %v1664 = vadd.f32 %v1640, 1e-05
    %v1665 = vadd.f32 %v1641, 1e-05
    %v1666 = vadd.f32 %v1642, 1e-05
    %v1667 = vadd.f32 %v1643, 1e-05
    %v1668 = vadd.f32 %v1644, 1e-05
    %v1669 = vrsqrt.pop %v1645
    %v1670 = vmul.f32 %v1669, %v1645
    %v1671 = vmul.f32 %v1670, %v1669
    %v1672 = vmul.f32 0.5, %v1671
    %v1673 = vsub.f32 1.5, %v1672
    %v1674 = vmul.f32 %v1669, %v1673
    %vm1675 = vweird.f32 %v1645
    %vm1676 = vweird.f32 %v1669
    %vm1677 = vmor %vm1675, %vm1676
    %v1678 = vsel %vm1677, %v1669, %v1674
    %v1679 = vrsqrt.pop %v1646
    %v1680 = vmul.f32 %v1679, %v1646
    %v1681 = vmul.f32 %v1680, %v1679
    %v1682 = vmul.f32 0.5, %v1681
    %v1683 = vsub.f32 1.5, %v1682
    %v1684 = vmul.f32 %v1679, %v1683
    %vm1685 = vweird.f32 %v1646
    %vm1686 = vweird.f32 %v1679
    %vm1687 = vmor %vm1685, %vm1686
    %v1688 = vsel %vm1687, %v1679, %v1684
    %v1689 = vrsqrt.pop %v1647
    %v1690 = vmul.f32 %v1689, %v1647
    %v1691 = vmul.f32 %v1690, %v1689
    %v1692 = vmul.f32 0.5, %v1691
    %v1693 = vsub.f32 1.5, %v1692
    %v1694 = vmul.f32 %v1689, %v1693
    %vm1695 = vweird.f32 %v1647
    %vm1696 = vweird.f32 %v1689
    %vm1697 = vmor %vm1695, %vm1696
    %v1698 = vsel %vm1697, %v1689, %v1694
    %v1699 = vrsqrt.pop %v1648
    %v1700 = vmul.f32 %v1699, %v1648
    %v1701 = vmul.f32 %v1700, %v1699
    %v1702 = vmul.f32 0.5, %v1701
    %v1703 = vsub.f32 1.5, %v1702
    %v1704 = vmul.f32 %v1699, %v1703
    %vm1705 = vweird.f32 %v1648
    %vm1706 = vweird.f32 %v1699
    %vm1707 = vmor %vm1705, %vm1706
    %v1708 = vsel %vm1707, %v1699, %v1704
    %v1709 = vrsqrt.pop %v1649
    %v1710 = vmul.f32 %v1709, %v1649
    %v1711 = vmul.f32 %v1710, %v1709
    %v1712 = vmul.f32 0.5, %v1711
    %v1713 = vsub.f32 1.5, %v1712
    %v1714 = vmul.f32 %v1709, %v1713
    %vm1715 = vweird.f32 %v1649
    %vm1716 = vweird.f32 %v1709
    %vm1717 = vmor %vm1715, %vm1716
    %v1718 = vsel %vm1717, %v1709, %v1714
    %v1719 = vrsqrt.pop %v1650
    %v1720 = vmul.f32 %v1719, %v1650
    %v1721 = vmul.f32 %v1720, %v1719
    %v1722 = vmul.f32 0.5, %v1721
    %v1723 = vsub.f32 1.5, %v1722
    %v1724 = vmul.f32 %v1719, %v1723
    %vm1725 = vweird.f32 %v1650
    %vm1726 = vweird.f32 %v1719
    %vm1727 = vmor %vm1725, %vm1726
    %v1728 = vsel %vm1727, %v1719, %v1724
    %v1729 = vrsqrt.pop %v1651
    %v1730 = vmul.f32 %v1729, %v1651
    %v1731 = vmul.f32 %v1730, %v1729
    %v1732 = vmul.f32 0.5, %v1731
    %v1733 = vsub.f32 1.5, %v1732
    %v1734 = vmul.f32 %v1729, %v1733
    %vm1735 = vweird.f32 %v1651
    %vm1736 = vweird.f32 %v1729
    %vm1737 = vmor %vm1735, %vm1736
    %v1738 = vsel %vm1737, %v1729, %v1734
    %v1739 = vrsqrt.pop %v1652
    %v1740 = vmul.f32 %v1739, %v1652
    %v1741 = vmul.f32 %v1740, %v1739
    %v1742 = vmul.f32 0.5, %v1741
    %v1743 = vsub.f32 1.5, %v1742
    %v1744 = vmul.f32 %v1739, %v1743
    %vm1745 = vweird.f32 %v1652
    %vm1746 = vweird.f32 %v1739
    %vm1747 = vmor %vm1745, %vm1746
    %v1748 = vsel %vm1747, %v1739, %v1744
    %v1749 = vrsqrt.pop %v1653
    %v1750 = vmul.f32 %v1749, %v1653
    %v1751 = vmul.f32 %v1750, %v1749
    %v1752 = vmul.f32 0.5, %v1751
    %v1753 = vsub.f32 1.5, %v1752
    %v1754 = vmul.f32 %v1749, %v1753
    %vm1755 = vweird.f32 %v1653
    %vm1756 = vweird.f32 %v1749
    %vm1757 = vmor %vm1755, %vm1756
    %v1758 = vsel %vm1757, %v1749, %v1754
    %v1759 = vrsqrt.pop %v1654
    %v1760 = vmul.f32 %v1759, %v1654
    %v1761 = vmul.f32 %v1760, %v1759
    %v1762 = vmul.f32 0.5, %v1761
    %v1763 = vsub.f32 1.5, %v1762
    %v1764 = vmul.f32 %v1759, %v1763
    %vm1765 = vweird.f32 %v1654
    %vm1766 = vweird.f32 %v1759
    %vm1767 = vmor %vm1765, %vm1766
    %v1768 = vsel %vm1767, %v1759, %v1764
    %v1769 = vrsqrt.pop %v1655
    %v1770 = vmul.f32 %v1769, %v1655
    %v1771 = vmul.f32 %v1770, %v1769
    %v1772 = vmul.f32 0.5, %v1771
    %v1773 = vsub.f32 1.5, %v1772
    %v1774 = vmul.f32 %v1769, %v1773
    %vm1775 = vweird.f32 %v1655
    %vm1776 = vweird.f32 %v1769
    %vm1777 = vmor %vm1775, %vm1776
    %v1778 = vsel %vm1777, %v1769, %v1774
    %v1779 = vrsqrt.pop %v1656
    %v1780 = vmul.f32 %v1779, %v1656
    %v1781 = vmul.f32 %v1780, %v1779
    %v1782 = vmul.f32 0.5, %v1781
    %v1783 = vsub.f32 1.5, %v1782
    %v1784 = vmul.f32 %v1779, %v1783
    %vm1785 = vweird.f32 %v1656
    %vm1786 = vweird.f32 %v1779
    %vm1787 = vmor %vm1785, %vm1786
    %v1788 = vsel %vm1787, %v1779, %v1784
    %v1789 = vrsqrt.pop %v1657
    %v1790 = vmul.f32 %v1789, %v1657
    %v1791 = vmul.f32 %v1790, %v1789
    %v1792 = vmul.f32 0.5, %v1791
    %v1793 = vsub.f32 1.5, %v1792
    %v1794 = vmul.f32 %v1789, %v1793
    %vm1795 = vweird.f32 %v1657
    %vm1796 = vweird.f32 %v1789
    %vm1797 = vmor %vm1795, %vm1796
    %v1798 = vsel %vm1797, %v1789, %v1794
    %v1799 = vrsqrt.pop %v1658
    %v1800 = vmul.f32 %v1799, %v1658
    %v1801 = vmul.f32 %v1800, %v1799
    %v1802 = vmul.f32 0.5, %v1801
    %v1803 = vsub.f32 1.5, %v1802
    %v1804 = vmul.f32 %v1799, %v1803
    %vm1805 = vweird.f32 %v1658
    %vm1806 = vweird.f32 %v1799
    %vm1807 = vmor %vm1805, %vm1806
    %v1808 = vsel %vm1807, %v1799, %v1804
    %v1809 = vrsqrt.pop %v1659
    %v1810 = vmul.f32 %v1809, %v1659
    %v1811 = vmul.f32 %v1810, %v1809
    %v1812 = vmul.f32 0.5, %v1811
    %v1813 = vsub.f32 1.5, %v1812
    %v1814 = vmul.f32 %v1809, %v1813
    %vm1815 = vweird.f32 %v1659
    %vm1816 = vweird.f32 %v1809
    %vm1817 = vmor %vm1815, %vm1816
    %v1818 = vsel %vm1817, %v1809, %v1814
    %v1819 = vrsqrt.pop %v1660
    %v1820 = vmul.f32 %v1819, %v1660
    %v1821 = vmul.f32 %v1820, %v1819
    %v1822 = vmul.f32 0.5, %v1821
    %v1823 = vsub.f32 1.5, %v1822
    %v1824 = vmul.f32 %v1819, %v1823
    %vm1825 = vweird.f32 %v1660
    %vm1826 = vweird.f32 %v1819
    %vm1827 = vmor %vm1825, %vm1826
    %v1828 = vsel %vm1827, %v1819, %v1824
    %v1829 = vrsqrt.pop %v1661
    %v1830 = vmul.f32 %v1829, %v1661
    %v1831 = vmul.f32 %v1830, %v1829
    %v1832 = vmul.f32 0.5, %v1831
    %v1833 = vsub.f32 1.5, %v1832
    %v1834 = vmul.f32 %v1829, %v1833
    %vm1835 = vweird.f32 %v1661
    %vm1836 = vweird.f32 %v1829
    %vm1837 = vmor %vm1835, %vm1836
    %v1838 = vsel %vm1837, %v1829, %v1834
    %v1839 = vrsqrt.pop %v1662
    %v1840 = vmul.f32 %v1839, %v1662
    %v1841 = vmul.f32 %v1840, %v1839
    %v1842 = vmul.f32 0.5, %v1841
    %v1843 = vsub.f32 1.5, %v1842
    %v1844 = vmul.f32 %v1839, %v1843
    %vm1845 = vweird.f32 %v1662
    %vm1846 = vweird.f32 %v1839
    %vm1847 = vmor %vm1845, %vm1846
    %v1848 = vsel %vm1847, %v1839, %v1844
    %v1849 = vrsqrt.pop %v1663
    %v1850 = vmul.f32 %v1849, %v1663
    %v1851 = vmul.f32 %v1850, %v1849
    %v1852 = vmul.f32 0.5, %v1851
    %v1853 = vsub.f32 1.5, %v1852
    %v1854 = vmul.f32 %v1849, %v1853
    %vm1855 = vweird.f32 %v1663
    %vm1856 = vweird.f32 %v1849
    %vm1857 = vmor %vm1855, %vm1856
    %v1858 = vsel %vm1857, %v1849, %v1854
    %v1859 = vrsqrt.pop %v1664
    %v1860 = vmul.f32 %v1859, %v1664
    %v1861 = vmul.f32 %v1860, %v1859
    %v1862 = vmul.f32 0.5, %v1861
    %v1863 = vsub.f32 1.5, %v1862
    %v1864 = vmul.f32 %v1859, %v1863
    %vm1865 = vweird.f32 %v1664
    %vm1866 = vweird.f32 %v1859
    %vm1867 = vmor %vm1865, %vm1866
    %v1868 = vsel %vm1867, %v1859, %v1864
    %v1869 = vrsqrt.pop %v1665
    %v1870 = vmul.f32 %v1869, %v1665
    %v1871 = vmul.f32 %v1870, %v1869
    %v1872 = vmul.f32 0.5, %v1871
    %v1873 = vsub.f32 1.5, %v1872
    %v1874 = vmul.f32 %v1869, %v1873
    %vm1875 = vweird.f32 %v1665
    %vm1876 = vweird.f32 %v1869
    %vm1877 = vmor %vm1875, %vm1876
    %v1878 = vsel %vm1877, %v1869, %v1874
    %v1879 = vrsqrt.pop %v1666
    %v1880 = vmul.f32 %v1879, %v1666
    %v1881 = vmul.f32 %v1880, %v1879
    %v1882 = vmul.f32 0.5, %v1881
    %v1883 = vsub.f32 1.5, %v1882
    %v1884 = vmul.f32 %v1879, %v1883
    %vm1885 = vweird.f32 %v1666
    %vm1886 = vweird.f32 %v1879
    %vm1887 = vmor %vm1885, %vm1886
    %v1888 = vsel %vm1887, %v1879, %v1884
    %v1889 = vrsqrt.pop %v1667
    %v1890 = vmul.f32 %v1889, %v1667
    %v1891 = vmul.f32 %v1890, %v1889
    %v1892 = vmul.f32 0.5, %v1891
    %v1893 = vsub.f32 1.5, %v1892
    %v1894 = vmul.f32 %v1889, %v1893
    %vm1895 = vweird.f32 %v1667
    %vm1896 = vweird.f32 %v1889
    %vm1897 = vmor %vm1895, %vm1896
    %v1898 = vsel %vm1897, %v1889, %v1894
    %v1899 = vrsqrt.pop %v1668
    %v1900 = vmul.f32 %v1899, %v1668
    %v1901 = vmul.f32 %v1900, %v1899
    %v1902 = vmul.f32 0.5, %v1901
    %v1903 = vsub.f32 1.5, %v1902
    %v1904 = vmul.f32 %v1899, %v1903
    %vm1905 = vweird.f32 %v1668
    %vm1906 = vweird.f32 %v1899
    %vm1907 = vmor %vm1905, %vm1906
    %v1908 = vsel %vm1907, %v1899, %v1904
    %v1909 = vmul.f32 %v1501, %v1678
    %v1910 = vmul.f32 %v1502, %v1688
    %v1911 = vmul.f32 %v1503, %v1698
    %v1912 = vmul.f32 %v1504, %v1708
    %v1913 = vmul.f32 %v1505, %v1718
    %v1914 = vmul.f32 %v1506, %v1728
    %v1915 = vmul.f32 %v1507, %v1738
    %v1916 = vmul.f32 %v1508, %v1748
    %v1917 = vmul.f32 %v1509, %v1758
    %v1918 = vmul.f32 %v1510, %v1768
    %v1919 = vmul.f32 %v1511, %v1778
    %v1920 = vmul.f32 %v1512, %v1788
    %v1921 = vmul.f32 %v1513, %v1798
    %v1922 = vmul.f32 %v1514, %v1808
    %v1923 = vmul.f32 %v1515, %v1818
    %v1924 = vmul.f32 %v1516, %v1828
    %v1925 = vmul.f32 %v1517, %v1838
    %v1926 = vmul.f32 %v1518, %v1848
    %v1927 = vmul.f32 %v1519, %v1858
    %v1928 = vmul.f32 %v1520, %v1868
    %v1929 = vmul.f32 %v1521, %v1878
    %v1930 = vmul.f32 %v1522, %v1888
    %v1931 = vmul.f32 %v1523, %v1898
    %v1932 = vmul.f32 %v1524, %v1908
    %v1933 = vpack.c.bf16 %v1910, %v1909
    %v1934 = vpack.c.bf16 %v1912, %v1911
    %v1935 = vpack.c.bf16 %v1914, %v1913
    %v1936 = vpack.c.bf16 %v1916, %v1915
    %v1937 = vpack.c.bf16 %v1918, %v1917
    %v1938 = vpack.c.bf16 %v1920, %v1919
    %v1939 = vpack.c.bf16 %v1922, %v1921
    %v1940 = vpack.c.bf16 %v1924, %v1923
    %v1941 = vpack.c.bf16 %v1926, %v1925
    %v1942 = vpack.c.bf16 %v1928, %v1927
    %v1943 = vpack.c.bf16 %v1930, %v1929
    %v1944 = vpack.c.bf16 %v1932, %v1931
    %v1945 = vld [vmem:[#allocation9] sm:$0xff]
    %v1946 = vld [vmem:[#allocation9 + $0x8] sm:$0xff]
    %v1947 = vld [vmem:[#allocation9 + $0x10] sm:$0xff]
    %v1948 = vld [vmem:[#allocation9 + $0x18] sm:$0xff]
    %v1949 = vld [vmem:[#allocation9 + $0x20] sm:$0xff]
    %v1950 = vld [vmem:[#allocation9 + $0x28] sm:$0xff]
    %v1951 = vld [vmem:[#allocation9 + $0x30] sm:$0xff]
    %v1952 = vld [vmem:[#allocation9 + $0x38] sm:$0xff]
    %v1953 = vld [vmem:[%s7] sm:$0x3]
    %v1955 = vperm.slane %v1953, 0
    %v1956 = vperm.slane %v1953, 1
    %v1967 = vunpack.c.l.b16 %v1945
    %v1968 = vunpack.c.h.b16 %v1945
    %v1969 = vunpack.c.l.b16 %v1946
    %v1970 = vunpack.c.h.b16 %v1946
    %v1971 = vunpack.c.l.b16 %v1947
    %v1972 = vunpack.c.h.b16 %v1947
    %v1973 = vunpack.c.l.b16 %v1948
    %v1974 = vunpack.c.h.b16 %v1948
    %v1975 = vunpack.c.l.b16 %v1949
    %v1976 = vunpack.c.h.b16 %v1949
    %v1977 = vunpack.c.l.b16 %v1950
    %v1978 = vunpack.c.h.b16 %v1950
    %v1979 = vunpack.c.l.b16 %v1951
    %v1980 = vunpack.c.h.b16 %v1951
    %v1981 = vunpack.c.l.b16 %v1952
    %v1982 = vunpack.c.h.b16 %v1952
    %v1983 = vpack.c.b16 %v1969, %v1967
    %v1984 = vpack.c.b16 %v1970, %v1968
    %v1985 = vpack.c.b16 %v1973, %v1971
    %v1986 = vpack.c.b16 %v1974, %v1972
    %v1987 = vpack.c.b16 %v1977, %v1975
    %v1988 = vpack.c.b16 %v1978, %v1976
    %v1989 = vpack.c.b16 %v1981, %v1979
    %v1990 = vpack.c.b16 %v1982, %v1980
    %v2000 = vsel %vm182, %v1933, 0
    %v2003 = vsel %vm182, %v1934, 0
    %v2006 = vsel %vm182, %v1935, 0
    %v2009 = vsel %vm182, %v1936, 0
    %v2012 = vsel %vm182, %v1937, 0
    %v2015 = vsel %vm182, %v1938, 0
    %v2018 = vsel %vm182, %v1939, 0
    %v2021 = vsel %vm182, %v1940, 0
    %v2024 = vsel %vm182, %v1941, 0
    %v2027 = vsel %vm182, %v1942, 0
    %v2030 = vsel %vm182, %v1943, 0
    %v2033 = vsel %vm182, %v1944, 0
    %2035 = vmatpush.bf16.msra.mxu0 0
    %2036 = vmatpush.bf16.msra.mxu0 0
    %2037 = vmatpush.bf16.msra.mxu0 0
    %2038 = vmatpush.bf16.msra.mxu0 0
    %2039 = vmatpush.bf16.msra.mxu0 %v1989
    %2040 = vmatpush.bf16.msra.mxu0 %v1987
    %2041 = vmatpush.bf16.msra.mxu0 %v1985
    %2042 = vmatpush.bf16.msra.mxu0 %v1983
    %2043 = vmatmul.bf16.gmra.mxu0 %v2000
    %v2044 = vpop.f32.mrf.mxu0
    %v2045 = vadd.f32 %v1955, %v2044
    %v2046 = vpop.f32.mrf.mxu0
    %v2047 = vadd.f32 %v1955, %v2046
    %2048 = vmatmul.bf16.gmra.mxu0 %v2003
    %v2049 = vpop.f32.mrf.mxu0
    %v2050 = vadd.f32 %v1955, %v2049
    %v2051 = vpop.f32.mrf.mxu0
    %v2052 = vadd.f32 %v1955, %v2051
    %2053 = vmatmul.bf16.gmra.mxu0 %v2006
    %v2054 = vpop.f32.mrf.mxu0
    %v2055 = vadd.f32 %v1955, %v2054
    %v2056 = vpop.f32.mrf.mxu0
    %v2057 = vadd.f32 %v1955, %v2056
    %2058 = vmatmul.bf16.gmra.mxu0 %v2009
    %v2059 = vpop.f32.mrf.mxu0
    %v2060 = vadd.f32 %v1955, %v2059
    %v2061 = vpop.f32.mrf.mxu0
    %v2062 = vadd.f32 %v1955, %v2061
    %2063 = vmatmul.bf16.gmra.mxu0 %v2012
    %v2064 = vpop.f32.mrf.mxu0
    %v2065 = vadd.f32 %v1955, %v2064
    %v2066 = vpop.f32.mrf.mxu0
    %v2067 = vadd.f32 %v1955, %v2066
    %2068 = vmatmul.bf16.gmra.mxu0 %v2015
    %v2069 = vpop.f32.mrf.mxu0
    %v2070 = vadd.f32 %v1955, %v2069
    %v2071 = vpop.f32.mrf.mxu0
    %v2072 = vadd.f32 %v1955, %v2071
    %2073 = vmatmul.bf16.gmra.mxu0 %v2018
    %v2074 = vpop.f32.mrf.mxu0
    %v2075 = vadd.f32 %v1955, %v2074
    %v2076 = vpop.f32.mrf.mxu0
    %v2077 = vadd.f32 %v1955, %v2076
    %2078 = vmatmul.bf16.gmra.mxu0 %v2021
    %v2079 = vpop.f32.mrf.mxu0
    %v2080 = vadd.f32 %v1955, %v2079
    %v2081 = vpop.f32.mrf.mxu0
    %v2082 = vadd.f32 %v1955, %v2081
    %2083 = vmatmul.bf16.gmra.mxu0 %v2024
    %v2084 = vpop.f32.mrf.mxu0
    %v2085 = vadd.f32 %v1955, %v2084
    %v2086 = vpop.f32.mrf.mxu0
    %v2087 = vadd.f32 %v1955, %v2086
    %2088 = vmatmul.bf16.gmra.mxu0 %v2027
    %v2089 = vpop.f32.mrf.mxu0
    %v2090 = vadd.f32 %v1955, %v2089
    %v2091 = vpop.f32.mrf.mxu0
    %v2092 = vadd.f32 %v1955, %v2091
    %2093 = vmatmul.bf16.gmra.mxu0 %v2030
    %v2094 = vpop.f32.mrf.mxu0
    %v2095 = vadd.f32 %v1955, %v2094
    %v2096 = vpop.f32.mrf.mxu0
    %v2097 = vadd.f32 %v1955, %v2096
    %2098 = vmatmul.bf16.gmra.mxu0 %v2033
    %v2099 = vpop.f32.mrf.mxu0
    %v2100 = vadd.f32 %v1955, %v2099
    %v2101 = vpop.f32.mrf.mxu0
    %v2102 = vadd.f32 %v1955, %v2101
    %2103 = vdwg.mxu0
    %2104 = vmatpush.bf16.msra.mxu0 0
    %2105 = vmatpush.bf16.msra.mxu0 0
    %2106 = vmatpush.bf16.msra.mxu0 0
    %2107 = vmatpush.bf16.msra.mxu0 0
    %2108 = vmatpush.bf16.msra.mxu0 %v1990
    %2109 = vmatpush.bf16.msra.mxu0 %v1988
    %2110 = vmatpush.bf16.msra.mxu0 %v1986
    %2111 = vmatpush.bf16.msra.mxu0 %v1984
    %2112 = vmatmul.bf16.gmra.mxu0 %v2000
    %v2113 = vpop.f32.mrf.mxu0
    %v2114 = vadd.f32 %v1956, %v2113
    %v2115 = vpop.f32.mrf.mxu0
    %v2116 = vadd.f32 %v1956, %v2115
    %2117 = vmatmul.bf16.gmra.mxu0 %v2003
    %v2118 = vpop.f32.mrf.mxu0
    %v2119 = vadd.f32 %v1956, %v2118
    %v2120 = vpop.f32.mrf.mxu0
    %v2121 = vadd.f32 %v1956, %v2120
    %2122 = vmatmul.bf16.gmra.mxu0 %v2006
    %v2123 = vpop.f32.mrf.mxu0
    %v2124 = vadd.f32 %v1956, %v2123
    %v2125 = vpop.f32.mrf.mxu0
    %v2126 = vadd.f32 %v1956, %v2125
    %2127 = vmatmul.bf16.gmra.mxu0 %v2009
    %v2128 = vpop.f32.mrf.mxu0
    %v2129 = vadd.f32 %v1956, %v2128
    %v2130 = vpop.f32.mrf.mxu0
    %v2131 = vadd.f32 %v1956, %v2130
    %2132 = vmatmul.bf16.gmra.mxu0 %v2012
    %v2133 = vpop.f32.mrf.mxu0
    %v2134 = vadd.f32 %v1956, %v2133
    %v2135 = vpop.f32.mrf.mxu0
    %v2136 = vadd.f32 %v1956, %v2135
    %2137 = vmatmul.bf16.gmra.mxu0 %v2015
    %v2138 = vpop.f32.mrf.mxu0
    %v2139 = vadd.f32 %v1956, %v2138
    %v2140 = vpop.f32.mrf.mxu0
    %v2141 = vadd.f32 %v1956, %v2140
    %2142 = vmatmul.bf16.gmra.mxu0 %v2018
    %v2143 = vpop.f32.mrf.mxu0
    %v2144 = vadd.f32 %v1956, %v2143
    %v2145 = vpop.f32.mrf.mxu0
    %v2146 = vadd.f32 %v1956, %v2145
    %2147 = vmatmul.bf16.gmra.mxu0 %v2021
    %v2148 = vpop.f32.mrf.mxu0
    %v2149 = vadd.f32 %v1956, %v2148
    %v2150 = vpop.f32.mrf.mxu0
    %v2151 = vadd.f32 %v1956, %v2150
    %2152 = vmatmul.bf16.gmra.mxu0 %v2024
    %v2153 = vpop.f32.mrf.mxu0
    %v2154 = vadd.f32 %v1956, %v2153
    %v2155 = vpop.f32.mrf.mxu0
    %v2156 = vadd.f32 %v1956, %v2155
    %2157 = vmatmul.bf16.gmra.mxu0 %v2027
    %v2158 = vpop.f32.mrf.mxu0
    %v2159 = vadd.f32 %v1956, %v2158
    %v2160 = vpop.f32.mrf.mxu0
    %v2161 = vadd.f32 %v1956, %v2160
    %2162 = vmatmul.bf16.gmra.mxu0 %v2030
    %v2163 = vpop.f32.mrf.mxu0
    %v2164 = vadd.f32 %v1956, %v2163
    %v2165 = vpop.f32.mrf.mxu0
    %v2166 = vadd.f32 %v1956, %v2165
    %2167 = vmatmul.bf16.gmra.mxu0 %v2033
    %v2168 = vpop.f32.mrf.mxu0
    %v2169 = vadd.f32 %v1956, %v2168
    %v2170 = vpop.f32.mrf.mxu0
    %v2171 = vadd.f32 %v1956, %v2170
    %2172 = vdwg.mxu0
    %v2173 = vmul.f32 %v2045, 0.5
    %v2174 = vmul.f32 %v2114, 0.5
    %v2175 = vmul.f32 %v2047, 0.5
    %v2176 = vmul.f32 %v2116, 0.5
    %v2177 = vmul.f32 %v2050, 0.5
    %v2178 = vmul.f32 %v2119, 0.5
    %v2179 = vmul.f32 %v2052, 0.5
    %v2180 = vmul.f32 %v2121, 0.5
    %v2181 = vmul.f32 %v2055, 0.5
    %v2182 = vmul.f32 %v2124, 0.5
    %v2183 = vmul.f32 %v2057, 0.5
    %v2184 = vmul.f32 %v2126, 0.5
    %v2185 = vmul.f32 %v2060, 0.5
    %v2186 = vmul.f32 %v2129, 0.5
    %v2187 = vmul.f32 %v2062, 0.5
    %v2188 = vmul.f32 %v2131, 0.5
    %v2189 = vmul.f32 %v2065, 0.5
    %v2190 = vmul.f32 %v2134, 0.5
    %v2191 = vmul.f32 %v2067, 0.5
    %v2192 = vmul.f32 %v2136, 0.5
    %v2193 = vmul.f32 %v2070, 0.5
    %v2194 = vmul.f32 %v2139, 0.5
    %v2195 = vmul.f32 %v2072, 0.5
    %v2196 = vmul.f32 %v2141, 0.5
    %v2197 = vmul.f32 %v2075, 0.5
    %v2198 = vmul.f32 %v2144, 0.5
    %v2199 = vmul.f32 %v2077, 0.5
    %v2200 = vmul.f32 %v2146, 0.5
    %v2201 = vmul.f32 %v2080, 0.5
    %v2202 = vmul.f32 %v2149, 0.5
    %v2203 = vmul.f32 %v2082, 0.5
    %v2204 = vmul.f32 %v2151, 0.5
    %v2205 = vmul.f32 %v2085, 0.5
    %v2206 = vmul.f32 %v2154, 0.5
    %v2207 = vmul.f32 %v2087, 0.5
    %v2208 = vmul.f32 %v2156, 0.5
    %v2209 = vmul.f32 %v2090, 0.5
    %v2210 = vmul.f32 %v2159, 0.5
    %v2211 = vmul.f32 %v2092, 0.5
    %v2212 = vmul.f32 %v2161, 0.5
    %v2213 = vmul.f32 %v2095, 0.5
    %v2214 = vmul.f32 %v2164, 0.5
    %v2215 = vmul.f32 %v2097, 0.5
    %v2216 = vmul.f32 %v2166, 0.5
    %v2217 = vmul.f32 %v2100, 0.5
    %v2218 = vmul.f32 %v2169, 0.5
    %v2219 = vmul.f32 %v2102, 0.5
    %v2220 = vmul.f32 %v2171, 0.5
    %v2221 = vmul.f32 %v2045, 0.70710677
    %v2222 = vmul.f32 %v2114, 0.70710677
    %v2223 = vmul.f32 %v2047, 0.70710677
    %v2224 = vmul.f32 %v2116, 0.70710677
    %v2225 = vmul.f32 %v2050, 0.70710677
    %v2226 = vmul.f32 %v2119, 0.70710677
    %v2227 = vmul.f32 %v2052, 0.70710677
    %v2228 = vmul.f32 %v2121, 0.70710677
    %v2229 = vmul.f32 %v2055, 0.70710677
    %v2230 = vmul.f32 %v2124, 0.70710677
    %v2231 = vmul.f32 %v2057, 0.70710677
    %v2232 = vmul.f32 %v2126, 0.70710677
    %v2233 = vmul.f32 %v2060, 0.70710677
    %v2234 = vmul.f32 %v2129, 0.70710677
    %v2235 = vmul.f32 %v2062, 0.70710677
    %v2236 = vmul.f32 %v2131, 0.70710677
    %v2237 = vmul.f32 %v2065, 0.70710677
    %v2238 = vmul.f32 %v2134, 0.70710677
    %v2239 = vmul.f32 %v2067, 0.70710677
    %v2240 = vmul.f32 %v2136, 0.70710677
    %v2241 = vmul.f32 %v2070, 0.70710677
    %v2242 = vmul.f32 %v2139, 0.70710677
    %v2243 = vmul.f32 %v2072, 0.70710677
    %v2244 = vmul.f32 %v2141, 0.70710677
    %v2245 = vmul.f32 %v2075, 0.70710677
    %v2246 = vmul.f32 %v2144, 0.70710677
    %v2247 = vmul.f32 %v2077, 0.70710677
    %v2248 = vmul.f32 %v2146, 0.70710677
    %v2249 = vmul.f32 %v2080, 0.70710677
    %v2250 = vmul.f32 %v2149, 0.70710677
    %v2251 = vmul.f32 %v2082, 0.70710677
    %v2252 = vmul.f32 %v2151, 0.70710677
    %v2253 = vmul.f32 %v2085, 0.70710677
    %v2254 = vmul.f32 %v2154, 0.70710677
    %v2255 = vmul.f32 %v2087, 0.70710677
    %v2256 = vmul.f32 %v2156, 0.70710677
    %v2257 = vmul.f32 %v2090, 0.70710677
    %v2258 = vmul.f32 %v2159, 0.70710677
    %v2259 = vmul.f32 %v2092, 0.70710677
    %v2260 = vmul.f32 %v2161, 0.70710677
    %v2261 = vmul.f32 %v2095, 0.70710677
    %v2262 = vmul.f32 %v2164, 0.70710677
    %v2263 = vmul.f32 %v2097, 0.70710677
    %v2264 = vmul.f32 %v2166, 0.70710677
    %v2265 = vmul.f32 %v2100, 0.70710677
    %v2266 = vmul.f32 %v2169, 0.70710677
    %v2267 = vmul.f32 %v2102, 0.70710677
    %v2268 = vmul.f32 %v2171, 0.70710677
    %v2269 = vmul.f32 %v2221, %v2221
    %v2270 = vmin.f32 16.0, %v2269
    %v2271 = vmul.f32 %v2270, 2.1237322e-06
    %v2272 = vadd.f32 %v2271, 0.00028619796
    %v2273 = vmul.f32 %v2270, %v2272
    %v2274 = vadd.f32 %v2273, 0.0036580483
    %v2275 = vmul.f32 %v2270, %v2274
    %v2276 = vadd.f32 %v2275, 0.05243302
    %v2277 = vmul.f32 %v2270, %v2276
    %v2278 = vadd.f32 %v2277, 0.18741608
    %v2279 = vmul.f32 %v2270, %v2278
    %v2280 = vadd.f32 %v2279, 1.1283791
    %v2281 = vmul.f32 %v2221, %v2280
    %v2282 = vmul.f32 %v2270, 3.8918573e-05
    %v2283 = vadd.f32 %v2282, 0.001143296
    %v2284 = vmul.f32 %v2270, %v2283
    %v2285 = vadd.f32 %v2284, 0.014752088
    %v2286 = vmul.f32 %v2270, %v2285
    %v2287 = vadd.f32 %v2286, 0.112945676
    %v2288 = vmul.f32 %v2270, %v2287
    %v2289 = vadd.f32 %v2288, 0.4994258
    %v2290 = vmul.f32 %v2270, %v2289
    %v2291 = vadd.f32 %v2290, 1.0
    %v2292 = vrcp.pop %v2291
    %v2293 = vmul.f32 %v2291, %v2292
    %v2294 = vsub.f32 1.0, %v2293
    %v2295 = vmul.f32 %v2292, %v2294
    %v2296 = vadd.f32 %v2292, %v2295
    %vm2297 = vweird.f32 %v2291
    %vm2298 = vweird.f32 %v2292
    %vm2299 = vmor %vm2297, %vm2298
    %v2300 = vsel %vm2299, %v2292, %v2296
    %v2301 = vand.u32 2147483647, %v2291
    %vm2302 = vcmp.eq.f32.partialorder %v2301, 8.507059e+37
    %v2303 = vand.u32 %v2291, 2147483648
    %v2304 = vor.u32 1.1754944e-38, %v2303
    %v2305 = vsel %vm2302, %v2304, %v2300
    %v2306 = vmul.f32 %v2281, %v2305
    %v2307 = vmin.f32 %v2306, 1.0
    %v2308 = vmax.f32 %v2307, -1.0
    %v2309 = vmul.f32 %v2222, %v2222
    %v2310 = vmin.f32 16.0, %v2309
    %v2311 = vmul.f32 %v2310, 2.1237322e-06
    %v2312 = vadd.f32 %v2311, 0.00028619796
    %v2313 = vmul.f32 %v2310, %v2312
    %v2314 = vadd.f32 %v2313, 0.0036580483
    %v2315 = vmul.f32 %v2310, %v2314
    %v2316 = vadd.f32 %v2315, 0.05243302
    %v2317 = vmul.f32 %v2310, %v2316
    %v2318 = vadd.f32 %v2317, 0.18741608
    %v2319 = vmul.f32 %v2310, %v2318
    %v2320 = vadd.f32 %v2319, 1.1283791
    %v2321 = vmul.f32 %v2222, %v2320
    %v2322 = vmul.f32 %v2310, 3.8918573e-05
    %v2323 = vadd.f32 %v2322, 0.001143296
    %v2324 = vmul.f32 %v2310, %v2323
    %v2325 = vadd.f32 %v2324, 0.014752088
    %v2326 = vmul.f32 %v2310, %v2325
    %v2327 = vadd.f32 %v2326, 0.112945676
    %v2328 = vmul.f32 %v2310, %v2327
    %v2329 = vadd.f32 %v2328, 0.4994258
    %v2330 = vmul.f32 %v2310, %v2329
    %v2331 = vadd.f32 %v2330, 1.0
    %v2332 = vrcp.pop %v2331
    %v2333 = vmul.f32 %v2331, %v2332
    %v2334 = vsub.f32 1.0, %v2333
    %v2335 = vmul.f32 %v2332, %v2334
    %v2336 = vadd.f32 %v2332, %v2335
    %vm2337 = vweird.f32 %v2331
    %vm2338 = vweird.f32 %v2332
    %vm2339 = vmor %vm2337, %vm2338
    %v2340 = vsel %vm2339, %v2332, %v2336
    %v2341 = vand.u32 2147483647, %v2331
    %vm2342 = vcmp.eq.f32.partialorder %v2341, 8.507059e+37
    %v2343 = vand.u32 %v2331, 2147483648
    %v2344 = vor.u32 1.1754944e-38, %v2343
    %v2345 = vsel %vm2342, %v2344, %v2340
    %v2346 = vmul.f32 %v2321, %v2345
    %v2347 = vmin.f32 %v2346, 1.0
    %v2348 = vmax.f32 %v2347, -1.0
    %v2349 = vmul.f32 %v2223, %v2223
    %v2350 = vmin.f32 16.0, %v2349
    %v2351 = vmul.f32 %v2350, 2.1237322e-06
    %v2352 = vadd.f32 %v2351, 0.00028619796
    %v2353 = vmul.f32 %v2350, %v2352
    %v2354 = vadd.f32 %v2353, 0.0036580483
    %v2355 = vmul.f32 %v2350, %v2354
    %v2356 = vadd.f32 %v2355, 0.05243302
    %v2357 = vmul.f32 %v2350, %v2356
    %v2358 = vadd.f32 %v2357, 0.18741608
    %v2359 = vmul.f32 %v2350, %v2358
    %v2360 = vadd.f32 %v2359, 1.1283791
    %v2361 = vmul.f32 %v2223, %v2360
    %v2362 = vmul.f32 %v2350, 3.8918573e-05
    %v2363 = vadd.f32 %v2362, 0.001143296
    %v2364 = vmul.f32 %v2350, %v2363
    %v2365 = vadd.f32 %v2364, 0.014752088
    %v2366 = vmul.f32 %v2350, %v2365
    %v2367 = vadd.f32 %v2366, 0.112945676
    %v2368 = vmul.f32 %v2350, %v2367
    %v2369 = vadd.f32 %v2368, 0.4994258
    %v2370 = vmul.f32 %v2350, %v2369
    %v2371 = vadd.f32 %v2370, 1.0
    %v2372 = vrcp.pop %v2371
    %v2373 = vmul.f32 %v2371, %v2372
    %v2374 = vsub.f32 1.0, %v2373
    %v2375 = vmul.f32 %v2372, %v2374
    %v2376 = vadd.f32 %v2372, %v2375
    %vm2377 = vweird.f32 %v2371
    %vm2378 = vweird.f32 %v2372
    %vm2379 = vmor %vm2377, %vm2378
    %v2380 = vsel %vm2379, %v2372, %v2376
    %v2381 = vand.u32 2147483647, %v2371
    %vm2382 = vcmp.eq.f32.partialorder %v2381, 8.507059e+37
    %v2383 = vand.u32 %v2371, 2147483648
    %v2384 = vor.u32 1.1754944e-38, %v2383
    %v2385 = vsel %vm2382, %v2384, %v2380
    %v2386 = vmul.f32 %v2361, %v2385
    %v2387 = vmin.f32 %v2386, 1.0
    %v2388 = vmax.f32 %v2387, -1.0
    %v2389 = vmul.f32 %v2224, %v2224
    %v2390 = vmin.f32 16.0, %v2389
    %v2391 = vmul.f32 %v2390, 2.1237322e-06
    %v2392 = vadd.f32 %v2391, 0.00028619796
    %v2393 = vmul.f32 %v2390, %v2392
    %v2394 = vadd.f32 %v2393, 0.0036580483
    %v2395 = vmul.f32 %v2390, %v2394
    %v2396 = vadd.f32 %v2395, 0.05243302
    %v2397 = vmul.f32 %v2390, %v2396
    %v2398 = vadd.f32 %v2397, 0.18741608
    %v2399 = vmul.f32 %v2390, %v2398
    %v2400 = vadd.f32 %v2399, 1.1283791
    %v2401 = vmul.f32 %v2224, %v2400
    %v2402 = vmul.f32 %v2390, 3.8918573e-05
    %v2403 = vadd.f32 %v2402, 0.001143296
    %v2404 = vmul.f32 %v2390, %v2403
    %v2405 = vadd.f32 %v2404, 0.014752088
    %v2406 = vmul.f32 %v2390, %v2405
    %v2407 = vadd.f32 %v2406, 0.112945676
    %v2408 = vmul.f32 %v2390, %v2407
    %v2409 = vadd.f32 %v2408, 0.4994258
    %v2410 = vmul.f32 %v2390, %v2409
    %v2411 = vadd.f32 %v2410, 1.0
    %v2412 = vrcp.pop %v2411
    %v2413 = vmul.f32 %v2411, %v2412
    %v2414 = vsub.f32 1.0, %v2413
    %v2415 = vmul.f32 %v2412, %v2414
    %v2416 = vadd.f32 %v2412, %v2415
    %vm2417 = vweird.f32 %v2411
    %vm2418 = vweird.f32 %v2412
    %vm2419 = vmor %vm2417, %vm2418
    %v2420 = vsel %vm2419, %v2412, %v2416
    %v2421 = vand.u32 2147483647, %v2411
    %vm2422 = vcmp.eq.f32.partialorder %v2421, 8.507059e+37
    %v2423 = vand.u32 %v2411, 2147483648
    %v2424 = vor.u32 1.1754944e-38, %v2423
    %v2425 = vsel %vm2422, %v2424, %v2420
    %v2426 = vmul.f32 %v2401, %v2425
    %v2427 = vmin.f32 %v2426, 1.0
    %v2428 = vmax.f32 %v2427, -1.0
    %v2429 = vmul.f32 %v2225, %v2225
    %v2430 = vmin.f32 16.0, %v2429
    %v2431 = vmul.f32 %v2430, 2.1237322e-06
    %v2432 = vadd.f32 %v2431, 0.00028619796
    %v2433 = vmul.f32 %v2430, %v2432
    %v2434 = vadd.f32 %v2433, 0.0036580483
    %v2435 = vmul.f32 %v2430, %v2434
    %v2436 = vadd.f32 %v2435, 0.05243302
    %v2437 = vmul.f32 %v2430, %v2436
    %v2438 = vadd.f32 %v2437, 0.18741608
    %v2439 = vmul.f32 %v2430, %v2438
    %v2440 = vadd.f32 %v2439, 1.1283791
    %v2441 = vmul.f32 %v2225, %v2440
    %v2442 = vmul.f32 %v2430, 3.8918573e-05
    %v2443 = vadd.f32 %v2442, 0.001143296
    %v2444 = vmul.f32 %v2430, %v2443
    %v2445 = vadd.f32 %v2444, 0.014752088
    %v2446 = vmul.f32 %v2430, %v2445
    %v2447 = vadd.f32 %v2446, 0.112945676
    %v2448 = vmul.f32 %v2430, %v2447
    %v2449 = vadd.f32 %v2448, 0.4994258
    %v2450 = vmul.f32 %v2430, %v2449
    %v2451 = vadd.f32 %v2450, 1.0
    %v2452 = vrcp.pop %v2451
    %v2453 = vmul.f32 %v2451, %v2452
    %v2454 = vsub.f32 1.0, %v2453
    %v2455 = vmul.f32 %v2452, %v2454
    %v2456 = vadd.f32 %v2452, %v2455
    %vm2457 = vweird.f32 %v2451
    %vm2458 = vweird.f32 %v2452
    %vm2459 = vmor %vm2457, %vm2458
    %v2460 = vsel %vm2459, %v2452, %v2456
    %v2461 = vand.u32 2147483647, %v2451
    %vm2462 = vcmp.eq.f32.partialorder %v2461, 8.507059e+37
    %v2463 = vand.u32 %v2451, 2147483648
    %v2464 = vor.u32 1.1754944e-38, %v2463
    %v2465 = vsel %vm2462, %v2464, %v2460
    %v2466 = vmul.f32 %v2441, %v2465
    %v2467 = vmin.f32 %v2466, 1.0
    %v2468 = vmax.f32 %v2467, -1.0
    %v2469 = vmul.f32 %v2226, %v2226
    %v2470 = vmin.f32 16.0, %v2469
    %v2471 = vmul.f32 %v2470, 2.1237322e-06
    %v2472 = vadd.f32 %v2471, 0.00028619796
    %v2473 = vmul.f32 %v2470, %v2472
    %v2474 = vadd.f32 %v2473, 0.0036580483
    %v2475 = vmul.f32 %v2470, %v2474
    %v2476 = vadd.f32 %v2475, 0.05243302
    %v2477 = vmul.f32 %v2470, %v2476
    %v2478 = vadd.f32 %v2477, 0.18741608
    %v2479 = vmul.f32 %v2470, %v2478
    %v2480 = vadd.f32 %v2479, 1.1283791
    %v2481 = vmul.f32 %v2226, %v2480
    %v2482 = vmul.f32 %v2470, 3.8918573e-05
    %v2483 = vadd.f32 %v2482, 0.001143296
    %v2484 = vmul.f32 %v2470, %v2483
    %v2485 = vadd.f32 %v2484, 0.014752088
    %v2486 = vmul.f32 %v2470, %v2485
    %v2487 = vadd.f32 %v2486, 0.112945676
    %v2488 = vmul.f32 %v2470, %v2487
    %v2489 = vadd.f32 %v2488, 0.4994258
    %v2490 = vmul.f32 %v2470, %v2489
    %v2491 = vadd.f32 %v2490, 1.0
    %v2492 = vrcp.pop %v2491
    %v2493 = vmul.f32 %v2491, %v2492
    %v2494 = vsub.f32 1.0, %v2493
    %v2495 = vmul.f32 %v2492, %v2494
    %v2496 = vadd.f32 %v2492, %v2495
    %vm2497 = vweird.f32 %v2491
    %vm2498 = vweird.f32 %v2492
    %vm2499 = vmor %vm2497, %vm2498
    %v2500 = vsel %vm2499, %v2492, %v2496
    %v2501 = vand.u32 2147483647, %v2491
    %vm2502 = vcmp.eq.f32.partialorder %v2501, 8.507059e+37
    %v2503 = vand.u32 %v2491, 2147483648
    %v2504 = vor.u32 1.1754944e-38, %v2503
    %v2505 = vsel %vm2502, %v2504, %v2500
    %v2506 = vmul.f32 %v2481, %v2505
    %v2507 = vmin.f32 %v2506, 1.0
    %v2508 = vmax.f32 %v2507, -1.0
    %v2509 = vmul.f32 %v2227, %v2227
    %v2510 = vmin.f32 16.0, %v2509
    %v2511 = vmul.f32 %v2510, 2.1237322e-06
    %v2512 = vadd.f32 %v2511, 0.00028619796
    %v2513 = vmul.f32 %v2510, %v2512
    %v2514 = vadd.f32 %v2513, 0.0036580483
    %v2515 = vmul.f32 %v2510, %v2514
    %v2516 = vadd.f32 %v2515, 0.05243302
    %v2517 = vmul.f32 %v2510, %v2516
    %v2518 = vadd.f32 %v2517, 0.18741608
    %v2519 = vmul.f32 %v2510, %v2518
    %v2520 = vadd.f32 %v2519, 1.1283791
    %v2521 = vmul.f32 %v2227, %v2520
    %v2522 = vmul.f32 %v2510, 3.8918573e-05
    %v2523 = vadd.f32 %v2522, 0.001143296
    %v2524 = vmul.f32 %v2510, %v2523
    %v2525 = vadd.f32 %v2524, 0.014752088
    %v2526 = vmul.f32 %v2510, %v2525
    %v2527 = vadd.f32 %v2526, 0.112945676
    %v2528 = vmul.f32 %v2510, %v2527
    %v2529 = vadd.f32 %v2528, 0.4994258
    %v2530 = vmul.f32 %v2510, %v2529
    %v2531 = vadd.f32 %v2530, 1.0
    %v2532 = vrcp.pop %v2531
    %v2533 = vmul.f32 %v2531, %v2532
    %v2534 = vsub.f32 1.0, %v2533
    %v2535 = vmul.f32 %v2532, %v2534
    %v2536 = vadd.f32 %v2532, %v2535
    %vm2537 = vweird.f32 %v2531
    %vm2538 = vweird.f32 %v2532
    %vm2539 = vmor %vm2537, %vm2538
    %v2540 = vsel %vm2539, %v2532, %v2536
    %v2541 = vand.u32 2147483647, %v2531
    %vm2542 = vcmp.eq.f32.partialorder %v2541, 8.507059e+37
    %v2543 = vand.u32 %v2531, 2147483648
    %v2544 = vor.u32 1.1754944e-38, %v2543
    %v2545 = vsel %vm2542, %v2544, %v2540
    %v2546 = vmul.f32 %v2521, %v2545
    %v2547 = vmin.f32 %v2546, 1.0
    %v2548 = vmax.f32 %v2547, -1.0
    %v2549 = vmul.f32 %v2228, %v2228
    %v2550 = vmin.f32 16.0, %v2549
    %v2551 = vmul.f32 %v2550, 2.1237322e-06
    %v2552 = vadd.f32 %v2551, 0.00028619796
    %v2553 = vmul.f32 %v2550, %v2552
    %v2554 = vadd.f32 %v2553, 0.0036580483
    %v2555 = vmul.f32 %v2550, %v2554
    %v2556 = vadd.f32 %v2555, 0.05243302
    %v2557 = vmul.f32 %v2550, %v2556
    %v2558 = vadd.f32 %v2557, 0.18741608
    %v2559 = vmul.f32 %v2550, %v2558
    %v2560 = vadd.f32 %v2559, 1.1283791
    %v2561 = vmul.f32 %v2228, %v2560
    %v2562 = vmul.f32 %v2550, 3.8918573e-05
    %v2563 = vadd.f32 %v2562, 0.001143296
    %v2564 = vmul.f32 %v2550, %v2563
    %v2565 = vadd.f32 %v2564, 0.014752088
    %v2566 = vmul.f32 %v2550, %v2565
    %v2567 = vadd.f32 %v2566, 0.112945676
    %v2568 = vmul.f32 %v2550, %v2567
    %v2569 = vadd.f32 %v2568, 0.4994258
    %v2570 = vmul.f32 %v2550, %v2569
    %v2571 = vadd.f32 %v2570, 1.0
    %v2572 = vrcp.pop %v2571
    %v2573 = vmul.f32 %v2571, %v2572
    %v2574 = vsub.f32 1.0, %v2573
    %v2575 = vmul.f32 %v2572, %v2574
    %v2576 = vadd.f32 %v2572, %v2575
    %vm2577 = vweird.f32 %v2571
    %vm2578 = vweird.f32 %v2572
    %vm2579 = vmor %vm2577, %vm2578
    %v2580 = vsel %vm2579, %v2572, %v2576
    %v2581 = vand.u32 2147483647, %v2571
    %vm2582 = vcmp.eq.f32.partialorder %v2581, 8.507059e+37
    %v2583 = vand.u32 %v2571, 2147483648
    %v2584 = vor.u32 1.1754944e-38, %v2583
    %v2585 = vsel %vm2582, %v2584, %v2580
    %v2586 = vmul.f32 %v2561, %v2585
    %v2587 = vmin.f32 %v2586, 1.0
    %v2588 = vmax.f32 %v2587, -1.0
    %v2589 = vmul.f32 %v2229, %v2229
    %v2590 = vmin.f32 16.0, %v2589
    %v2591 = vmul.f32 %v2590, 2.1237322e-06
    %v2592 = vadd.f32 %v2591, 0.00028619796
    %v2593 = vmul.f32 %v2590, %v2592
    %v2594 = vadd.f32 %v2593, 0.0036580483
    %v2595 = vmul.f32 %v2590, %v2594
    %v2596 = vadd.f32 %v2595, 0.05243302
    %v2597 = vmul.f32 %v2590, %v2596
    %v2598 = vadd.f32 %v2597, 0.18741608
    %v2599 = vmul.f32 %v2590, %v2598
    %v2600 = vadd.f32 %v2599, 1.1283791
    %v2601 = vmul.f32 %v2229, %v2600
    %v2602 = vmul.f32 %v2590, 3.8918573e-05
    %v2603 = vadd.f32 %v2602, 0.001143296
    %v2604 = vmul.f32 %v2590, %v2603
    %v2605 = vadd.f32 %v2604, 0.014752088
    %v2606 = vmul.f32 %v2590, %v2605
    %v2607 = vadd.f32 %v2606, 0.112945676
    %v2608 = vmul.f32 %v2590, %v2607
    %v2609 = vadd.f32 %v2608, 0.4994258
    %v2610 = vmul.f32 %v2590, %v2609
    %v2611 = vadd.f32 %v2610, 1.0
    %v2612 = vrcp.pop %v2611
    %v2613 = vmul.f32 %v2611, %v2612
    %v2614 = vsub.f32 1.0, %v2613
    %v2615 = vmul.f32 %v2612, %v2614
    %v2616 = vadd.f32 %v2612, %v2615
    %vm2617 = vweird.f32 %v2611
    %vm2618 = vweird.f32 %v2612
    %vm2619 = vmor %vm2617, %vm2618
    %v2620 = vsel %vm2619, %v2612, %v2616
    %v2621 = vand.u32 2147483647, %v2611
    %vm2622 = vcmp.eq.f32.partialorder %v2621, 8.507059e+37
    %v2623 = vand.u32 %v2611, 2147483648
    %v2624 = vor.u32 1.1754944e-38, %v2623
    %v2625 = vsel %vm2622, %v2624, %v2620
    %v2626 = vmul.f32 %v2601, %v2625
    %v2627 = vmin.f32 %v2626, 1.0
    %v2628 = vmax.f32 %v2627, -1.0
    %v2629 = vmul.f32 %v2230, %v2230
    %v2630 = vmin.f32 16.0, %v2629
    %v2631 = vmul.f32 %v2630, 2.1237322e-06
    %v2632 = vadd.f32 %v2631, 0.00028619796
    %v2633 = vmul.f32 %v2630, %v2632
    %v2634 = vadd.f32 %v2633, 0.0036580483
    %v2635 = vmul.f32 %v2630, %v2634
    %v2636 = vadd.f32 %v2635, 0.05243302
    %v2637 = vmul.f32 %v2630, %v2636
    %v2638 = vadd.f32 %v2637, 0.18741608
    %v2639 = vmul.f32 %v2630, %v2638
    %v2640 = vadd.f32 %v2639, 1.1283791
    %v2641 = vmul.f32 %v2230, %v2640
    %v2642 = vmul.f32 %v2630, 3.8918573e-05
    %v2643 = vadd.f32 %v2642, 0.001143296
    %v2644 = vmul.f32 %v2630, %v2643
    %v2645 = vadd.f32 %v2644, 0.014752088
    %v2646 = vmul.f32 %v2630, %v2645
    %v2647 = vadd.f32 %v2646, 0.112945676
    %v2648 = vmul.f32 %v2630, %v2647
    %v2649 = vadd.f32 %v2648, 0.4994258
    %v2650 = vmul.f32 %v2630, %v2649
    %v2651 = vadd.f32 %v2650, 1.0
    %v2652 = vrcp.pop %v2651
    %v2653 = vmul.f32 %v2651, %v2652
    %v2654 = vsub.f32 1.0, %v2653
    %v2655 = vmul.f32 %v2652, %v2654
    %v2656 = vadd.f32 %v2652, %v2655
    %vm2657 = vweird.f32 %v2651
    %vm2658 = vweird.f32 %v2652
    %vm2659 = vmor %vm2657, %vm2658
    %v2660 = vsel %vm2659, %v2652, %v2656
    %v2661 = vand.u32 2147483647, %v2651
    %vm2662 = vcmp.eq.f32.partialorder %v2661, 8.507059e+37
    %v2663 = vand.u32 %v2651, 2147483648
    %v2664 = vor.u32 1.1754944e-38, %v2663
    %v2665 = vsel %vm2662, %v2664, %v2660
    %v2666 = vmul.f32 %v2641, %v2665
    %v2667 = vmin.f32 %v2666, 1.0
    %v2668 = vmax.f32 %v2667, -1.0
    %v2669 = vmul.f32 %v2231, %v2231
    %v2670 = vmin.f32 16.0, %v2669
    %v2671 = vmul.f32 %v2670, 2.1237322e-06
    %v2672 = vadd.f32 %v2671, 0.00028619796
    %v2673 = vmul.f32 %v2670, %v2672
    %v2674 = vadd.f32 %v2673, 0.0036580483
    %v2675 = vmul.f32 %v2670, %v2674
    %v2676 = vadd.f32 %v2675, 0.05243302
    %v2677 = vmul.f32 %v2670, %v2676
    %v2678 = vadd.f32 %v2677, 0.18741608
    %v2679 = vmul.f32 %v2670, %v2678
    %v2680 = vadd.f32 %v2679, 1.1283791
    %v2681 = vmul.f32 %v2231, %v2680
    %v2682 = vmul.f32 %v2670, 3.8918573e-05
    %v2683 = vadd.f32 %v2682, 0.001143296
    %v2684 = vmul.f32 %v2670, %v2683
    %v2685 = vadd.f32 %v2684, 0.014752088
    %v2686 = vmul.f32 %v2670, %v2685
    %v2687 = vadd.f32 %v2686, 0.112945676
    %v2688 = vmul.f32 %v2670, %v2687
    %v2689 = vadd.f32 %v2688, 0.4994258
    %v2690 = vmul.f32 %v2670, %v2689
    %v2691 = vadd.f32 %v2690, 1.0
    %v2692 = vrcp.pop %v2691
    %v2693 = vmul.f32 %v2691, %v2692
    %v2694 = vsub.f32 1.0, %v2693
    %v2695 = vmul.f32 %v2692, %v2694
    %v2696 = vadd.f32 %v2692, %v2695
    %vm2697 = vweird.f32 %v2691
    %vm2698 = vweird.f32 %v2692
    %vm2699 = vmor %vm2697, %vm2698
    %v2700 = vsel %vm2699, %v2692, %v2696
    %v2701 = vand.u32 2147483647, %v2691
    %vm2702 = vcmp.eq.f32.partialorder %v2701, 8.507059e+37
    %v2703 = vand.u32 %v2691, 2147483648
    %v2704 = vor.u32 1.1754944e-38, %v2703
    %v2705 = vsel %vm2702, %v2704, %v2700
    %v2706 = vmul.f32 %v2681, %v2705
    %v2707 = vmin.f32 %v2706, 1.0
    %v2708 = vmax.f32 %v2707, -1.0
    %v2709 = vmul.f32 %v2232, %v2232
    %v2710 = vmin.f32 16.0, %v2709
    %v2711 = vmul.f32 %v2710, 2.1237322e-06
    %v2712 = vadd.f32 %v2711, 0.00028619796
    %v2713 = vmul.f32 %v2710, %v2712
    %v2714 = vadd.f32 %v2713, 0.0036580483
    %v2715 = vmul.f32 %v2710, %v2714
    %v2716 = vadd.f32 %v2715, 0.05243302
    %v2717 = vmul.f32 %v2710, %v2716
    %v2718 = vadd.f32 %v2717, 0.18741608
    %v2719 = vmul.f32 %v2710, %v2718
    %v2720 = vadd.f32 %v2719, 1.1283791
    %v2721 = vmul.f32 %v2232, %v2720
    %v2722 = vmul.f32 %v2710, 3.8918573e-05
    %v2723 = vadd.f32 %v2722, 0.001143296
    %v2724 = vmul.f32 %v2710, %v2723
    %v2725 = vadd.f32 %v2724, 0.014752088
    %v2726 = vmul.f32 %v2710, %v2725
    %v2727 = vadd.f32 %v2726, 0.112945676
    %v2728 = vmul.f32 %v2710, %v2727
    %v2729 = vadd.f32 %v2728, 0.4994258
    %v2730 = vmul.f32 %v2710, %v2729
    %v2731 = vadd.f32 %v2730, 1.0
    %v2732 = vrcp.pop %v2731
    %v2733 = vmul.f32 %v2731, %v2732
    %v2734 = vsub.f32 1.0, %v2733
    %v2735 = vmul.f32 %v2732, %v2734
    %v2736 = vadd.f32 %v2732, %v2735
    %vm2737 = vweird.f32 %v2731
    %vm2738 = vweird.f32 %v2732
    %vm2739 = vmor %vm2737, %vm2738
    %v2740 = vsel %vm2739, %v2732, %v2736
    %v2741 = vand.u32 2147483647, %v2731
    %vm2742 = vcmp.eq.f32.partialorder %v2741, 8.507059e+37
    %v2743 = vand.u32 %v2731, 2147483648
    %v2744 = vor.u32 1.1754944e-38, %v2743
    %v2745 = vsel %vm2742, %v2744, %v2740
    %v2746 = vmul.f32 %v2721, %v2745
    %v2747 = vmin.f32 %v2746, 1.0
    %v2748 = vmax.f32 %v2747, -1.0
    %v2749 = vmul.f32 %v2233, %v2233
    %v2750 = vmin.f32 16.0, %v2749
    %v2751 = vmul.f32 %v2750, 2.1237322e-06
    %v2752 = vadd.f32 %v2751, 0.00028619796
    %v2753 = vmul.f32 %v2750, %v2752
    %v2754 = vadd.f32 %v2753, 0.0036580483
    %v2755 = vmul.f32 %v2750, %v2754
    %v2756 = vadd.f32 %v2755, 0.05243302
    %v2757 = vmul.f32 %v2750, %v2756
    %v2758 = vadd.f32 %v2757, 0.18741608
    %v2759 = vmul.f32 %v2750, %v2758
    %v2760 = vadd.f32 %v2759, 1.1283791
    %v2761 = vmul.f32 %v2233, %v2760
    %v2762 = vmul.f32 %v2750, 3.8918573e-05
    %v2763 = vadd.f32 %v2762, 0.001143296
    %v2764 = vmul.f32 %v2750, %v2763
    %v2765 = vadd.f32 %v2764, 0.014752088
    %v2766 = vmul.f32 %v2750, %v2765
    %v2767 = vadd.f32 %v2766, 0.112945676
    %v2768 = vmul.f32 %v2750, %v2767
    %v2769 = vadd.f32 %v2768, 0.4994258
    %v2770 = vmul.f32 %v2750, %v2769
    %v2771 = vadd.f32 %v2770, 1.0
    %v2772 = vrcp.pop %v2771
    %v2773 = vmul.f32 %v2771, %v2772
    %v2774 = vsub.f32 1.0, %v2773
    %v2775 = vmul.f32 %v2772, %v2774
    %v2776 = vadd.f32 %v2772, %v2775
    %vm2777 = vweird.f32 %v2771
    %vm2778 = vweird.f32 %v2772
    %vm2779 = vmor %vm2777, %vm2778
    %v2780 = vsel %vm2779, %v2772, %v2776
    %v2781 = vand.u32 2147483647, %v2771
    %vm2782 = vcmp.eq.f32.partialorder %v2781, 8.507059e+37
    %v2783 = vand.u32 %v2771, 2147483648
    %v2784 = vor.u32 1.1754944e-38, %v2783
    %v2785 = vsel %vm2782, %v2784, %v2780
    %v2786 = vmul.f32 %v2761, %v2785
    %v2787 = vmin.f32 %v2786, 1.0
    %v2788 = vmax.f32 %v2787, -1.0
    %v2789 = vmul.f32 %v2234, %v2234
    %v2790 = vmin.f32 16.0, %v2789
    %v2791 = vmul.f32 %v2790, 2.1237322e-06
    %v2792 = vadd.f32 %v2791, 0.00028619796
    %v2793 = vmul.f32 %v2790, %v2792
    %v2794 = vadd.f32 %v2793, 0.0036580483
    %v2795 = vmul.f32 %v2790, %v2794
    %v2796 = vadd.f32 %v2795, 0.05243302
    %v2797 = vmul.f32 %v2790, %v2796
    %v2798 = vadd.f32 %v2797, 0.18741608
    %v2799 = vmul.f32 %v2790, %v2798
    %v2800 = vadd.f32 %v2799, 1.1283791
    %v2801 = vmul.f32 %v2234, %v2800
    %v2802 = vmul.f32 %v2790, 3.8918573e-05
    %v2803 = vadd.f32 %v2802, 0.001143296
    %v2804 = vmul.f32 %v2790, %v2803
    %v2805 = vadd.f32 %v2804, 0.014752088
    %v2806 = vmul.f32 %v2790, %v2805
    %v2807 = vadd.f32 %v2806, 0.112945676
    %v2808 = vmul.f32 %v2790, %v2807
    %v2809 = vadd.f32 %v2808, 0.4994258
    %v2810 = vmul.f32 %v2790, %v2809
    %v2811 = vadd.f32 %v2810, 1.0
    %v2812 = vrcp.pop %v2811
    %v2813 = vmul.f32 %v2811, %v2812
    %v2814 = vsub.f32 1.0, %v2813
    %v2815 = vmul.f32 %v2812, %v2814
    %v2816 = vadd.f32 %v2812, %v2815
    %vm2817 = vweird.f32 %v2811
    %vm2818 = vweird.f32 %v2812
    %vm2819 = vmor %vm2817, %vm2818
    %v2820 = vsel %vm2819, %v2812, %v2816
    %v2821 = vand.u32 2147483647, %v2811
    %vm2822 = vcmp.eq.f32.partialorder %v2821, 8.507059e+37
    %v2823 = vand.u32 %v2811, 2147483648
    %v2824 = vor.u32 1.1754944e-38, %v2823
    %v2825 = vsel %vm2822, %v2824, %v2820
    %v2826 = vmul.f32 %v2801, %v2825
    %v2827 = vmin.f32 %v2826, 1.0
    %v2828 = vmax.f32 %v2827, -1.0
    %v2829 = vmul.f32 %v2235, %v2235
    %v2830 = vmin.f32 16.0, %v2829
    %v2831 = vmul.f32 %v2830, 2.1237322e-06
    %v2832 = vadd.f32 %v2831, 0.00028619796
    %v2833 = vmul.f32 %v2830, %v2832
    %v2834 = vadd.f32 %v2833, 0.0036580483
    %v2835 = vmul.f32 %v2830, %v2834
    %v2836 = vadd.f32 %v2835, 0.05243302
    %v2837 = vmul.f32 %v2830, %v2836
    %v2838 = vadd.f32 %v2837, 0.18741608
    %v2839 = vmul.f32 %v2830, %v2838
    %v2840 = vadd.f32 %v2839, 1.1283791
    %v2841 = vmul.f32 %v2235, %v2840
    %v2842 = vmul.f32 %v2830, 3.8918573e-05
    %v2843 = vadd.f32 %v2842, 0.001143296
    %v2844 = vmul.f32 %v2830, %v2843
    %v2845 = vadd.f32 %v2844, 0.014752088
    %v2846 = vmul.f32 %v2830, %v2845
    %v2847 = vadd.f32 %v2846, 0.112945676
    %v2848 = vmul.f32 %v2830, %v2847
    %v2849 = vadd.f32 %v2848, 0.4994258
    %v2850 = vmul.f32 %v2830, %v2849
    %v2851 = vadd.f32 %v2850, 1.0
    %v2852 = vrcp.pop %v2851
    %v2853 = vmul.f32 %v2851, %v2852
    %v2854 = vsub.f32 1.0, %v2853
    %v2855 = vmul.f32 %v2852, %v2854
    %v2856 = vadd.f32 %v2852, %v2855
    %vm2857 = vweird.f32 %v2851
    %vm2858 = vweird.f32 %v2852
    %vm2859 = vmor %vm2857, %vm2858
    %v2860 = vsel %vm2859, %v2852, %v2856
    %v2861 = vand.u32 2147483647, %v2851
    %vm2862 = vcmp.eq.f32.partialorder %v2861, 8.507059e+37
    %v2863 = vand.u32 %v2851, 2147483648
    %v2864 = vor.u32 1.1754944e-38, %v2863
    %v2865 = vsel %vm2862, %v2864, %v2860
    %v2866 = vmul.f32 %v2841, %v2865
    %v2867 = vmin.f32 %v2866, 1.0
    %v2868 = vmax.f32 %v2867, -1.0
    %v2869 = vmul.f32 %v2236, %v2236
    %v2870 = vmin.f32 16.0, %v2869
    %v2871 = vmul.f32 %v2870, 2.1237322e-06
    %v2872 = vadd.f32 %v2871, 0.00028619796
    %v2873 = vmul.f32 %v2870, %v2872
    %v2874 = vadd.f32 %v2873, 0.0036580483
    %v2875 = vmul.f32 %v2870, %v2874
    %v2876 = vadd.f32 %v2875, 0.05243302
    %v2877 = vmul.f32 %v2870, %v2876
    %v2878 = vadd.f32 %v2877, 0.18741608
    %v2879 = vmul.f32 %v2870, %v2878
    %v2880 = vadd.f32 %v2879, 1.1283791
    %v2881 = vmul.f32 %v2236, %v2880
    %v2882 = vmul.f32 %v2870, 3.8918573e-05
    %v2883 = vadd.f32 %v2882, 0.001143296
    %v2884 = vmul.f32 %v2870, %v2883
    %v2885 = vadd.f32 %v2884, 0.014752088
    %v2886 = vmul.f32 %v2870, %v2885
    %v2887 = vadd.f32 %v2886, 0.112945676
    %v2888 = vmul.f32 %v2870, %v2887
    %v2889 = vadd.f32 %v2888, 0.4994258
    %v2890 = vmul.f32 %v2870, %v2889
    %v2891 = vadd.f32 %v2890, 1.0
    %v2892 = vrcp.pop %v2891
    %v2893 = vmul.f32 %v2891, %v2892
    %v2894 = vsub.f32 1.0, %v2893
    %v2895 = vmul.f32 %v2892, %v2894
    %v2896 = vadd.f32 %v2892, %v2895
    %vm2897 = vweird.f32 %v2891
    %vm2898 = vweird.f32 %v2892
    %vm2899 = vmor %vm2897, %vm2898
    %v2900 = vsel %vm2899, %v2892, %v2896
    %v2901 = vand.u32 2147483647, %v2891
    %vm2902 = vcmp.eq.f32.partialorder %v2901, 8.507059e+37
    %v2903 = vand.u32 %v2891, 2147483648
    %v2904 = vor.u32 1.1754944e-38, %v2903
    %v2905 = vsel %vm2902, %v2904, %v2900
    %v2906 = vmul.f32 %v2881, %v2905
    %v2907 = vmin.f32 %v2906, 1.0
    %v2908 = vmax.f32 %v2907, -1.0
    %v2909 = vmul.f32 %v2237, %v2237
    %v2910 = vmin.f32 16.0, %v2909
    %v2911 = vmul.f32 %v2910, 2.1237322e-06
    %v2912 = vadd.f32 %v2911, 0.00028619796
    %v2913 = vmul.f32 %v2910, %v2912
    %v2914 = vadd.f32 %v2913, 0.0036580483
    %v2915 = vmul.f32 %v2910, %v2914
    %v2916 = vadd.f32 %v2915, 0.05243302
    %v2917 = vmul.f32 %v2910, %v2916
    %v2918 = vadd.f32 %v2917, 0.18741608
    %v2919 = vmul.f32 %v2910, %v2918
    %v2920 = vadd.f32 %v2919, 1.1283791
    %v2921 = vmul.f32 %v2237, %v2920
    %v2922 = vmul.f32 %v2910, 3.8918573e-05
    %v2923 = vadd.f32 %v2922, 0.001143296
    %v2924 = vmul.f32 %v2910, %v2923
    %v2925 = vadd.f32 %v2924, 0.014752088
    %v2926 = vmul.f32 %v2910, %v2925
    %v2927 = vadd.f32 %v2926, 0.112945676
    %v2928 = vmul.f32 %v2910, %v2927
    %v2929 = vadd.f32 %v2928, 0.4994258
    %v2930 = vmul.f32 %v2910, %v2929
    %v2931 = vadd.f32 %v2930, 1.0
    %v2932 = vrcp.pop %v2931
    %v2933 = vmul.f32 %v2931, %v2932
    %v2934 = vsub.f32 1.0, %v2933
    %v2935 = vmul.f32 %v2932, %v2934
    %v2936 = vadd.f32 %v2932, %v2935
    %vm2937 = vweird.f32 %v2931
    %vm2938 = vweird.f32 %v2932
    %vm2939 = vmor %vm2937, %vm2938
    %v2940 = vsel %vm2939, %v2932, %v2936
    %v2941 = vand.u32 2147483647, %v2931
    %vm2942 = vcmp.eq.f32.partialorder %v2941, 8.507059e+37
    %v2943 = vand.u32 %v2931, 2147483648
    %v2944 = vor.u32 1.1754944e-38, %v2943
    %v2945 = vsel %vm2942, %v2944, %v2940
    %v2946 = vmul.f32 %v2921, %v2945
    %v2947 = vmin.f32 %v2946, 1.0
    %v2948 = vmax.f32 %v2947, -1.0
    %v2949 = vmul.f32 %v2238, %v2238
    %v2950 = vmin.f32 16.0, %v2949
    %v2951 = vmul.f32 %v2950, 2.1237322e-06
    %v2952 = vadd.f32 %v2951, 0.00028619796
    %v2953 = vmul.f32 %v2950, %v2952
    %v2954 = vadd.f32 %v2953, 0.0036580483
    %v2955 = vmul.f32 %v2950, %v2954
    %v2956 = vadd.f32 %v2955, 0.05243302
    %v2957 = vmul.f32 %v2950, %v2956
    %v2958 = vadd.f32 %v2957, 0.18741608
    %v2959 = vmul.f32 %v2950, %v2958
    %v2960 = vadd.f32 %v2959, 1.1283791
    %v2961 = vmul.f32 %v2238, %v2960
    %v2962 = vmul.f32 %v2950, 3.8918573e-05
    %v2963 = vadd.f32 %v2962, 0.001143296
    %v2964 = vmul.f32 %v2950, %v2963
    %v2965 = vadd.f32 %v2964, 0.014752088
    %v2966 = vmul.f32 %v2950, %v2965
    %v2967 = vadd.f32 %v2966, 0.112945676
    %v2968 = vmul.f32 %v2950, %v2967
    %v2969 = vadd.f32 %v2968, 0.4994258
    %v2970 = vmul.f32 %v2950, %v2969
    %v2971 = vadd.f32 %v2970, 1.0
    %v2972 = vrcp.pop %v2971
    %v2973 = vmul.f32 %v2971, %v2972
    %v2974 = vsub.f32 1.0, %v2973
    %v2975 = vmul.f32 %v2972, %v2974
    %v2976 = vadd.f32 %v2972, %v2975
    %vm2977 = vweird.f32 %v2971
    %vm2978 = vweird.f32 %v2972
    %vm2979 = vmor %vm2977, %vm2978
    %v2980 = vsel %vm2979, %v2972, %v2976
    %v2981 = vand.u32 2147483647, %v2971
    %vm2982 = vcmp.eq.f32.partialorder %v2981, 8.507059e+37
    %v2983 = vand.u32 %v2971, 2147483648
    %v2984 = vor.u32 1.1754944e-38, %v2983
    %v2985 = vsel %vm2982, %v2984, %v2980
    %v2986 = vmul.f32 %v2961, %v2985
    %v2987 = vmin.f32 %v2986, 1.0
    %v2988 = vmax.f32 %v2987, -1.0
    %v2989 = vmul.f32 %v2239, %v2239
    %v2990 = vmin.f32 16.0, %v2989
    %v2991 = vmul.f32 %v2990, 2.1237322e-06
    %v2992 = vadd.f32 %v2991, 0.00028619796
    %v2993 = vmul.f32 %v2990, %v2992
    %v2994 = vadd.f32 %v2993, 0.0036580483
    %v2995 = vmul.f32 %v2990, %v2994
    %v2996 = vadd.f32 %v2995, 0.05243302
    %v2997 = vmul.f32 %v2990, %v2996
    %v2998 = vadd.f32 %v2997, 0.18741608
    %v2999 = vmul.f32 %v2990, %v2998
    %v3000 = vadd.f32 %v2999, 1.1283791
    %v3001 = vmul.f32 %v2239, %v3000
    %v3002 = vmul.f32 %v2990, 3.8918573e-05
    %v3003 = vadd.f32 %v3002, 0.001143296
    %v3004 = vmul.f32 %v2990, %v3003
    %v3005 = vadd.f32 %v3004, 0.014752088
    %v3006 = vmul.f32 %v2990, %v3005
    %v3007 = vadd.f32 %v3006, 0.112945676
    %v3008 = vmul.f32 %v2990, %v3007
    %v3009 = vadd.f32 %v3008, 0.4994258
    %v3010 = vmul.f32 %v2990, %v3009
    %v3011 = vadd.f32 %v3010, 1.0
    %v3012 = vrcp.pop %v3011
    %v3013 = vmul.f32 %v3011, %v3012
    %v3014 = vsub.f32 1.0, %v3013
    %v3015 = vmul.f32 %v3012, %v3014
    %v3016 = vadd.f32 %v3012, %v3015
    %vm3017 = vweird.f32 %v3011
    %vm3018 = vweird.f32 %v3012
    %vm3019 = vmor %vm3017, %vm3018
    %v3020 = vsel %vm3019, %v3012, %v3016
    %v3021 = vand.u32 2147483647, %v3011
    %vm3022 = vcmp.eq.f32.partialorder %v3021, 8.507059e+37
    %v3023 = vand.u32 %v3011, 2147483648
    %v3024 = vor.u32 1.1754944e-38, %v3023
    %v3025 = vsel %vm3022, %v3024, %v3020
    %v3026 = vmul.f32 %v3001, %v3025
    %v3027 = vmin.f32 %v3026, 1.0
    %v3028 = vmax.f32 %v3027, -1.0
    %v3029 = vmul.f32 %v2240, %v2240
    %v3030 = vmin.f32 16.0, %v3029
    %v3031 = vmul.f32 %v3030, 2.1237322e-06
    %v3032 = vadd.f32 %v3031, 0.00028619796
    %v3033 = vmul.f32 %v3030, %v3032
    %v3034 = vadd.f32 %v3033, 0.0036580483
    %v3035 = vmul.f32 %v3030, %v3034
    %v3036 = vadd.f32 %v3035, 0.05243302
    %v3037 = vmul.f32 %v3030, %v3036
    %v3038 = vadd.f32 %v3037, 0.18741608
    %v3039 = vmul.f32 %v3030, %v3038
    %v3040 = vadd.f32 %v3039, 1.1283791
    %v3041 = vmul.f32 %v2240, %v3040
    %v3042 = vmul.f32 %v3030, 3.8918573e-05
    %v3043 = vadd.f32 %v3042, 0.001143296
    %v3044 = vmul.f32 %v3030, %v3043
    %v3045 = vadd.f32 %v3044, 0.014752088
    %v3046 = vmul.f32 %v3030, %v3045
    %v3047 = vadd.f32 %v3046, 0.112945676
    %v3048 = vmul.f32 %v3030, %v3047
    %v3049 = vadd.f32 %v3048, 0.4994258
    %v3050 = vmul.f32 %v3030, %v3049
    %v3051 = vadd.f32 %v3050, 1.0
    %v3052 = vrcp.pop %v3051
    %v3053 = vmul.f32 %v3051, %v3052
    %v3054 = vsub.f32 1.0, %v3053
    %v3055 = vmul.f32 %v3052, %v3054
    %v3056 = vadd.f32 %v3052, %v3055
    %vm3057 = vweird.f32 %v3051
    %vm3058 = vweird.f32 %v3052
    %vm3059 = vmor %vm3057, %vm3058
    %v3060 = vsel %vm3059, %v3052, %v3056
    %v3061 = vand.u32 2147483647, %v3051
    %vm3062 = vcmp.eq.f32.partialorder %v3061, 8.507059e+37
    %v3063 = vand.u32 %v3051, 2147483648
    %v3064 = vor.u32 1.1754944e-38, %v3063
    %v3065 = vsel %vm3062, %v3064, %v3060
    %v3066 = vmul.f32 %v3041, %v3065
    %v3067 = vmin.f32 %v3066, 1.0
    %v3068 = vmax.f32 %v3067, -1.0
    %v3069 = vmul.f32 %v2241, %v2241
    %v3070 = vmin.f32 16.0, %v3069
    %v3071 = vmul.f32 %v3070, 2.1237322e-06
    %v3072 = vadd.f32 %v3071, 0.00028619796
    %v3073 = vmul.f32 %v3070, %v3072
    %v3074 = vadd.f32 %v3073, 0.0036580483
    %v3075 = vmul.f32 %v3070, %v3074
    %v3076 = vadd.f32 %v3075, 0.05243302
    %v3077 = vmul.f32 %v3070, %v3076
    %v3078 = vadd.f32 %v3077, 0.18741608
    %v3079 = vmul.f32 %v3070, %v3078
    %v3080 = vadd.f32 %v3079, 1.1283791
    %v3081 = vmul.f32 %v2241, %v3080
    %v3082 = vmul.f32 %v3070, 3.8918573e-05
    %v3083 = vadd.f32 %v3082, 0.001143296
    %v3084 = vmul.f32 %v3070, %v3083
    %v3085 = vadd.f32 %v3084, 0.014752088
    %v3086 = vmul.f32 %v3070, %v3085
    %v3087 = vadd.f32 %v3086, 0.112945676
    %v3088 = vmul.f32 %v3070, %v3087
    %v3089 = vadd.f32 %v3088, 0.4994258
    %v3090 = vmul.f32 %v3070, %v3089
    %v3091 = vadd.f32 %v3090, 1.0
    %v3092 = vrcp.pop %v3091
    %v3093 = vmul.f32 %v3091, %v3092
    %v3094 = vsub.f32 1.0, %v3093
    %v3095 = vmul.f32 %v3092, %v3094
    %v3096 = vadd.f32 %v3092, %v3095
    %vm3097 = vweird.f32 %v3091
    %vm3098 = vweird.f32 %v3092
    %vm3099 = vmor %vm3097, %vm3098
    %v3100 = vsel %vm3099, %v3092, %v3096
    %v3101 = vand.u32 2147483647, %v3091
    %vm3102 = vcmp.eq.f32.partialorder %v3101, 8.507059e+37
    %v3103 = vand.u32 %v3091, 2147483648
    %v3104 = vor.u32 1.1754944e-38, %v3103
    %v3105 = vsel %vm3102, %v3104, %v3100
    %v3106 = vmul.f32 %v3081, %v3105
    %v3107 = vmin.f32 %v3106, 1.0
    %v3108 = vmax.f32 %v3107, -1.0
    %v3109 = vmul.f32 %v2242, %v2242
    %v3110 = vmin.f32 16.0, %v3109
    %v3111 = vmul.f32 %v3110, 2.1237322e-06
    %v3112 = vadd.f32 %v3111, 0.00028619796
    %v3113 = vmul.f32 %v3110, %v3112
    %v3114 = vadd.f32 %v3113, 0.0036580483
    %v3115 = vmul.f32 %v3110, %v3114
    %v3116 = vadd.f32 %v3115, 0.05243302
    %v3117 = vmul.f32 %v3110, %v3116
    %v3118 = vadd.f32 %v3117, 0.18741608
    %v3119 = vmul.f32 %v3110, %v3118
    %v3120 = vadd.f32 %v3119, 1.1283791
    %v3121 = vmul.f32 %v2242, %v3120
    %v3122 = vmul.f32 %v3110, 3.8918573e-05
    %v3123 = vadd.f32 %v3122, 0.001143296
    %v3124 = vmul.f32 %v3110, %v3123
    %v3125 = vadd.f32 %v3124, 0.014752088
    %v3126 = vmul.f32 %v3110, %v3125
    %v3127 = vadd.f32 %v3126, 0.112945676
    %v3128 = vmul.f32 %v3110, %v3127
    %v3129 = vadd.f32 %v3128, 0.4994258
    %v3130 = vmul.f32 %v3110, %v3129
    %v3131 = vadd.f32 %v3130, 1.0
    %v3132 = vrcp.pop %v3131
    %v3133 = vmul.f32 %v3131, %v3132
    %v3134 = vsub.f32 1.0, %v3133
    %v3135 = vmul.f32 %v3132, %v3134
    %v3136 = vadd.f32 %v3132, %v3135
    %vm3137 = vweird.f32 %v3131
    %vm3138 = vweird.f32 %v3132
    %vm3139 = vmor %vm3137, %vm3138
    %v3140 = vsel %vm3139, %v3132, %v3136
    %v3141 = vand.u32 2147483647, %v3131
    %vm3142 = vcmp.eq.f32.partialorder %v3141, 8.507059e+37
    %v3143 = vand.u32 %v3131, 2147483648
    %v3144 = vor.u32 1.1754944e-38, %v3143
    %v3145 = vsel %vm3142, %v3144, %v3140
    %v3146 = vmul.f32 %v3121, %v3145
    %v3147 = vmin.f32 %v3146, 1.0
    %v3148 = vmax.f32 %v3147, -1.0
    %v3149 = vmul.f32 %v2243, %v2243
    %v3150 = vmin.f32 16.0, %v3149
    %v3151 = vmul.f32 %v3150, 2.1237322e-06
    %v3152 = vadd.f32 %v3151, 0.00028619796
    %v3153 = vmul.f32 %v3150, %v3152
    %v3154 = vadd.f32 %v3153, 0.0036580483
    %v3155 = vmul.f32 %v3150, %v3154
    %v3156 = vadd.f32 %v3155, 0.05243302
    %v3157 = vmul.f32 %v3150, %v3156
    %v3158 = vadd.f32 %v3157, 0.18741608
    %v3159 = vmul.f32 %v3150, %v3158
    %v3160 = vadd.f32 %v3159, 1.1283791
    %v3161 = vmul.f32 %v2243, %v3160
    %v3162 = vmul.f32 %v3150, 3.8918573e-05
    %v3163 = vadd.f32 %v3162, 0.001143296
    %v3164 = vmul.f32 %v3150, %v3163
    %v3165 = vadd.f32 %v3164, 0.014752088
    %v3166 = vmul.f32 %v3150, %v3165
    %v3167 = vadd.f32 %v3166, 0.112945676
    %v3168 = vmul.f32 %v3150, %v3167
    %v3169 = vadd.f32 %v3168, 0.4994258
    %v3170 = vmul.f32 %v3150, %v3169
    %v3171 = vadd.f32 %v3170, 1.0
    %v3172 = vrcp.pop %v3171
    %v3173 = vmul.f32 %v3171, %v3172
    %v3174 = vsub.f32 1.0, %v3173
    %v3175 = vmul.f32 %v3172, %v3174
    %v3176 = vadd.f32 %v3172, %v3175
    %vm3177 = vweird.f32 %v3171
    %vm3178 = vweird.f32 %v3172
    %vm3179 = vmor %vm3177, %vm3178
    %v3180 = vsel %vm3179, %v3172, %v3176
    %v3181 = vand.u32 2147483647, %v3171
    %vm3182 = vcmp.eq.f32.partialorder %v3181, 8.507059e+37
    %v3183 = vand.u32 %v3171, 2147483648
    %v3184 = vor.u32 1.1754944e-38, %v3183
    %v3185 = vsel %vm3182, %v3184, %v3180
    %v3186 = vmul.f32 %v3161, %v3185
    %v3187 = vmin.f32 %v3186, 1.0
    %v3188 = vmax.f32 %v3187, -1.0
    %v3189 = vmul.f32 %v2244, %v2244
    %v3190 = vmin.f32 16.0, %v3189
    %v3191 = vmul.f32 %v3190, 2.1237322e-06
    %v3192 = vadd.f32 %v3191, 0.00028619796
    %v3193 = vmul.f32 %v3190, %v3192
    %v3194 = vadd.f32 %v3193, 0.0036580483
    %v3195 = vmul.f32 %v3190, %v3194
    %v3196 = vadd.f32 %v3195, 0.05243302
    %v3197 = vmul.f32 %v3190, %v3196
    %v3198 = vadd.f32 %v3197, 0.18741608
    %v3199 = vmul.f32 %v3190, %v3198
    %v3200 = vadd.f32 %v3199, 1.1283791
    %v3201 = vmul.f32 %v2244, %v3200
    %v3202 = vmul.f32 %v3190, 3.8918573e-05
    %v3203 = vadd.f32 %v3202, 0.001143296
    %v3204 = vmul.f32 %v3190, %v3203
    %v3205 = vadd.f32 %v3204, 0.014752088
    %v3206 = vmul.f32 %v3190, %v3205
    %v3207 = vadd.f32 %v3206, 0.112945676
    %v3208 = vmul.f32 %v3190, %v3207
    %v3209 = vadd.f32 %v3208, 0.4994258
    %v3210 = vmul.f32 %v3190, %v3209
    %v3211 = vadd.f32 %v3210, 1.0
    %v3212 = vrcp.pop %v3211
    %v3213 = vmul.f32 %v3211, %v3212
    %v3214 = vsub.f32 1.0, %v3213
    %v3215 = vmul.f32 %v3212, %v3214
    %v3216 = vadd.f32 %v3212, %v3215
    %vm3217 = vweird.f32 %v3211
    %vm3218 = vweird.f32 %v3212
    %vm3219 = vmor %vm3217, %vm3218
    %v3220 = vsel %vm3219, %v3212, %v3216
    %v3221 = vand.u32 2147483647, %v3211
    %vm3222 = vcmp.eq.f32.partialorder %v3221, 8.507059e+37
    %v3223 = vand.u32 %v3211, 2147483648
    %v3224 = vor.u32 1.1754944e-38, %v3223
    %v3225 = vsel %vm3222, %v3224, %v3220
    %v3226 = vmul.f32 %v3201, %v3225
    %v3227 = vmin.f32 %v3226, 1.0
    %v3228 = vmax.f32 %v3227, -1.0
    %v3229 = vmul.f32 %v2245, %v2245
    %v3230 = vmin.f32 16.0, %v3229
    %v3231 = vmul.f32 %v3230, 2.1237322e-06
    %v3232 = vadd.f32 %v3231, 0.00028619796
    %v3233 = vmul.f32 %v3230, %v3232
    %v3234 = vadd.f32 %v3233, 0.0036580483
    %v3235 = vmul.f32 %v3230, %v3234
    %v3236 = vadd.f32 %v3235, 0.05243302
    %v3237 = vmul.f32 %v3230, %v3236
    %v3238 = vadd.f32 %v3237, 0.18741608
    %v3239 = vmul.f32 %v3230, %v3238
    %v3240 = vadd.f32 %v3239, 1.1283791
    %v3241 = vmul.f32 %v2245, %v3240
    %v3242 = vmul.f32 %v3230, 3.8918573e-05
    %v3243 = vadd.f32 %v3242, 0.001143296
    %v3244 = vmul.f32 %v3230, %v3243
    %v3245 = vadd.f32 %v3244, 0.014752088
    %v3246 = vmul.f32 %v3230, %v3245
    %v3247 = vadd.f32 %v3246, 0.112945676
    %v3248 = vmul.f32 %v3230, %v3247
    %v3249 = vadd.f32 %v3248, 0.4994258
    %v3250 = vmul.f32 %v3230, %v3249
    %v3251 = vadd.f32 %v3250, 1.0
    %v3252 = vrcp.pop %v3251
    %v3253 = vmul.f32 %v3251, %v3252
    %v3254 = vsub.f32 1.0, %v3253
    %v3255 = vmul.f32 %v3252, %v3254
    %v3256 = vadd.f32 %v3252, %v3255
    %vm3257 = vweird.f32 %v3251
    %vm3258 = vweird.f32 %v3252
    %vm3259 = vmor %vm3257, %vm3258
    %v3260 = vsel %vm3259, %v3252, %v3256
    %v3261 = vand.u32 2147483647, %v3251
    %vm3262 = vcmp.eq.f32.partialorder %v3261, 8.507059e+37
    %v3263 = vand.u32 %v3251, 2147483648
    %v3264 = vor.u32 1.1754944e-38, %v3263
    %v3265 = vsel %vm3262, %v3264, %v3260
    %v3266 = vmul.f32 %v3241, %v3265
    %v3267 = vmin.f32 %v3266, 1.0
    %v3268 = vmax.f32 %v3267, -1.0
    %v3269 = vmul.f32 %v2246, %v2246
    %v3270 = vmin.f32 16.0, %v3269
    %v3271 = vmul.f32 %v3270, 2.1237322e-06
    %v3272 = vadd.f32 %v3271, 0.00028619796
    %v3273 = vmul.f32 %v3270, %v3272
    %v3274 = vadd.f32 %v3273, 0.0036580483
    %v3275 = vmul.f32 %v3270, %v3274
    %v3276 = vadd.f32 %v3275, 0.05243302
    %v3277 = vmul.f32 %v3270, %v3276
    %v3278 = vadd.f32 %v3277, 0.18741608
    %v3279 = vmul.f32 %v3270, %v3278
    %v3280 = vadd.f32 %v3279, 1.1283791
    %v3281 = vmul.f32 %v2246, %v3280
    %v3282 = vmul.f32 %v3270, 3.8918573e-05
    %v3283 = vadd.f32 %v3282, 0.001143296
    %v3284 = vmul.f32 %v3270, %v3283
    %v3285 = vadd.f32 %v3284, 0.014752088
    %v3286 = vmul.f32 %v3270, %v3285
    %v3287 = vadd.f32 %v3286, 0.112945676
    %v3288 = vmul.f32 %v3270, %v3287
    %v3289 = vadd.f32 %v3288, 0.4994258
    %v3290 = vmul.f32 %v3270, %v3289
    %v3291 = vadd.f32 %v3290, 1.0
    %v3292 = vrcp.pop %v3291
    %v3293 = vmul.f32 %v3291, %v3292
    %v3294 = vsub.f32 1.0, %v3293
    %v3295 = vmul.f32 %v3292, %v3294
    %v3296 = vadd.f32 %v3292, %v3295
    %vm3297 = vweird.f32 %v3291
    %vm3298 = vweird.f32 %v3292
    %vm3299 = vmor %vm3297, %vm3298
    %v3300 = vsel %vm3299, %v3292, %v3296
    %v3301 = vand.u32 2147483647, %v3291
    %vm3302 = vcmp.eq.f32.partialorder %v3301, 8.507059e+37
    %v3303 = vand.u32 %v3291, 2147483648
    %v3304 = vor.u32 1.1754944e-38, %v3303
    %v3305 = vsel %vm3302, %v3304, %v3300
    %v3306 = vmul.f32 %v3281, %v3305
    %v3307 = vmin.f32 %v3306, 1.0
    %v3308 = vmax.f32 %v3307, -1.0
    %v3309 = vmul.f32 %v2247, %v2247
    %v3310 = vmin.f32 16.0, %v3309
    %v3311 = vmul.f32 %v3310, 2.1237322e-06
    %v3312 = vadd.f32 %v3311, 0.00028619796
    %v3313 = vmul.f32 %v3310, %v3312
    %v3314 = vadd.f32 %v3313, 0.0036580483
    %v3315 = vmul.f32 %v3310, %v3314
    %v3316 = vadd.f32 %v3315, 0.05243302
    %v3317 = vmul.f32 %v3310, %v3316
    %v3318 = vadd.f32 %v3317, 0.18741608
    %v3319 = vmul.f32 %v3310, %v3318
    %v3320 = vadd.f32 %v3319, 1.1283791
    %v3321 = vmul.f32 %v2247, %v3320
    %v3322 = vmul.f32 %v3310, 3.8918573e-05
    %v3323 = vadd.f32 %v3322, 0.001143296
    %v3324 = vmul.f32 %v3310, %v3323
    %v3325 = vadd.f32 %v3324, 0.014752088
    %v3326 = vmul.f32 %v3310, %v3325
    %v3327 = vadd.f32 %v3326, 0.112945676
    %v3328 = vmul.f32 %v3310, %v3327
    %v3329 = vadd.f32 %v3328, 0.4994258
    %v3330 = vmul.f32 %v3310, %v3329
    %v3331 = vadd.f32 %v3330, 1.0
    %v3332 = vrcp.pop %v3331
    %v3333 = vmul.f32 %v3331, %v3332
    %v3334 = vsub.f32 1.0, %v3333
    %v3335 = vmul.f32 %v3332, %v3334
    %v3336 = vadd.f32 %v3332, %v3335
    %vm3337 = vweird.f32 %v3331
    %vm3338 = vweird.f32 %v3332
    %vm3339 = vmor %vm3337, %vm3338
    %v3340 = vsel %vm3339, %v3332, %v3336
    %v3341 = vand.u32 2147483647, %v3331
    %vm3342 = vcmp.eq.f32.partialorder %v3341, 8.507059e+37
    %v3343 = vand.u32 %v3331, 2147483648
    %v3344 = vor.u32 1.1754944e-38, %v3343
    %v3345 = vsel %vm3342, %v3344, %v3340
    %v3346 = vmul.f32 %v3321, %v3345
    %v3347 = vmin.f32 %v3346, 1.0
    %v3348 = vmax.f32 %v3347, -1.0
    %v3349 = vmul.f32 %v2248, %v2248
    %v3350 = vmin.f32 16.0, %v3349
    %v3351 = vmul.f32 %v3350, 2.1237322e-06
    %v3352 = vadd.f32 %v3351, 0.00028619796
    %v3353 = vmul.f32 %v3350, %v3352
    %v3354 = vadd.f32 %v3353, 0.0036580483
    %v3355 = vmul.f32 %v3350, %v3354
    %v3356 = vadd.f32 %v3355, 0.05243302
    %v3357 = vmul.f32 %v3350, %v3356
    %v3358 = vadd.f32 %v3357, 0.18741608
    %v3359 = vmul.f32 %v3350, %v3358
    %v3360 = vadd.f32 %v3359, 1.1283791
    %v3361 = vmul.f32 %v2248, %v3360
    %v3362 = vmul.f32 %v3350, 3.8918573e-05
    %v3363 = vadd.f32 %v3362, 0.001143296
    %v3364 = vmul.f32 %v3350, %v3363
    %v3365 = vadd.f32 %v3364, 0.014752088
    %v3366 = vmul.f32 %v3350, %v3365
    %v3367 = vadd.f32 %v3366, 0.112945676
    %v3368 = vmul.f32 %v3350, %v3367
    %v3369 = vadd.f32 %v3368, 0.4994258
    %v3370 = vmul.f32 %v3350, %v3369
    %v3371 = vadd.f32 %v3370, 1.0
    %v3372 = vrcp.pop %v3371
    %v3373 = vmul.f32 %v3371, %v3372
    %v3374 = vsub.f32 1.0, %v3373
    %v3375 = vmul.f32 %v3372, %v3374
    %v3376 = vadd.f32 %v3372, %v3375
    %vm3377 = vweird.f32 %v3371
    %vm3378 = vweird.f32 %v3372
    %vm3379 = vmor %vm3377, %vm3378
    %v3380 = vsel %vm3379, %v3372, %v3376
    %v3381 = vand.u32 2147483647, %v3371
    %vm3382 = vcmp.eq.f32.partialorder %v3381, 8.507059e+37
    %v3383 = vand.u32 %v3371, 2147483648
    %v3384 = vor.u32 1.1754944e-38, %v3383
    %v3385 = vsel %vm3382, %v3384, %v3380
    %v3386 = vmul.f32 %v3361, %v3385
    %v3387 = vmin.f32 %v3386, 1.0
    %v3388 = vmax.f32 %v3387, -1.0
    %v3389 = vmul.f32 %v2249, %v2249
    %v3390 = vmin.f32 16.0, %v3389
    %v3391 = vmul.f32 %v3390, 2.1237322e-06
    %v3392 = vadd.f32 %v3391, 0.00028619796
    %v3393 = vmul.f32 %v3390, %v3392
    %v3394 = vadd.f32 %v3393, 0.0036580483
    %v3395 = vmul.f32 %v3390, %v3394
    %v3396 = vadd.f32 %v3395, 0.05243302
    %v3397 = vmul.f32 %v3390, %v3396
    %v3398 = vadd.f32 %v3397, 0.18741608
    %v3399 = vmul.f32 %v3390, %v3398
    %v3400 = vadd.f32 %v3399, 1.1283791
    %v3401 = vmul.f32 %v2249, %v3400
    %v3402 = vmul.f32 %v3390, 3.8918573e-05
    %v3403 = vadd.f32 %v3402, 0.001143296
    %v3404 = vmul.f32 %v3390, %v3403
    %v3405 = vadd.f32 %v3404, 0.014752088
    %v3406 = vmul.f32 %v3390, %v3405
    %v3407 = vadd.f32 %v3406, 0.112945676
    %v3408 = vmul.f32 %v3390, %v3407
    %v3409 = vadd.f32 %v3408, 0.4994258
    %v3410 = vmul.f32 %v3390, %v3409
    %v3411 = vadd.f32 %v3410, 1.0
    %v3412 = vrcp.pop %v3411
    %v3413 = vmul.f32 %v3411, %v3412
    %v3414 = vsub.f32 1.0, %v3413
    %v3415 = vmul.f32 %v3412, %v3414
    %v3416 = vadd.f32 %v3412, %v3415
    %vm3417 = vweird.f32 %v3411
    %vm3418 = vweird.f32 %v3412
    %vm3419 = vmor %vm3417, %vm3418
    %v3420 = vsel %vm3419, %v3412, %v3416
    %v3421 = vand.u32 2147483647, %v3411
    %vm3422 = vcmp.eq.f32.partialorder %v3421, 8.507059e+37
    %v3423 = vand.u32 %v3411, 2147483648
    %v3424 = vor.u32 1.1754944e-38, %v3423
    %v3425 = vsel %vm3422, %v3424, %v3420
    %v3426 = vmul.f32 %v3401, %v3425
    %v3427 = vmin.f32 %v3426, 1.0
    %v3428 = vmax.f32 %v3427, -1.0
    %v3429 = vmul.f32 %v2250, %v2250
    %v3430 = vmin.f32 16.0, %v3429
    %v3431 = vmul.f32 %v3430, 2.1237322e-06
    %v3432 = vadd.f32 %v3431, 0.00028619796
    %v3433 = vmul.f32 %v3430, %v3432
    %v3434 = vadd.f32 %v3433, 0.0036580483
    %v3435 = vmul.f32 %v3430, %v3434
    %v3436 = vadd.f32 %v3435, 0.05243302
    %v3437 = vmul.f32 %v3430, %v3436
    %v3438 = vadd.f32 %v3437, 0.18741608
    %v3439 = vmul.f32 %v3430, %v3438
    %v3440 = vadd.f32 %v3439, 1.1283791
    %v3441 = vmul.f32 %v2250, %v3440
    %v3442 = vmul.f32 %v3430, 3.8918573e-05
    %v3443 = vadd.f32 %v3442, 0.001143296
    %v3444 = vmul.f32 %v3430, %v3443
    %v3445 = vadd.f32 %v3444, 0.014752088
    %v3446 = vmul.f32 %v3430, %v3445
    %v3447 = vadd.f32 %v3446, 0.112945676
    %v3448 = vmul.f32 %v3430, %v3447
    %v3449 = vadd.f32 %v3448, 0.4994258
    %v3450 = vmul.f32 %v3430, %v3449
    %v3451 = vadd.f32 %v3450, 1.0
    %v3452 = vrcp.pop %v3451
    %v3453 = vmul.f32 %v3451, %v3452
    %v3454 = vsub.f32 1.0, %v3453
    %v3455 = vmul.f32 %v3452, %v3454
    %v3456 = vadd.f32 %v3452, %v3455
    %vm3457 = vweird.f32 %v3451
    %vm3458 = vweird.f32 %v3452
    %vm3459 = vmor %vm3457, %vm3458
    %v3460 = vsel %vm3459, %v3452, %v3456
    %v3461 = vand.u32 2147483647, %v3451
    %vm3462 = vcmp.eq.f32.partialorder %v3461, 8.507059e+37
    %v3463 = vand.u32 %v3451, 2147483648
    %v3464 = vor.u32 1.1754944e-38, %v3463
    %v3465 = vsel %vm3462, %v3464, %v3460
    %v3466 = vmul.f32 %v3441, %v3465
    %v3467 = vmin.f32 %v3466, 1.0
    %v3468 = vmax.f32 %v3467, -1.0
    %v3469 = vmul.f32 %v2251, %v2251
    %v3470 = vmin.f32 16.0, %v3469
    %v3471 = vmul.f32 %v3470, 2.1237322e-06
    %v3472 = vadd.f32 %v3471, 0.00028619796
    %v3473 = vmul.f32 %v3470, %v3472
    %v3474 = vadd.f32 %v3473, 0.0036580483
    %v3475 = vmul.f32 %v3470, %v3474
    %v3476 = vadd.f32 %v3475, 0.05243302
    %v3477 = vmul.f32 %v3470, %v3476
    %v3478 = vadd.f32 %v3477, 0.18741608
    %v3479 = vmul.f32 %v3470, %v3478
    %v3480 = vadd.f32 %v3479, 1.1283791
    %v3481 = vmul.f32 %v2251, %v3480
    %v3482 = vmul.f32 %v3470, 3.8918573e-05
    %v3483 = vadd.f32 %v3482, 0.001143296
    %v3484 = vmul.f32 %v3470, %v3483
    %v3485 = vadd.f32 %v3484, 0.014752088
    %v3486 = vmul.f32 %v3470, %v3485
    %v3487 = vadd.f32 %v3486, 0.112945676
    %v3488 = vmul.f32 %v3470, %v3487
    %v3489 = vadd.f32 %v3488, 0.4994258
    %v3490 = vmul.f32 %v3470, %v3489
    %v3491 = vadd.f32 %v3490, 1.0
    %v3492 = vrcp.pop %v3491
    %v3493 = vmul.f32 %v3491, %v3492
    %v3494 = vsub.f32 1.0, %v3493
    %v3495 = vmul.f32 %v3492, %v3494
    %v3496 = vadd.f32 %v3492, %v3495
    %vm3497 = vweird.f32 %v3491
    %vm3498 = vweird.f32 %v3492
    %vm3499 = vmor %vm3497, %vm3498
    %v3500 = vsel %vm3499, %v3492, %v3496
    %v3501 = vand.u32 2147483647, %v3491
    %vm3502 = vcmp.eq.f32.partialorder %v3501, 8.507059e+37
    %v3503 = vand.u32 %v3491, 2147483648
    %v3504 = vor.u32 1.1754944e-38, %v3503
    %v3505 = vsel %vm3502, %v3504, %v3500
    %v3506 = vmul.f32 %v3481, %v3505
    %v3507 = vmin.f32 %v3506, 1.0
    %v3508 = vmax.f32 %v3507, -1.0
    %v3509 = vmul.f32 %v2252, %v2252
    %v3510 = vmin.f32 16.0, %v3509
    %v3511 = vmul.f32 %v3510, 2.1237322e-06
    %v3512 = vadd.f32 %v3511, 0.00028619796
    %v3513 = vmul.f32 %v3510, %v3512
    %v3514 = vadd.f32 %v3513, 0.0036580483
    %v3515 = vmul.f32 %v3510, %v3514
    %v3516 = vadd.f32 %v3515, 0.05243302
    %v3517 = vmul.f32 %v3510, %v3516
    %v3518 = vadd.f32 %v3517, 0.18741608
    %v3519 = vmul.f32 %v3510, %v3518
    %v3520 = vadd.f32 %v3519, 1.1283791
    %v3521 = vmul.f32 %v2252, %v3520
    %v3522 = vmul.f32 %v3510, 3.8918573e-05
    %v3523 = vadd.f32 %v3522, 0.001143296
    %v3524 = vmul.f32 %v3510, %v3523
    %v3525 = vadd.f32 %v3524, 0.014752088
    %v3526 = vmul.f32 %v3510, %v3525
    %v3527 = vadd.f32 %v3526, 0.112945676
    %v3528 = vmul.f32 %v3510, %v3527
    %v3529 = vadd.f32 %v3528, 0.4994258
    %v3530 = vmul.f32 %v3510, %v3529
    %v3531 = vadd.f32 %v3530, 1.0
    %v3532 = vrcp.pop %v3531
    %v3533 = vmul.f32 %v3531, %v3532
    %v3534 = vsub.f32 1.0, %v3533
    %v3535 = vmul.f32 %v3532, %v3534
    %v3536 = vadd.f32 %v3532, %v3535
    %vm3537 = vweird.f32 %v3531
    %vm3538 = vweird.f32 %v3532
    %vm3539 = vmor %vm3537, %vm3538
    %v3540 = vsel %vm3539, %v3532, %v3536
    %v3541 = vand.u32 2147483647, %v3531
    %vm3542 = vcmp.eq.f32.partialorder %v3541, 8.507059e+37
    %v3543 = vand.u32 %v3531, 2147483648
    %v3544 = vor.u32 1.1754944e-38, %v3543
    %v3545 = vsel %vm3542, %v3544, %v3540
    %v3546 = vmul.f32 %v3521, %v3545
    %v3547 = vmin.f32 %v3546, 1.0
    %v3548 = vmax.f32 %v3547, -1.0
    %v3549 = vmul.f32 %v2253, %v2253
    %v3550 = vmin.f32 16.0, %v3549
    %v3551 = vmul.f32 %v3550, 2.1237322e-06
    %v3552 = vadd.f32 %v3551, 0.00028619796
    %v3553 = vmul.f32 %v3550, %v3552
    %v3554 = vadd.f32 %v3553, 0.0036580483
    %v3555 = vmul.f32 %v3550, %v3554
    %v3556 = vadd.f32 %v3555, 0.05243302
    %v3557 = vmul.f32 %v3550, %v3556
    %v3558 = vadd.f32 %v3557, 0.18741608
    %v3559 = vmul.f32 %v3550, %v3558
    %v3560 = vadd.f32 %v3559, 1.1283791
    %v3561 = vmul.f32 %v2253, %v3560
    %v3562 = vmul.f32 %v3550, 3.8918573e-05
    %v3563 = vadd.f32 %v3562, 0.001143296
    %v3564 = vmul.f32 %v3550, %v3563
    %v3565 = vadd.f32 %v3564, 0.014752088
    %v3566 = vmul.f32 %v3550, %v3565
    %v3567 = vadd.f32 %v3566, 0.112945676
    %v3568 = vmul.f32 %v3550, %v3567
    %v3569 = vadd.f32 %v3568, 0.4994258
    %v3570 = vmul.f32 %v3550, %v3569
    %v3571 = vadd.f32 %v3570, 1.0
    %v3572 = vrcp.pop %v3571
    %v3573 = vmul.f32 %v3571, %v3572
    %v3574 = vsub.f32 1.0, %v3573
    %v3575 = vmul.f32 %v3572, %v3574
    %v3576 = vadd.f32 %v3572, %v3575
    %vm3577 = vweird.f32 %v3571
    %vm3578 = vweird.f32 %v3572
    %vm3579 = vmor %vm3577, %vm3578
    %v3580 = vsel %vm3579, %v3572, %v3576
    %v3581 = vand.u32 2147483647, %v3571
    %vm3582 = vcmp.eq.f32.partialorder %v3581, 8.507059e+37
    %v3583 = vand.u32 %v3571, 2147483648
    %v3584 = vor.u32 1.1754944e-38, %v3583
    %v3585 = vsel %vm3582, %v3584, %v3580
    %v3586 = vmul.f32 %v3561, %v3585
    %v3587 = vmin.f32 %v3586, 1.0
    %v3588 = vmax.f32 %v3587, -1.0
    %v3589 = vmul.f32 %v2254, %v2254
    %v3590 = vmin.f32 16.0, %v3589
    %v3591 = vmul.f32 %v3590, 2.1237322e-06
    %v3592 = vadd.f32 %v3591, 0.00028619796
    %v3593 = vmul.f32 %v3590, %v3592
    %v3594 = vadd.f32 %v3593, 0.0036580483
    %v3595 = vmul.f32 %v3590, %v3594
    %v3596 = vadd.f32 %v3595, 0.05243302
    %v3597 = vmul.f32 %v3590, %v3596
    %v3598 = vadd.f32 %v3597, 0.18741608
    %v3599 = vmul.f32 %v3590, %v3598
    %v3600 = vadd.f32 %v3599, 1.1283791
    %v3601 = vmul.f32 %v2254, %v3600
    %v3602 = vmul.f32 %v3590, 3.8918573e-05
    %v3603 = vadd.f32 %v3602, 0.001143296
    %v3604 = vmul.f32 %v3590, %v3603
    %v3605 = vadd.f32 %v3604, 0.014752088
    %v3606 = vmul.f32 %v3590, %v3605
    %v3607 = vadd.f32 %v3606, 0.112945676
    %v3608 = vmul.f32 %v3590, %v3607
    %v3609 = vadd.f32 %v3608, 0.4994258
    %v3610 = vmul.f32 %v3590, %v3609
    %v3611 = vadd.f32 %v3610, 1.0
    %v3612 = vrcp.pop %v3611
    %v3613 = vmul.f32 %v3611, %v3612
    %v3614 = vsub.f32 1.0, %v3613
    %v3615 = vmul.f32 %v3612, %v3614
    %v3616 = vadd.f32 %v3612, %v3615
    %vm3617 = vweird.f32 %v3611
    %vm3618 = vweird.f32 %v3612
    %vm3619 = vmor %vm3617, %vm3618
    %v3620 = vsel %vm3619, %v3612, %v3616
    %v3621 = vand.u32 2147483647, %v3611
    %vm3622 = vcmp.eq.f32.partialorder %v3621, 8.507059e+37
    %v3623 = vand.u32 %v3611, 2147483648
    %v3624 = vor.u32 1.1754944e-38, %v3623
    %v3625 = vsel %vm3622, %v3624, %v3620
    %v3626 = vmul.f32 %v3601, %v3625
    %v3627 = vmin.f32 %v3626, 1.0
    %v3628 = vmax.f32 %v3627, -1.0
    %v3629 = vmul.f32 %v2255, %v2255
    %v3630 = vmin.f32 16.0, %v3629
    %v3631 = vmul.f32 %v3630, 2.1237322e-06
    %v3632 = vadd.f32 %v3631, 0.00028619796
    %v3633 = vmul.f32 %v3630, %v3632
    %v3634 = vadd.f32 %v3633, 0.0036580483
    %v3635 = vmul.f32 %v3630, %v3634
    %v3636 = vadd.f32 %v3635, 0.05243302
    %v3637 = vmul.f32 %v3630, %v3636
    %v3638 = vadd.f32 %v3637, 0.18741608
    %v3639 = vmul.f32 %v3630, %v3638
    %v3640 = vadd.f32 %v3639, 1.1283791
    %v3641 = vmul.f32 %v2255, %v3640
    %v3642 = vmul.f32 %v3630, 3.8918573e-05
    %v3643 = vadd.f32 %v3642, 0.001143296
    %v3644 = vmul.f32 %v3630, %v3643
    %v3645 = vadd.f32 %v3644, 0.014752088
    %v3646 = vmul.f32 %v3630, %v3645
    %v3647 = vadd.f32 %v3646, 0.112945676
    %v3648 = vmul.f32 %v3630, %v3647
    %v3649 = vadd.f32 %v3648, 0.4994258
    %v3650 = vmul.f32 %v3630, %v3649
    %v3651 = vadd.f32 %v3650, 1.0
    %v3652 = vrcp.pop %v3651
    %v3653 = vmul.f32 %v3651, %v3652
    %v3654 = vsub.f32 1.0, %v3653
    %v3655 = vmul.f32 %v3652, %v3654
    %v3656 = vadd.f32 %v3652, %v3655
    %vm3657 = vweird.f32 %v3651
    %vm3658 = vweird.f32 %v3652
    %vm3659 = vmor %vm3657, %vm3658
    %v3660 = vsel %vm3659, %v3652, %v3656
    %v3661 = vand.u32 2147483647, %v3651
    %vm3662 = vcmp.eq.f32.partialorder %v3661, 8.507059e+37
    %v3663 = vand.u32 %v3651, 2147483648
    %v3664 = vor.u32 1.1754944e-38, %v3663
    %v3665 = vsel %vm3662, %v3664, %v3660
    %v3666 = vmul.f32 %v3641, %v3665
    %v3667 = vmin.f32 %v3666, 1.0
    %v3668 = vmax.f32 %v3667, -1.0
    %v3669 = vmul.f32 %v2256, %v2256
    %v3670 = vmin.f32 16.0, %v3669
    %v3671 = vmul.f32 %v3670, 2.1237322e-06
    %v3672 = vadd.f32 %v3671, 0.00028619796
    %v3673 = vmul.f32 %v3670, %v3672
    %v3674 = vadd.f32 %v3673, 0.0036580483
    %v3675 = vmul.f32 %v3670, %v3674
    %v3676 = vadd.f32 %v3675, 0.05243302
    %v3677 = vmul.f32 %v3670, %v3676
    %v3678 = vadd.f32 %v3677, 0.18741608
    %v3679 = vmul.f32 %v3670, %v3678
    %v3680 = vadd.f32 %v3679, 1.1283791
    %v3681 = vmul.f32 %v2256, %v3680
    %v3682 = vmul.f32 %v3670, 3.8918573e-05
    %v3683 = vadd.f32 %v3682, 0.001143296
    %v3684 = vmul.f32 %v3670, %v3683
    %v3685 = vadd.f32 %v3684, 0.014752088
    %v3686 = vmul.f32 %v3670, %v3685
    %v3687 = vadd.f32 %v3686, 0.112945676
    %v3688 = vmul.f32 %v3670, %v3687
    %v3689 = vadd.f32 %v3688, 0.4994258
    %v3690 = vmul.f32 %v3670, %v3689
    %v3691 = vadd.f32 %v3690, 1.0
    %v3692 = vrcp.pop %v3691
    %v3693 = vmul.f32 %v3691, %v3692
    %v3694 = vsub.f32 1.0, %v3693
    %v3695 = vmul.f32 %v3692, %v3694
    %v3696 = vadd.f32 %v3692, %v3695
    %vm3697 = vweird.f32 %v3691
    %vm3698 = vweird.f32 %v3692
    %vm3699 = vmor %vm3697, %vm3698
    %v3700 = vsel %vm3699, %v3692, %v3696
    %v3701 = vand.u32 2147483647, %v3691
    %vm3702 = vcmp.eq.f32.partialorder %v3701, 8.507059e+37
    %v3703 = vand.u32 %v3691, 2147483648
    %v3704 = vor.u32 1.1754944e-38, %v3703
    %v3705 = vsel %vm3702, %v3704, %v3700
    %v3706 = vmul.f32 %v3681, %v3705
    %v3707 = vmin.f32 %v3706, 1.0
    %v3708 = vmax.f32 %v3707, -1.0
    %v3709 = vmul.f32 %v2257, %v2257
    %v3710 = vmin.f32 16.0, %v3709
    %v3711 = vmul.f32 %v3710, 2.1237322e-06
    %v3712 = vadd.f32 %v3711, 0.00028619796
    %v3713 = vmul.f32 %v3710, %v3712
    %v3714 = vadd.f32 %v3713, 0.0036580483
    %v3715 = vmul.f32 %v3710, %v3714
    %v3716 = vadd.f32 %v3715, 0.05243302
    %v3717 = vmul.f32 %v3710, %v3716
    %v3718 = vadd.f32 %v3717, 0.18741608
    %v3719 = vmul.f32 %v3710, %v3718
    %v3720 = vadd.f32 %v3719, 1.1283791
    %v3721 = vmul.f32 %v2257, %v3720
    %v3722 = vmul.f32 %v3710, 3.8918573e-05
    %v3723 = vadd.f32 %v3722, 0.001143296
    %v3724 = vmul.f32 %v3710, %v3723
    %v3725 = vadd.f32 %v3724, 0.014752088
    %v3726 = vmul.f32 %v3710, %v3725
    %v3727 = vadd.f32 %v3726, 0.112945676
    %v3728 = vmul.f32 %v3710, %v3727
    %v3729 = vadd.f32 %v3728, 0.4994258
    %v3730 = vmul.f32 %v3710, %v3729
    %v3731 = vadd.f32 %v3730, 1.0
    %v3732 = vrcp.pop %v3731
    %v3733 = vmul.f32 %v3731, %v3732
    %v3734 = vsub.f32 1.0, %v3733
    %v3735 = vmul.f32 %v3732, %v3734
    %v3736 = vadd.f32 %v3732, %v3735
    %vm3737 = vweird.f32 %v3731
    %vm3738 = vweird.f32 %v3732
    %vm3739 = vmor %vm3737, %vm3738
    %v3740 = vsel %vm3739, %v3732, %v3736
    %v3741 = vand.u32 2147483647, %v3731
    %vm3742 = vcmp.eq.f32.partialorder %v3741, 8.507059e+37
    %v3743 = vand.u32 %v3731, 2147483648
    %v3744 = vor.u32 1.1754944e-38, %v3743
    %v3745 = vsel %vm3742, %v3744, %v3740
    %v3746 = vmul.f32 %v3721, %v3745
    %v3747 = vmin.f32 %v3746, 1.0
    %v3748 = vmax.f32 %v3747, -1.0
    %v3749 = vmul.f32 %v2258, %v2258
    %v3750 = vmin.f32 16.0, %v3749
    %v3751 = vmul.f32 %v3750, 2.1237322e-06
    %v3752 = vadd.f32 %v3751, 0.00028619796
    %v3753 = vmul.f32 %v3750, %v3752
    %v3754 = vadd.f32 %v3753, 0.0036580483
    %v3755 = vmul.f32 %v3750, %v3754
    %v3756 = vadd.f32 %v3755, 0.05243302
    %v3757 = vmul.f32 %v3750, %v3756
    %v3758 = vadd.f32 %v3757, 0.18741608
    %v3759 = vmul.f32 %v3750, %v3758
    %v3760 = vadd.f32 %v3759, 1.1283791
    %v3761 = vmul.f32 %v2258, %v3760
    %v3762 = vmul.f32 %v3750, 3.8918573e-05
    %v3763 = vadd.f32 %v3762, 0.001143296
    %v3764 = vmul.f32 %v3750, %v3763
    %v3765 = vadd.f32 %v3764, 0.014752088
    %v3766 = vmul.f32 %v3750, %v3765
    %v3767 = vadd.f32 %v3766, 0.112945676
    %v3768 = vmul.f32 %v3750, %v3767
    %v3769 = vadd.f32 %v3768, 0.4994258
    %v3770 = vmul.f32 %v3750, %v3769
    %v3771 = vadd.f32 %v3770, 1.0
    %v3772 = vrcp.pop %v3771
    %v3773 = vmul.f32 %v3771, %v3772
    %v3774 = vsub.f32 1.0, %v3773
    %v3775 = vmul.f32 %v3772, %v3774
    %v3776 = vadd.f32 %v3772, %v3775
    %vm3777 = vweird.f32 %v3771
    %vm3778 = vweird.f32 %v3772
    %vm3779 = vmor %vm3777, %vm3778
    %v3780 = vsel %vm3779, %v3772, %v3776
    %v3781 = vand.u32 2147483647, %v3771
    %vm3782 = vcmp.eq.f32.partialorder %v3781, 8.507059e+37
    %v3783 = vand.u32 %v3771, 2147483648
    %v3784 = vor.u32 1.1754944e-38, %v3783
    %v3785 = vsel %vm3782, %v3784, %v3780
    %v3786 = vmul.f32 %v3761, %v3785
    %v3787 = vmin.f32 %v3786, 1.0
    %v3788 = vmax.f32 %v3787, -1.0
    %v3789 = vmul.f32 %v2259, %v2259
    %v3790 = vmin.f32 16.0, %v3789
    %v3791 = vmul.f32 %v3790, 2.1237322e-06
    %v3792 = vadd.f32 %v3791, 0.00028619796
    %v3793 = vmul.f32 %v3790, %v3792
    %v3794 = vadd.f32 %v3793, 0.0036580483
    %v3795 = vmul.f32 %v3790, %v3794
    %v3796 = vadd.f32 %v3795, 0.05243302
    %v3797 = vmul.f32 %v3790, %v3796
    %v3798 = vadd.f32 %v3797, 0.18741608
    %v3799 = vmul.f32 %v3790, %v3798
    %v3800 = vadd.f32 %v3799, 1.1283791
    %v3801 = vmul.f32 %v2259, %v3800
    %v3802 = vmul.f32 %v3790, 3.8918573e-05
    %v3803 = vadd.f32 %v3802, 0.001143296
    %v3804 = vmul.f32 %v3790, %v3803
    %v3805 = vadd.f32 %v3804, 0.014752088
    %v3806 = vmul.f32 %v3790, %v3805
    %v3807 = vadd.f32 %v3806, 0.112945676
    %v3808 = vmul.f32 %v3790, %v3807
    %v3809 = vadd.f32 %v3808, 0.4994258
    %v3810 = vmul.f32 %v3790, %v3809
    %v3811 = vadd.f32 %v3810, 1.0
    %v3812 = vrcp.pop %v3811
    %v3813 = vmul.f32 %v3811, %v3812
    %v3814 = vsub.f32 1.0, %v3813
    %v3815 = vmul.f32 %v3812, %v3814
    %v3816 = vadd.f32 %v3812, %v3815
    %vm3817 = vweird.f32 %v3811
    %vm3818 = vweird.f32 %v3812
    %vm3819 = vmor %vm3817, %vm3818
    %v3820 = vsel %vm3819, %v3812, %v3816
    %v3821 = vand.u32 2147483647, %v3811
    %vm3822 = vcmp.eq.f32.partialorder %v3821, 8.507059e+37
    %v3823 = vand.u32 %v3811, 2147483648
    %v3824 = vor.u32 1.1754944e-38, %v3823
    %v3825 = vsel %vm3822, %v3824, %v3820
    %v3826 = vmul.f32 %v3801, %v3825
    %v3827 = vmin.f32 %v3826, 1.0
    %v3828 = vmax.f32 %v3827, -1.0
    %v3829 = vmul.f32 %v2260, %v2260
    %v3830 = vmin.f32 16.0, %v3829
    %v3831 = vmul.f32 %v3830, 2.1237322e-06
    %v3832 = vadd.f32 %v3831, 0.00028619796
    %v3833 = vmul.f32 %v3830, %v3832
    %v3834 = vadd.f32 %v3833, 0.0036580483
    %v3835 = vmul.f32 %v3830, %v3834
    %v3836 = vadd.f32 %v3835, 0.05243302
    %v3837 = vmul.f32 %v3830, %v3836
    %v3838 = vadd.f32 %v3837, 0.18741608
    %v3839 = vmul.f32 %v3830, %v3838
    %v3840 = vadd.f32 %v3839, 1.1283791
    %v3841 = vmul.f32 %v2260, %v3840
    %v3842 = vmul.f32 %v3830, 3.8918573e-05
    %v3843 = vadd.f32 %v3842, 0.001143296
    %v3844 = vmul.f32 %v3830, %v3843
    %v3845 = vadd.f32 %v3844, 0.014752088
    %v3846 = vmul.f32 %v3830, %v3845
    %v3847 = vadd.f32 %v3846, 0.112945676
    %v3848 = vmul.f32 %v3830, %v3847
    %v3849 = vadd.f32 %v3848, 0.4994258
    %v3850 = vmul.f32 %v3830, %v3849
    %v3851 = vadd.f32 %v3850, 1.0
    %v3852 = vrcp.pop %v3851
    %v3853 = vmul.f32 %v3851, %v3852
    %v3854 = vsub.f32 1.0, %v3853
    %v3855 = vmul.f32 %v3852, %v3854
    %v3856 = vadd.f32 %v3852, %v3855
    %vm3857 = vweird.f32 %v3851
    %vm3858 = vweird.f32 %v3852
    %vm3859 = vmor %vm3857, %vm3858
    %v3860 = vsel %vm3859, %v3852, %v3856
    %v3861 = vand.u32 2147483647, %v3851
    %vm3862 = vcmp.eq.f32.partialorder %v3861, 8.507059e+37
    %v3863 = vand.u32 %v3851, 2147483648
    %v3864 = vor.u32 1.1754944e-38, %v3863
    %v3865 = vsel %vm3862, %v3864, %v3860
    %v3866 = vmul.f32 %v3841, %v3865
    %v3867 = vmin.f32 %v3866, 1.0
    %v3868 = vmax.f32 %v3867, -1.0
    %v3869 = vmul.f32 %v2261, %v2261
    %v3870 = vmin.f32 16.0, %v3869
    %v3871 = vmul.f32 %v3870, 2.1237322e-06
    %v3872 = vadd.f32 %v3871, 0.00028619796
    %v3873 = vmul.f32 %v3870, %v3872
    %v3874 = vadd.f32 %v3873, 0.0036580483
    %v3875 = vmul.f32 %v3870, %v3874
    %v3876 = vadd.f32 %v3875, 0.05243302
    %v3877 = vmul.f32 %v3870, %v3876
    %v3878 = vadd.f32 %v3877, 0.18741608
    %v3879 = vmul.f32 %v3870, %v3878
    %v3880 = vadd.f32 %v3879, 1.1283791
    %v3881 = vmul.f32 %v2261, %v3880
    %v3882 = vmul.f32 %v3870, 3.8918573e-05
    %v3883 = vadd.f32 %v3882, 0.001143296
    %v3884 = vmul.f32 %v3870, %v3883
    %v3885 = vadd.f32 %v3884, 0.014752088
    %v3886 = vmul.f32 %v3870, %v3885
    %v3887 = vadd.f32 %v3886, 0.112945676
    %v3888 = vmul.f32 %v3870, %v3887
    %v3889 = vadd.f32 %v3888, 0.4994258
    %v3890 = vmul.f32 %v3870, %v3889
    %v3891 = vadd.f32 %v3890, 1.0
    %v3892 = vrcp.pop %v3891
    %v3893 = vmul.f32 %v3891, %v3892
    %v3894 = vsub.f32 1.0, %v3893
    %v3895 = vmul.f32 %v3892, %v3894
    %v3896 = vadd.f32 %v3892, %v3895
    %vm3897 = vweird.f32 %v3891
    %vm3898 = vweird.f32 %v3892
    %vm3899 = vmor %vm3897, %vm3898
    %v3900 = vsel %vm3899, %v3892, %v3896
    %v3901 = vand.u32 2147483647, %v3891
    %vm3902 = vcmp.eq.f32.partialorder %v3901, 8.507059e+37
    %v3903 = vand.u32 %v3891, 2147483648
    %v3904 = vor.u32 1.1754944e-38, %v3903
    %v3905 = vsel %vm3902, %v3904, %v3900
    %v3906 = vmul.f32 %v3881, %v3905
    %v3907 = vmin.f32 %v3906, 1.0
    %v3908 = vmax.f32 %v3907, -1.0
    %v3909 = vmul.f32 %v2262, %v2262
    %v3910 = vmin.f32 16.0, %v3909
    %v3911 = vmul.f32 %v3910, 2.1237322e-06
    %v3912 = vadd.f32 %v3911, 0.00028619796
    %v3913 = vmul.f32 %v3910, %v3912
    %v3914 = vadd.f32 %v3913, 0.0036580483
    %v3915 = vmul.f32 %v3910, %v3914
    %v3916 = vadd.f32 %v3915, 0.05243302
    %v3917 = vmul.f32 %v3910, %v3916
    %v3918 = vadd.f32 %v3917, 0.18741608
    %v3919 = vmul.f32 %v3910, %v3918
    %v3920 = vadd.f32 %v3919, 1.1283791
    %v3921 = vmul.f32 %v2262, %v3920
    %v3922 = vmul.f32 %v3910, 3.8918573e-05
    %v3923 = vadd.f32 %v3922, 0.001143296
    %v3924 = vmul.f32 %v3910, %v3923
    %v3925 = vadd.f32 %v3924, 0.014752088
    %v3926 = vmul.f32 %v3910, %v3925
    %v3927 = vadd.f32 %v3926, 0.112945676
    %v3928 = vmul.f32 %v3910, %v3927
    %v3929 = vadd.f32 %v3928, 0.4994258
    %v3930 = vmul.f32 %v3910, %v3929
    %v3931 = vadd.f32 %v3930, 1.0
    %v3932 = vrcp.pop %v3931
    %v3933 = vmul.f32 %v3931, %v3932
    %v3934 = vsub.f32 1.0, %v3933
    %v3935 = vmul.f32 %v3932, %v3934
    %v3936 = vadd.f32 %v3932, %v3935
    %vm3937 = vweird.f32 %v3931
    %vm3938 = vweird.f32 %v3932
    %vm3939 = vmor %vm3937, %vm3938
    %v3940 = vsel %vm3939, %v3932, %v3936
    %v3941 = vand.u32 2147483647, %v3931
    %vm3942 = vcmp.eq.f32.partialorder %v3941, 8.507059e+37
    %v3943 = vand.u32 %v3931, 2147483648
    %v3944 = vor.u32 1.1754944e-38, %v3943
    %v3945 = vsel %vm3942, %v3944, %v3940
    %v3946 = vmul.f32 %v3921, %v3945
    %v3947 = vmin.f32 %v3946, 1.0
    %v3948 = vmax.f32 %v3947, -1.0
    %v3949 = vmul.f32 %v2263, %v2263
    %v3950 = vmin.f32 16.0, %v3949
    %v3951 = vmul.f32 %v3950, 2.1237322e-06
    %v3952 = vadd.f32 %v3951, 0.00028619796
    %v3953 = vmul.f32 %v3950, %v3952
    %v3954 = vadd.f32 %v3953, 0.0036580483
    %v3955 = vmul.f32 %v3950, %v3954
    %v3956 = vadd.f32 %v3955, 0.05243302
    %v3957 = vmul.f32 %v3950, %v3956
    %v3958 = vadd.f32 %v3957, 0.18741608
    %v3959 = vmul.f32 %v3950, %v3958
    %v3960 = vadd.f32 %v3959, 1.1283791
    %v3961 = vmul.f32 %v2263, %v3960
    %v3962 = vmul.f32 %v3950, 3.8918573e-05
    %v3963 = vadd.f32 %v3962, 0.001143296
    %v3964 = vmul.f32 %v3950, %v3963
    %v3965 = vadd.f32 %v3964, 0.014752088
    %v3966 = vmul.f32 %v3950, %v3965
    %v3967 = vadd.f32 %v3966, 0.112945676
    %v3968 = vmul.f32 %v3950, %v3967
    %v3969 = vadd.f32 %v3968, 0.4994258
    %v3970 = vmul.f32 %v3950, %v3969
    %v3971 = vadd.f32 %v3970, 1.0
    %v3972 = vrcp.pop %v3971
    %v3973 = vmul.f32 %v3971, %v3972
    %v3974 = vsub.f32 1.0, %v3973
    %v3975 = vmul.f32 %v3972, %v3974
    %v3976 = vadd.f32 %v3972, %v3975
    %vm3977 = vweird.f32 %v3971
    %vm3978 = vweird.f32 %v3972
    %vm3979 = vmor %vm3977, %vm3978
    %v3980 = vsel %vm3979, %v3972, %v3976
    %v3981 = vand.u32 2147483647, %v3971
    %vm3982 = vcmp.eq.f32.partialorder %v3981, 8.507059e+37
    %v3983 = vand.u32 %v3971, 2147483648
    %v3984 = vor.u32 1.1754944e-38, %v3983
    %v3985 = vsel %vm3982, %v3984, %v3980
    %v3986 = vmul.f32 %v3961, %v3985
    %v3987 = vmin.f32 %v3986, 1.0
    %v3988 = vmax.f32 %v3987, -1.0
    %v3989 = vmul.f32 %v2264, %v2264
    %v3990 = vmin.f32 16.0, %v3989
    %v3991 = vmul.f32 %v3990, 2.1237322e-06
    %v3992 = vadd.f32 %v3991, 0.00028619796
    %v3993 = vmul.f32 %v3990, %v3992
    %v3994 = vadd.f32 %v3993, 0.0036580483
    %v3995 = vmul.f32 %v3990, %v3994
    %v3996 = vadd.f32 %v3995, 0.05243302
    %v3997 = vmul.f32 %v3990, %v3996
    %v3998 = vadd.f32 %v3997, 0.18741608
    %v3999 = vmul.f32 %v3990, %v3998
    %v4000 = vadd.f32 %v3999, 1.1283791
    %v4001 = vmul.f32 %v2264, %v4000
    %v4002 = vmul.f32 %v3990, 3.8918573e-05
    %v4003 = vadd.f32 %v4002, 0.001143296
    %v4004 = vmul.f32 %v3990, %v4003
    %v4005 = vadd.f32 %v4004, 0.014752088
    %v4006 = vmul.f32 %v3990, %v4005
    %v4007 = vadd.f32 %v4006, 0.112945676
    %v4008 = vmul.f32 %v3990, %v4007
    %v4009 = vadd.f32 %v4008, 0.4994258
    %v4010 = vmul.f32 %v3990, %v4009
    %v4011 = vadd.f32 %v4010, 1.0
    %v4012 = vrcp.pop %v4011
    %v4013 = vmul.f32 %v4011, %v4012
    %v4014 = vsub.f32 1.0, %v4013
    %v4015 = vmul.f32 %v4012, %v4014
    %v4016 = vadd.f32 %v4012, %v4015
    %vm4017 = vweird.f32 %v4011
    %vm4018 = vweird.f32 %v4012
    %vm4019 = vmor %vm4017, %vm4018
    %v4020 = vsel %vm4019, %v4012, %v4016
    %v4021 = vand.u32 2147483647, %v4011
    %vm4022 = vcmp.eq.f32.partialorder %v4021, 8.507059e+37
    %v4023 = vand.u32 %v4011, 2147483648
    %v4024 = vor.u32 1.1754944e-38, %v4023
    %v4025 = vsel %vm4022, %v4024, %v4020
    %v4026 = vmul.f32 %v4001, %v4025
    %v4027 = vmin.f32 %v4026, 1.0
    %v4028 = vmax.f32 %v4027, -1.0
    %v4029 = vmul.f32 %v2265, %v2265
    %v4030 = vmin.f32 16.0, %v4029
    %v4031 = vmul.f32 %v4030, 2.1237322e-06
    %v4032 = vadd.f32 %v4031, 0.00028619796
    %v4033 = vmul.f32 %v4030, %v4032
    %v4034 = vadd.f32 %v4033, 0.0036580483
    %v4035 = vmul.f32 %v4030, %v4034
    %v4036 = vadd.f32 %v4035, 0.05243302
    %v4037 = vmul.f32 %v4030, %v4036
    %v4038 = vadd.f32 %v4037, 0.18741608
    %v4039 = vmul.f32 %v4030, %v4038
    %v4040 = vadd.f32 %v4039, 1.1283791
    %v4041 = vmul.f32 %v2265, %v4040
    %v4042 = vmul.f32 %v4030, 3.8918573e-05
    %v4043 = vadd.f32 %v4042, 0.001143296
    %v4044 = vmul.f32 %v4030, %v4043
    %v4045 = vadd.f32 %v4044, 0.014752088
    %v4046 = vmul.f32 %v4030, %v4045
    %v4047 = vadd.f32 %v4046, 0.112945676
    %v4048 = vmul.f32 %v4030, %v4047
    %v4049 = vadd.f32 %v4048, 0.4994258
    %v4050 = vmul.f32 %v4030, %v4049
    %v4051 = vadd.f32 %v4050, 1.0
    %v4052 = vrcp.pop %v4051
    %v4053 = vmul.f32 %v4051, %v4052
    %v4054 = vsub.f32 1.0, %v4053
    %v4055 = vmul.f32 %v4052, %v4054
    %v4056 = vadd.f32 %v4052, %v4055
    %vm4057 = vweird.f32 %v4051
    %vm4058 = vweird.f32 %v4052
    %vm4059 = vmor %vm4057, %vm4058
    %v4060 = vsel %vm4059, %v4052, %v4056
    %v4061 = vand.u32 2147483647, %v4051
    %vm4062 = vcmp.eq.f32.partialorder %v4061, 8.507059e+37
    %v4063 = vand.u32 %v4051, 2147483648
    %v4064 = vor.u32 1.1754944e-38, %v4063
    %v4065 = vsel %vm4062, %v4064, %v4060
    %v4066 = vmul.f32 %v4041, %v4065
    %v4067 = vmin.f32 %v4066, 1.0
    %v4068 = vmax.f32 %v4067, -1.0
    %v4069 = vmul.f32 %v2266, %v2266
    %v4070 = vmin.f32 16.0, %v4069
    %v4071 = vmul.f32 %v4070, 2.1237322e-06
    %v4072 = vadd.f32 %v4071, 0.00028619796
    %v4073 = vmul.f32 %v4070, %v4072
    %v4074 = vadd.f32 %v4073, 0.0036580483
    %v4075 = vmul.f32 %v4070, %v4074
    %v4076 = vadd.f32 %v4075, 0.05243302
    %v4077 = vmul.f32 %v4070, %v4076
    %v4078 = vadd.f32 %v4077, 0.18741608
    %v4079 = vmul.f32 %v4070, %v4078
    %v4080 = vadd.f32 %v4079, 1.1283791
    %v4081 = vmul.f32 %v2266, %v4080
    %v4082 = vmul.f32 %v4070, 3.8918573e-05
    %v4083 = vadd.f32 %v4082, 0.001143296
    %v4084 = vmul.f32 %v4070, %v4083
    %v4085 = vadd.f32 %v4084, 0.014752088
    %v4086 = vmul.f32 %v4070, %v4085
    %v4087 = vadd.f32 %v4086, 0.112945676
    %v4088 = vmul.f32 %v4070, %v4087
    %v4089 = vadd.f32 %v4088, 0.4994258
    %v4090 = vmul.f32 %v4070, %v4089
    %v4091 = vadd.f32 %v4090, 1.0
    %v4092 = vrcp.pop %v4091
    %v4093 = vmul.f32 %v4091, %v4092
    %v4094 = vsub.f32 1.0, %v4093
    %v4095 = vmul.f32 %v4092, %v4094
    %v4096 = vadd.f32 %v4092, %v4095
    %vm4097 = vweird.f32 %v4091
    %vm4098 = vweird.f32 %v4092
    %vm4099 = vmor %vm4097, %vm4098
    %v4100 = vsel %vm4099, %v4092, %v4096
    %v4101 = vand.u32 2147483647, %v4091
    %vm4102 = vcmp.eq.f32.partialorder %v4101, 8.507059e+37
    %v4103 = vand.u32 %v4091, 2147483648
    %v4104 = vor.u32 1.1754944e-38, %v4103
    %v4105 = vsel %vm4102, %v4104, %v4100
    %v4106 = vmul.f32 %v4081, %v4105
    %v4107 = vmin.f32 %v4106, 1.0
    %v4108 = vmax.f32 %v4107, -1.0
    %v4109 = vmul.f32 %v2267, %v2267
    %v4110 = vmin.f32 16.0, %v4109
    %v4111 = vmul.f32 %v4110, 2.1237322e-06
    %v4112 = vadd.f32 %v4111, 0.00028619796
    %v4113 = vmul.f32 %v4110, %v4112
    %v4114 = vadd.f32 %v4113, 0.0036580483
    %v4115 = vmul.f32 %v4110, %v4114
    %v4116 = vadd.f32 %v4115, 0.05243302
    %v4117 = vmul.f32 %v4110, %v4116
    %v4118 = vadd.f32 %v4117, 0.18741608
    %v4119 = vmul.f32 %v4110, %v4118
    %v4120 = vadd.f32 %v4119, 1.1283791
    %v4121 = vmul.f32 %v2267, %v4120
    %v4122 = vmul.f32 %v4110, 3.8918573e-05
    %v4123 = vadd.f32 %v4122, 0.001143296
    %v4124 = vmul.f32 %v4110, %v4123
    %v4125 = vadd.f32 %v4124, 0.014752088
    %v4126 = vmul.f32 %v4110, %v4125
    %v4127 = vadd.f32 %v4126, 0.112945676
    %v4128 = vmul.f32 %v4110, %v4127
    %v4129 = vadd.f32 %v4128, 0.4994258
    %v4130 = vmul.f32 %v4110, %v4129
    %v4131 = vadd.f32 %v4130, 1.0
    %v4132 = vrcp.pop %v4131
    %v4133 = vmul.f32 %v4131, %v4132
    %v4134 = vsub.f32 1.0, %v4133
    %v4135 = vmul.f32 %v4132, %v4134
    %v4136 = vadd.f32 %v4132, %v4135
    %vm4137 = vweird.f32 %v4131
    %vm4138 = vweird.f32 %v4132
    %vm4139 = vmor %vm4137, %vm4138
    %v4140 = vsel %vm4139, %v4132, %v4136
    %v4141 = vand.u32 2147483647, %v4131
    %vm4142 = vcmp.eq.f32.partialorder %v4141, 8.507059e+37
    %v4143 = vand.u32 %v4131, 2147483648
    %v4144 = vor.u32 1.1754944e-38, %v4143
    %v4145 = vsel %vm4142, %v4144, %v4140
    %v4146 = vmul.f32 %v4121, %v4145
    %v4147 = vmin.f32 %v4146, 1.0
    %v4148 = vmax.f32 %v4147, -1.0
    %v4149 = vmul.f32 %v2268, %v2268
    %v4150 = vmin.f32 16.0, %v4149
    %v4151 = vmul.f32 %v4150, 2.1237322e-06
    %v4152 = vadd.f32 %v4151, 0.00028619796
    %v4153 = vmul.f32 %v4150, %v4152
    %v4154 = vadd.f32 %v4153, 0.0036580483
    %v4155 = vmul.f32 %v4150, %v4154
    %v4156 = vadd.f32 %v4155, 0.05243302
    %v4157 = vmul.f32 %v4150, %v4156
    %v4158 = vadd.f32 %v4157, 0.18741608
    %v4159 = vmul.f32 %v4150, %v4158
    %v4160 = vadd.f32 %v4159, 1.1283791
    %v4161 = vmul.f32 %v2268, %v4160
    %v4162 = vmul.f32 %v4150, 3.8918573e-05
    %v4163 = vadd.f32 %v4162, 0.001143296
    %v4164 = vmul.f32 %v4150, %v4163
    %v4165 = vadd.f32 %v4164, 0.014752088
    %v4166 = vmul.f32 %v4150, %v4165
    %v4167 = vadd.f32 %v4166, 0.112945676
    %v4168 = vmul.f32 %v4150, %v4167
    %v4169 = vadd.f32 %v4168, 0.4994258
    %v4170 = vmul.f32 %v4150, %v4169
    %v4171 = vadd.f32 %v4170, 1.0
    %v4172 = vrcp.pop %v4171
    %v4173 = vmul.f32 %v4171, %v4172
    %v4174 = vsub.f32 1.0, %v4173
    %v4175 = vmul.f32 %v4172, %v4174
    %v4176 = vadd.f32 %v4172, %v4175
    %vm4177 = vweird.f32 %v4171
    %vm4178 = vweird.f32 %v4172
    %vm4179 = vmor %vm4177, %vm4178
    %v4180 = vsel %vm4179, %v4172, %v4176
    %v4181 = vand.u32 2147483647, %v4171
    %vm4182 = vcmp.eq.f32.partialorder %v4181, 8.507059e+37
    %v4183 = vand.u32 %v4171, 2147483648
    %v4184 = vor.u32 1.1754944e-38, %v4183
    %v4185 = vsel %vm4182, %v4184, %v4180
    %v4186 = vmul.f32 %v4161, %v4185
    %v4187 = vmin.f32 %v4186, 1.0
    %v4188 = vmax.f32 %v4187, -1.0
    %v4189 = vadd.f32 %v2308, 1.0
    %v4190 = vadd.f32 %v2348, 1.0
    %v4191 = vadd.f32 %v2388, 1.0
    %v4192 = vadd.f32 %v2428, 1.0
    %v4193 = vadd.f32 %v2468, 1.0
    %v4194 = vadd.f32 %v2508, 1.0
    %v4195 = vadd.f32 %v2548, 1.0
    %v4196 = vadd.f32 %v2588, 1.0
    %v4197 = vadd.f32 %v2628, 1.0
    %v4198 = vadd.f32 %v2668, 1.0
    %v4199 = vadd.f32 %v2708, 1.0
    %v4200 = vadd.f32 %v2748, 1.0
    %v4201 = vadd.f32 %v2788, 1.0
    %v4202 = vadd.f32 %v2828, 1.0
    %v4203 = vadd.f32 %v2868, 1.0
    %v4204 = vadd.f32 %v2908, 1.0
    %v4205 = vadd.f32 %v2948, 1.0
    %v4206 = vadd.f32 %v2988, 1.0
    %v4207 = vadd.f32 %v3028, 1.0
    %v4208 = vadd.f32 %v3068, 1.0
    %v4209 = vadd.f32 %v3108, 1.0
    %v4210 = vadd.f32 %v3148, 1.0
    %v4211 = vadd.f32 %v3188, 1.0
    %v4212 = vadd.f32 %v3228, 1.0
    %v4213 = vadd.f32 %v3268, 1.0
    %v4214 = vadd.f32 %v3308, 1.0
    %v4215 = vadd.f32 %v3348, 1.0
    %v4216 = vadd.f32 %v3388, 1.0
    %v4217 = vadd.f32 %v3428, 1.0
    %v4218 = vadd.f32 %v3468, 1.0
    %v4219 = vadd.f32 %v3508, 1.0
    %v4220 = vadd.f32 %v3548, 1.0
    %v4221 = vadd.f32 %v3588, 1.0
    %v4222 = vadd.f32 %v3628, 1.0
    %v4223 = vadd.f32 %v3668, 1.0
    %v4224 = vadd.f32 %v3708, 1.0
    %v4225 = vadd.f32 %v3748, 1.0
    %v4226 = vadd.f32 %v3788, 1.0
    %v4227 = vadd.f32 %v3828, 1.0
    %v4228 = vadd.f32 %v3868, 1.0
    %v4229 = vadd.f32 %v3908, 1.0
    %v4230 = vadd.f32 %v3948, 1.0
    %v4231 = vadd.f32 %v3988, 1.0
    %v4232 = vadd.f32 %v4028, 1.0
    %v4233 = vadd.f32 %v4068, 1.0
    %v4234 = vadd.f32 %v4108, 1.0
    %v4235 = vadd.f32 %v4148, 1.0
    %v4236 = vadd.f32 %v4188, 1.0
    %v4237 = vmul.f32 %v2173, %v4189
    %v4238 = vmul.f32 %v2174, %v4190
    %v4239 = vmul.f32 %v2175, %v4191
    %v4240 = vmul.f32 %v2176, %v4192
    %v4241 = vmul.f32 %v2177, %v4193
    %v4242 = vmul.f32 %v2178, %v4194
    %v4243 = vmul.f32 %v2179, %v4195
    %v4244 = vmul.f32 %v2180, %v4196
    %v4245 = vmul.f32 %v2181, %v4197
    %v4246 = vmul.f32 %v2182, %v4198
    %v4247 = vmul.f32 %v2183, %v4199
    %v4248 = vmul.f32 %v2184, %v4200
    %v4249 = vmul.f32 %v2185, %v4201
    %v4250 = vmul.f32 %v2186, %v4202
    %v4251 = vmul.f32 %v2187, %v4203
    %v4252 = vmul.f32 %v2188, %v4204
    %v4253 = vmul.f32 %v2189, %v4205
    %v4254 = vmul.f32 %v2190, %v4206
    %v4255 = vmul.f32 %v2191, %v4207
    %v4256 = vmul.f32 %v2192, %v4208
    %v4257 = vmul.f32 %v2193, %v4209
    %v4258 = vmul.f32 %v2194, %v4210
    %v4259 = vmul.f32 %v2195, %v4211
    %v4260 = vmul.f32 %v2196, %v4212
    %v4261 = vmul.f32 %v2197, %v4213
    %v4262 = vmul.f32 %v2198, %v4214
    %v4263 = vmul.f32 %v2199, %v4215
    %v4264 = vmul.f32 %v2200, %v4216
    %v4265 = vmul.f32 %v2201, %v4217
    %v4266 = vmul.f32 %v2202, %v4218
    %v4267 = vmul.f32 %v2203, %v4219
    %v4268 = vmul.f32 %v2204, %v4220
    %v4269 = vmul.f32 %v2205, %v4221
    %v4270 = vmul.f32 %v2206, %v4222
    %v4271 = vmul.f32 %v2207, %v4223
    %v4272 = vmul.f32 %v2208, %v4224
    %v4273 = vmul.f32 %v2209, %v4225
    %v4274 = vmul.f32 %v2210, %v4226
    %v4275 = vmul.f32 %v2211, %v4227
    %v4276 = vmul.f32 %v2212, %v4228
    %v4277 = vmul.f32 %v2213, %v4229
    %v4278 = vmul.f32 %v2214, %v4230
    %v4279 = vmul.f32 %v2215, %v4231
    %v4280 = vmul.f32 %v2216, %v4232
    %v4281 = vmul.f32 %v2217, %v4233
    %v4282 = vmul.f32 %v2218, %v4234
    %v4283 = vmul.f32 %v2219, %v4235
    %v4284 = vmul.f32 %v2220, %v4236
    %v4285 = vpack.c.bf16 %v4239, %v4237
    %v4286 = vpack.c.bf16 %v4240, %v4238
    %v4287 = vpack.c.bf16 %v4243, %v4241
    %v4288 = vpack.c.bf16 %v4244, %v4242
    %v4289 = vpack.c.bf16 %v4247, %v4245
    %v4290 = vpack.c.bf16 %v4248, %v4246
    %v4291 = vpack.c.bf16 %v4251, %v4249
    %v4292 = vpack.c.bf16 %v4252, %v4250
    %v4293 = vpack.c.bf16 %v4255, %v4253
    %v4294 = vpack.c.bf16 %v4256, %v4254
    %v4295 = vpack.c.bf16 %v4259, %v4257
    %v4296 = vpack.c.bf16 %v4260, %v4258
    %v4297 = vpack.c.bf16 %v4263, %v4261
    %v4298 = vpack.c.bf16 %v4264, %v4262
    %v4299 = vpack.c.bf16 %v4267, %v4265
    %v4300 = vpack.c.bf16 %v4268, %v4266
    %v4301 = vpack.c.bf16 %v4271, %v4269
    %v4302 = vpack.c.bf16 %v4272, %v4270
    %v4303 = vpack.c.bf16 %v4275, %v4273
    %v4304 = vpack.c.bf16 %v4276, %v4274
    %v4305 = vpack.c.bf16 %v4279, %v4277
    %v4306 = vpack.c.bf16 %v4280, %v4278
    %v4307 = vpack.c.bf16 %v4283, %v4281
    %v4308 = vpack.c.bf16 %v4284, %v4282
    %v4309 = vld [vmem:[%s8] sm:$0xf]
    %v4310 = vld [vmem:[%s8 + $0x4] sm:$0xf]
    %v4311 = vld [vmem:[%s8 + $0x8] sm:$0xf]
    %v4312 = vld [vmem:[%s8 + $0xc] sm:$0xf]
    %v4313 = vld [vmem:[%s8 + $0x10] sm:$0xf]
    %v4314 = vld [vmem:[%s8 + $0x14] sm:$0xf]
    %v4315 = vld [vmem:[%s8 + $0x18] sm:$0xf]
    %v4316 = vld [vmem:[%s8 + $0x1c] sm:$0xf]
    %v4317 = vld [vmem:[%s8 + $0x20] sm:$0xf]
    %v4318 = vld [vmem:[%s8 + $0x24] sm:$0xf]
    %v4319 = vld [vmem:[%s8 + $0x28] sm:$0xf]
    %v4320 = vld [vmem:[%s8 + $0x2c] sm:$0xf]
    %v4321 = vld [vmem:[%s8 + $0x30] sm:$0xf]
    %v4322 = vld [vmem:[%s8 + $0x34] sm:$0xf]
    %v4323 = vld [vmem:[%s8 + $0x38] sm:$0xf]
    %v4324 = vld [vmem:[%s8 + $0x3c] sm:$0xf]
    %v4325 = vld [vmem:[%s8 + $0x40] sm:$0xf]
    %v4326 = vld [vmem:[%s8 + $0x44] sm:$0xf]
    %v4327 = vld [vmem:[%s8 + $0x48] sm:$0xf]
    %v4328 = vld [vmem:[%s8 + $0x4c] sm:$0xf]
    %v4329 = vld [vmem:[%s8 + $0x50] sm:$0xf]
    %v4330 = vld [vmem:[%s8 + $0x54] sm:$0xf]
    %v4331 = vld [vmem:[%s8 + $0x58] sm:$0xf]
    %v4332 = vld [vmem:[%s8 + $0x5c] sm:$0xf]
    %v4333 = vld [vmem:[%s8 + $0x60] sm:$0xf]
    %v4334 = vld [vmem:[%s8 + $0x64] sm:$0xf]
    %v4335 = vld [vmem:[%s8 + $0x68] sm:$0xf]
    %v4336 = vld [vmem:[%s8 + $0x6c] sm:$0xf]
    %v4337 = vld [vmem:[%s8 + $0x70] sm:$0xf]
    %v4338 = vld [vmem:[%s8 + $0x74] sm:$0xf]
    %v4339 = vld [vmem:[%s8 + $0x78] sm:$0xf]
    %v4340 = vld [vmem:[%s8 + $0x7c] sm:$0xf]
    %v4341 = vld [vmem:[%s9] sm:$0x1]
    %v4343 = vperm.slane %v4341, 0
    %v4377 = vunpack.c.l.b16 %v4309
    %v4378 = vunpack.c.l.b16 %v4310
    %v4379 = vunpack.c.l.b16 %v4311
    %v4380 = vunpack.c.l.b16 %v4312
    %v4381 = vunpack.c.l.b16 %v4313
    %v4382 = vunpack.c.l.b16 %v4314
    %v4383 = vunpack.c.l.b16 %v4315
    %v4384 = vunpack.c.l.b16 %v4316
    %v4385 = vunpack.c.l.b16 %v4317
    %v4386 = vunpack.c.l.b16 %v4318
    %v4387 = vunpack.c.l.b16 %v4319
    %v4388 = vunpack.c.l.b16 %v4320
    %v4389 = vunpack.c.l.b16 %v4321
    %v4390 = vunpack.c.l.b16 %v4322
    %v4391 = vunpack.c.l.b16 %v4323
    %v4392 = vunpack.c.l.b16 %v4324
    %v4393 = vunpack.c.l.b16 %v4325
    %v4394 = vunpack.c.l.b16 %v4326
    %v4395 = vunpack.c.l.b16 %v4327
    %v4396 = vunpack.c.l.b16 %v4328
    %v4397 = vunpack.c.l.b16 %v4329
    %v4398 = vunpack.c.l.b16 %v4330
    %v4399 = vunpack.c.l.b16 %v4331
    %v4400 = vunpack.c.l.b16 %v4332
    %v4401 = vunpack.c.l.b16 %v4333
    %v4402 = vunpack.c.l.b16 %v4334
    %v4403 = vunpack.c.l.b16 %v4335
    %v4404 = vunpack.c.l.b16 %v4336
    %v4405 = vunpack.c.l.b16 %v4337
    %v4406 = vunpack.c.l.b16 %v4338
    %v4407 = vunpack.c.l.b16 %v4339
    %v4408 = vunpack.c.l.b16 %v4340
    %v4409 = vpack.c.b16 %v4378, %v4377
    %v4410 = vpack.c.b16 %v4380, %v4379
    %v4411 = vpack.c.b16 %v4382, %v4381
    %v4412 = vpack.c.b16 %v4384, %v4383
    %v4413 = vpack.c.b16 %v4386, %v4385
    %v4414 = vpack.c.b16 %v4388, %v4387
    %v4415 = vpack.c.b16 %v4390, %v4389
    %v4416 = vpack.c.b16 %v4392, %v4391
    %v4417 = vpack.c.b16 %v4394, %v4393
    %v4418 = vpack.c.b16 %v4396, %v4395
    %v4419 = vpack.c.b16 %v4398, %v4397
    %v4420 = vpack.c.b16 %v4400, %v4399
    %v4421 = vpack.c.b16 %v4402, %v4401
    %v4422 = vpack.c.b16 %v4404, %v4403
    %v4423 = vpack.c.b16 %v4406, %v4405
    %v4424 = vpack.c.b16 %v4408, %v4407
    %4441 = vmatpush.bf16.msra.mxu0 %v4416
    %4442 = vmatpush.bf16.msra.mxu0 %v4415
    %4443 = vmatpush.bf16.msra.mxu0 %v4414
    %4444 = vmatpush.bf16.msra.mxu0 %v4413
    %4445 = vmatpush.bf16.msra.mxu0 %v4412
    %4446 = vmatpush.bf16.msra.mxu0 %v4411
    %4447 = vmatpush.bf16.msra.mxu0 %v4410
    %4448 = vmatpush.bf16.msra.mxu0 %v4409
    %4449 = vmatmul.bf16.gmra.mxu0 %v4285
    %v4450 = vpop.f32.mrf.mxu0
    %v4451 = vadd.f32 %v4343, %v4450
    %v4452 = vpop.f32.mrf.mxu0
    %v4453 = vadd.f32 %v4343, %v4452
    %4454 = vmatmul.bf16.gmra.mxu0 %v4287
    %v4455 = vpop.f32.mrf.mxu0
    %v4456 = vadd.f32 %v4343, %v4455
    %v4457 = vpop.f32.mrf.mxu0
    %v4458 = vadd.f32 %v4343, %v4457
    %4459 = vmatmul.bf16.gmra.mxu0 %v4289
    %v4460 = vpop.f32.mrf.mxu0
    %v4461 = vadd.f32 %v4343, %v4460
    %v4462 = vpop.f32.mrf.mxu0
    %v4463 = vadd.f32 %v4343, %v4462
    %4464 = vmatmul.bf16.gmra.mxu0 %v4291
    %v4465 = vpop.f32.mrf.mxu0
    %v4466 = vadd.f32 %v4343, %v4465
    %v4467 = vpop.f32.mrf.mxu0
    %v4468 = vadd.f32 %v4343, %v4467
    %4469 = vmatmul.bf16.gmra.mxu0 %v4293
    %v4470 = vpop.f32.mrf.mxu0
    %v4471 = vadd.f32 %v4343, %v4470
    %v4472 = vpop.f32.mrf.mxu0
    %v4473 = vadd.f32 %v4343, %v4472
    %4474 = vmatmul.bf16.gmra.mxu0 %v4295
    %v4475 = vpop.f32.mrf.mxu0
    %v4476 = vadd.f32 %v4343, %v4475
    %v4477 = vpop.f32.mrf.mxu0
    %v4478 = vadd.f32 %v4343, %v4477
    %4479 = vmatmul.bf16.gmra.mxu0 %v4297
    %v4480 = vpop.f32.mrf.mxu0
    %v4481 = vadd.f32 %v4343, %v4480
    %v4482 = vpop.f32.mrf.mxu0
    %v4483 = vadd.f32 %v4343, %v4482
    %4484 = vmatmul.bf16.gmra.mxu0 %v4299
    %v4485 = vpop.f32.mrf.mxu0
    %v4486 = vadd.f32 %v4343, %v4485
    %v4487 = vpop.f32.mrf.mxu0
    %v4488 = vadd.f32 %v4343, %v4487
    %4489 = vmatmul.bf16.gmra.mxu0 %v4301
    %v4490 = vpop.f32.mrf.mxu0
    %v4491 = vadd.f32 %v4343, %v4490
    %v4492 = vpop.f32.mrf.mxu0
    %v4493 = vadd.f32 %v4343, %v4492
    %4494 = vmatmul.bf16.gmra.mxu0 %v4303
    %v4495 = vpop.f32.mrf.mxu0
    %v4496 = vadd.f32 %v4343, %v4495
    %v4497 = vpop.f32.mrf.mxu0
    %v4498 = vadd.f32 %v4343, %v4497
    %4499 = vmatmul.bf16.gmra.mxu0 %v4305
    %v4500 = vpop.f32.mrf.mxu0
    %v4501 = vadd.f32 %v4343, %v4500
    %v4502 = vpop.f32.mrf.mxu0
    %v4503 = vadd.f32 %v4343, %v4502
    %4504 = vmatmul.bf16.gmra.mxu0 %v4307
    %v4505 = vpop.f32.mrf.mxu0
    %v4506 = vadd.f32 %v4343, %v4505
    %v4507 = vpop.f32.mrf.mxu0
    %v4508 = vadd.f32 %v4343, %v4507
    %4509 = vdwg.mxu0
    %4510 = vmatpush.bf16.msra.mxu0 %v4424
    %4511 = vmatpush.bf16.msra.mxu0 %v4423
    %4512 = vmatpush.bf16.msra.mxu0 %v4422
    %4513 = vmatpush.bf16.msra.mxu0 %v4421
    %4514 = vmatpush.bf16.msra.mxu0 %v4420
    %4515 = vmatpush.bf16.msra.mxu0 %v4419
    %4516 = vmatpush.bf16.msra.mxu0 %v4418
    %4517 = vmatpush.bf16.msra.mxu0 %v4417
    %4518 = vmatmul.bf16.gmra.mxu0 %v4286
    %v4519 = vpop.f32.mrf.mxu0
    %v4520 = vadd.f32 %v4451, %v4519
    %v4521 = vpop.f32.mrf.mxu0
    %v4522 = vadd.f32 %v4453, %v4521
    %4523 = vmatmul.bf16.gmra.mxu0 %v4288
    %v4524 = vpop.f32.mrf.mxu0
    %v4525 = vadd.f32 %v4456, %v4524
    %v4526 = vpop.f32.mrf.mxu0
    %v4527 = vadd.f32 %v4458, %v4526
    %4528 = vmatmul.bf16.gmra.mxu0 %v4290
    %v4529 = vpop.f32.mrf.mxu0
    %v4530 = vadd.f32 %v4461, %v4529
    %v4531 = vpop.f32.mrf.mxu0
    %v4532 = vadd.f32 %v4463, %v4531
    %4533 = vmatmul.bf16.gmra.mxu0 %v4292
    %v4534 = vpop.f32.mrf.mxu0
    %v4535 = vadd.f32 %v4466, %v4534
    %v4536 = vpop.f32.mrf.mxu0
    %v4537 = vadd.f32 %v4468, %v4536
    %4538 = vmatmul.bf16.gmra.mxu0 %v4294
    %v4539 = vpop.f32.mrf.mxu0
    %v4540 = vadd.f32 %v4471, %v4539
    %v4541 = vpop.f32.mrf.mxu0
    %v4542 = vadd.f32 %v4473, %v4541
    %4543 = vmatmul.bf16.gmra.mxu0 %v4296
    %v4544 = vpop.f32.mrf.mxu0
    %v4545 = vadd.f32 %v4476, %v4544
    %v4546 = vpop.f32.mrf.mxu0
    %v4547 = vadd.f32 %v4478, %v4546
    %4548 = vmatmul.bf16.gmra.mxu0 %v4298
    %v4549 = vpop.f32.mrf.mxu0
    %v4550 = vadd.f32 %v4481, %v4549
    %v4551 = vpop.f32.mrf.mxu0
    %v4552 = vadd.f32 %v4483, %v4551
    %4553 = vmatmul.bf16.gmra.mxu0 %v4300
    %v4554 = vpop.f32.mrf.mxu0
    %v4555 = vadd.f32 %v4486, %v4554
    %v4556 = vpop.f32.mrf.mxu0
    %v4557 = vadd.f32 %v4488, %v4556
    %4558 = vmatmul.bf16.gmra.mxu0 %v4302
    %v4559 = vpop.f32.mrf.mxu0
    %v4560 = vadd.f32 %v4491, %v4559
    %v4561 = vpop.f32.mrf.mxu0
    %v4562 = vadd.f32 %v4493, %v4561
    %4563 = vmatmul.bf16.gmra.mxu0 %v4304
    %v4564 = vpop.f32.mrf.mxu0
    %v4565 = vadd.f32 %v4496, %v4564
    %v4566 = vpop.f32.mrf.mxu0
    %v4567 = vadd.f32 %v4498, %v4566
    %4568 = vmatmul.bf16.gmra.mxu0 %v4306
    %v4569 = vpop.f32.mrf.mxu0
    %v4570 = vadd.f32 %v4501, %v4569
    %v4571 = vpop.f32.mrf.mxu0
    %v4572 = vadd.f32 %v4503, %v4571
    %4573 = vmatmul.bf16.gmra.mxu0 %v4308
    %v4574 = vpop.f32.mrf.mxu0
    %v4575 = vadd.f32 %v4506, %v4574
    %v4576 = vpop.f32.mrf.mxu0
    %v4577 = vadd.f32 %v4508, %v4576
    %4578 = vdwg.mxu0
    %4579 = vst.msk [vmem:[%s10] sm:$0xff] %vm182, %v4520
    %4580 = vst.msk [vmem:[%s10 + $0x8] sm:$0xff] %vm182, %v4522
    %4581 = vst.msk [vmem:[%s10 + $0x10] sm:$0xff] %vm182, %v4525
    %4582 = vst.msk [vmem:[%s10 + $0x18] sm:$0xff] %vm182, %v4527
    %4583 = vst.msk [vmem:[%s10 + $0x20] sm:$0xff] %vm182, %v4530
    %4584 = vst.msk [vmem:[%s10 + $0x28] sm:$0xff] %vm182, %v4532
    %4585 = vst.msk [vmem:[%s10 + $0x30] sm:$0xff] %vm182, %v4535
    %4586 = vst.msk [vmem:[%s10 + $0x38] sm:$0xff] %vm182, %v4537
    %4587 = vst.msk [vmem:[%s10 + $0x40] sm:$0xff] %vm182, %v4540
    %4588 = vst.msk [vmem:[%s10 + $0x48] sm:$0xff] %vm182, %v4542
    %4589 = vst.msk [vmem:[%s10 + $0x50] sm:$0xff] %vm182, %v4545
    %4590 = vst.msk [vmem:[%s10 + $0x58] sm:$0xff] %vm182, %v4547
    %4591 = vst.msk [vmem:[%s10 + $0x60] sm:$0xff] %vm182, %v4550
    %4592 = vst.msk [vmem:[%s10 + $0x68] sm:$0xff] %vm182, %v4552
    %4593 = vst.msk [vmem:[%s10 + $0x70] sm:$0xff] %vm182, %v4555
    %4594 = vst.msk [vmem:[%s10 + $0x78] sm:$0xff] %vm182, %v4557
    %4595 = vst.msk [vmem:[%s10 + $0x80] sm:$0xff] %vm182, %v4560
    %4596 = vst.msk [vmem:[%s10 + $0x88] sm:$0xff] %vm182, %v4562
    %4597 = vst.msk [vmem:[%s10 + $0x90] sm:$0xff] %vm182, %v4565
    %4598 = vst.msk [vmem:[%s10 + $0x98] sm:$0xff] %vm182, %v4567
    %4599 = vst.msk [vmem:[%s10 + $0xa0] sm:$0xff] %vm182, %v4570
    %4600 = vst.msk [vmem:[%s10 + $0xa8] sm:$0xff] %vm182, %v4572
    %4601 = vst.msk [vmem:[%s10 + $0xb0] sm:$0xff] %vm182, %v4575
    %4602 = vst.msk [vmem:[%s10 + $0xb8] sm:$0xff] %vm182, %v4577
    // Predicated region
    $region62: #{tpu_custom_call.1} parent=1 // pred_check
      _
    $region63: #{tpu_custom_call.1} parent=1 // pred_check_branch
      %4604 = sbr.rel (0) target = $region65
    $region64: #{tpu_custom_call.1} parent=1 // pred_region
      _
    $region65: #{tpu_custom_call.1} parent=1 // pred_fallthru
      _
    // Predicated region
    $region66: #{tpu_custom_call.1} parent=1 // pred_check
      _
    $region67: #{tpu_custom_call.1} parent=1 // pred_check_branch
      %4606 = sbr.rel (0) target = $region69
    $region68: #{tpu_custom_call.1} parent=1 // pred_region
      _
    $region69: #{tpu_custom_call.1} parent=1 // pred_fallthru
      _
    %4607 = vsyncpa [#allocation3], 1
    %4608 = vsyncpa [#allocation5], 1
    %4609 = vsyncpa [#allocation8], 1

</llo_original>
